<compile_context>
chip_gen: v6e
topology: v6e:2x2x1
jax: 0.10.0
libtpu: 0.0.40
codegen_flags: <defaults>
</compile_context>

<pallas_src>
import math

import jax
import jax.numpy as jnp
from jax.experimental import pallas as pl
from jax.experimental.pallas import tpu as pltpu

# Model hyper-parameters (small versions of the module defaults
# inputsize=512, hidensize=256, layer=3, outputsize=2).
SEQ_LEN = 8
BATCH = 4
BATCH_PAD = 8          # one full sublane
INPUT_SIZE = 128
HIDDEN_SIZE = 128
NUM_LAYERS = 3
OUTPUT_SIZE = 2
OUT_PAD = 128          # lane-dense padded output width (sliced in the wrapper)


def make_rnn_kernel(num_layers, seq_len, bpad):
    """Kernel ref order:
       x_flat, [wih_T, whh_T, bias] * num_layers, wlin_T_pad, blin_pad,
       out, top_buf
    """

    def rnn_kernel(*refs):
        x_ref = refs[0]
        wlin_ref = refs[1 + 3 * num_layers]
        blin_ref = refs[2 + 3 * num_layers]
        out_ref = refs[-2]
        top_buf = refs[-1]        # VMEM scratch: (seq*bpad, H) last-layer outs

        hidden = top_buf.shape[-1]

        # ---- hoisted layer-0 input projection: one dense MXU matmul --------
        # (seq*bpad, in) @ (in, H) + (bih0 + bhh0); result stays in registers.
        wih0_ref, b0_ref = refs[1], refs[3]
        xw0 = (jnp.dot(x_ref[...], wih0_ref[...],
                       preferred_element_type=jnp.float32)
               + b0_ref[...])                     # (seq*bpad, H), ~8 vregs

        # ---- wavefront recurrence over s = t + layer ------------------------
        # Per wavefront step the (up to) three layer updates only depend on
        # hidden states from the previous step, so their matmuls overlap on
        # the MXU; dependent chain = seq + layers - 1 stages.
        h = [jnp.zeros((bpad, hidden), jnp.float32) for _ in range(num_layers)]
        for s in range(seq_len + num_layers - 1):         # statically unrolled
            h_prev = list(h)                   # snapshot of previous-step state
            for l in range(num_layers):
                t = s - l
                if not (0 <= t < seq_len):
                    continue
                base = 1 + 3 * l
                wih_ref, whh_ref, b_ref = refs[base], refs[base + 1], refs[base + 2]
                lo, hi = t * bpad, (t + 1) * bpad
                if l == 0:
                    pre = xw0[lo:hi, :]        # precomputed XW[t] + bias (regs)
                else:
                    pre = (jnp.dot(h_prev[l - 1], wih_ref[...],
                                   preferred_element_type=jnp.float32)
                           + b_ref[...])
                h[l] = jnp.tanh(
                    pre + jnp.dot(h_prev[l], whh_ref[...],
                                  preferred_element_type=jnp.float32))
                if l == num_layers - 1:
                    # aligned full-vreg (8, 128) store, off the critical chain
                    top_buf[lo:hi, :] = h[l]

        # ---- final Linear on the full last-layer buffer (lane-dense out) ---
        out_ref[...] = (
            jnp.dot(top_buf[...], wlin_ref[...],
                    preferred_element_type=jnp.float32)
            + blin_ref[...])                              # (seq*bpad, OUT_PAD)

    return rnn_kernel


def rnn_model_forward(x, params):
    seq_len, batch, in_size = x.shape
    hidden = params["whh"][0].shape[0]
    out_size = params["w_lin"].shape[0]
    bpad = BATCH_PAD

    # Pad batch to a full sublane tile; pad rows are zeroed once (rows stay
    # independent through every matmul, so real rows remain exact).
    x_pad = jnp.zeros((seq_len, bpad, in_size), jnp.float32)
    x_pad = x_pad.at[:, :batch, :].set(x)
    x_flat = x_pad.reshape(seq_len * bpad, in_size)       # time-major flatten

    inputs = [x_flat]
    for l in range(NUM_LAYERS):
        inputs += [
            params["wih"][l].T,                                   # (in_feat, H)
            params["whh"][l].T,                                   # (H, H)
            (params["bih"][l] + params["bhh"][l]).reshape(1, hidden),
        ]
    # lane-pad the Linear to OUT_PAD columns so the output store is unmasked
    wlin_pad = jnp.zeros((hidden, OUT_PAD), jnp.float32)
    wlin_pad = wlin_pad.at[:, :out_size].set(params["w_lin"].T)
    blin_pad = jnp.zeros((1, OUT_PAD), jnp.float32)
    blin_pad = blin_pad.at[:, :out_size].set(params["b_lin"].reshape(1, out_size))
    inputs += [wlin_pad, blin_pad]

    out_pad = pl.pallas_call(
        make_rnn_kernel(NUM_LAYERS, seq_len, bpad),
        out_shape=jax.ShapeDtypeStruct((seq_len * bpad, OUT_PAD), jnp.float32),
        in_specs=[pl.BlockSpec(memory_space=pltpu.MemorySpace.VMEM)] * len(inputs),
        out_specs=pl.BlockSpec(memory_space=pltpu.MemorySpace.VMEM),
        scratch_shapes=[
            pltpu.VMEM((seq_len * bpad, hidden), jnp.float32),    # top_buf
        ],
    )(*inputs)

    # r_out[:, -1, :]  ->  batch row (batch-1) inside each padded 8-row tile,
    # then the real output columns; output.unsqueeze(1).
    out = out_pad.reshape(seq_len, bpad, OUT_PAD)[:, batch - 1, :out_size]
    return out[:, None, :]                          # (seq_len, 1, output_size)


def rnn_reference(x, params):
    """Pure-JAX reference matching PyTorch nn.RNN + Linear semantics."""
    seq_len, batch, _ = x.shape
    layer_in = x
    for l in range(NUM_LAYERS):
        wih, whh = params["wih"][l], params["whh"][l]
        bih, bhh = params["bih"][l], params["bhh"][l]
        h = jnp.zeros((batch, whh.shape[0]), jnp.float32)
        outs = []
        for t in range(seq_len):
            h = jnp.tanh(layer_in[t] @ wih.T + bih + h @ whh.T + bhh)
            outs.append(h)
        layer_in = jnp.stack(outs, axis=0)
    top = layer_in[:, -1, :]                        # last batch element
    out = top @ params["w_lin"].T + params["b_lin"]
    return out[:, None, :]


def init_params(key):
    """Deterministic init mimicking PyTorch's U(-1/sqrt(H), 1/sqrt(H))."""
    k = 1.0 / math.sqrt(HIDDEN_SIZE)
    keys = jax.random.split(key, NUM_LAYERS * 4 + 2)
    params = {"wih": [], "whh": [], "bih": [], "bhh": []}
    idx = 0
    for l in range(NUM_LAYERS):
        in_feat = INPUT_SIZE if l == 0 else HIDDEN_SIZE
        params["wih"].append(jax.random.uniform(
            keys[idx], (HIDDEN_SIZE, in_feat), jnp.float32, -k, k)); idx += 1
        params["whh"].append(jax.random.uniform(
            keys[idx], (HIDDEN_SIZE, HIDDEN_SIZE), jnp.float32, -k, k)); idx += 1
        params["bih"].append(jax.random.uniform(
            keys[idx], (HIDDEN_SIZE,), jnp.float32, -k, k)); idx += 1
        params["bhh"].append(jax.random.uniform(
            keys[idx], (HIDDEN_SIZE,), jnp.float32, -k, k)); idx += 1
    params["w_lin"] = jax.random.uniform(
        keys[idx], (OUTPUT_SIZE, HIDDEN_SIZE), jnp.float32, -k, k); idx += 1
    params["b_lin"] = jax.random.uniform(
        keys[idx], (OUTPUT_SIZE,), jnp.float32, -k, k)
    return params


if __name__ == "__main__":
    key = jax.random.PRNGKey(0)
    pkey, xkey = jax.random.split(key)
    params = init_params(pkey)
    x = jax.random.normal(xkey, (SEQ_LEN, BATCH, INPUT_SIZE), jnp.float32)

    out = rnn_model_forward(x, params)
    out = jax.block_until_ready(out)

    ref = rnn_reference(x, params)
    assert out.shape == (SEQ_LEN, 1, OUTPUT_SIZE), out.shape
    assert jnp.allclose(out, ref, atol=1e-4, rtol=1e-4), (
        float(jnp.max(jnp.abs(out - ref))))

    print("KERNEL_OK")
</pallas_src>

<mosaic_0001>
module attributes {stable_mosaic.version = 11 : i64} {
  func.func @rnn_kernel(%arg0: memref<64x128xf32, #tpu.memory_space<vmem>>, %arg1: memref<128x128xf32, #tpu.memory_space<vmem>>, %arg2: memref<128x128xf32, #tpu.memory_space<vmem>>, %arg3: memref<1x128xf32, #tpu.memory_space<vmem>>, %arg4: memref<128x128xf32, #tpu.memory_space<vmem>>, %arg5: memref<128x128xf32, #tpu.memory_space<vmem>>, %arg6: memref<1x128xf32, #tpu.memory_space<vmem>>, %arg7: memref<128x128xf32, #tpu.memory_space<vmem>>, %arg8: memref<128x128xf32, #tpu.memory_space<vmem>>, %arg9: memref<1x128xf32, #tpu.memory_space<vmem>>, %arg10: memref<128x128xf32, #tpu.memory_space<vmem>>, %arg11: memref<1x128xf32, #tpu.memory_space<vmem>>, %arg12: memref<64x128xf32, #tpu.memory_space<vmem>>, %arg13: memref<64x128xf32, #tpu.memory_space<vmem>>) attributes {dimension_semantics = [], scalar_prefetch = 0 : i64, scratch_operands = 1 : i64, tpu.core_type = #tpu.core_type<tc>} {
    %c0 = arith.constant 0 : index
    %c0_0 = arith.constant 0 : index
    %0 = vector.load %arg0[%c0, %c0_0] : memref<64x128xf32, #tpu.memory_space<vmem>>, vector<64x128xf32>
    %c0_1 = arith.constant 0 : index
    %c0_2 = arith.constant 0 : index
    %1 = vector.load %arg1[%c0_1, %c0_2] : memref<128x128xf32, #tpu.memory_space<vmem>>, vector<128x128xf32>
    %cst = arith.constant dense<0.000000e+00> : vector<64x128xf32>
    %2 = tpu.matmul %0, %1, %cst {dimension_numbers = #tpu.dot_dimension_numbers<[1], [0], [0], [1], [0, 0, 1, 1], [], []>} : vector<64x128xf32>, vector<128x128xf32>, vector<64x128xf32> -> vector<64x128xf32>
    %c0_3 = arith.constant 0 : index
    %c0_4 = arith.constant 0 : index
    %3 = vector.load %arg3[%c0_3, %c0_4] : memref<1x128xf32, #tpu.memory_space<vmem>>, vector<1x128xf32>
    %4 = vector.broadcast %3 : vector<1x128xf32> to vector<64x128xf32>
    %5 = arith.addf %2, %4 : vector<64x128xf32>
    %cst_5 = arith.constant 0.000000e+00 : f32
    %6 = vector.broadcast %cst_5 : f32 to vector<8x128xf32>
    %cst_6 = arith.constant 0.000000e+00 : f32
    %7 = vector.broadcast %cst_6 : f32 to vector<8x128xf32>
    %cst_7 = arith.constant 0.000000e+00 : f32
    %8 = vector.broadcast %cst_7 : f32 to vector<8x128xf32>
    %9 = vector.extract_strided_slice %5 {offsets = [0, 0], sizes = [8, 128], strides = [1, 1]} : vector<64x128xf32> to vector<8x128xf32>
    %c0_8 = arith.constant 0 : index
    %c0_9 = arith.constant 0 : index
    %10 = vector.load %arg2[%c0_8, %c0_9] : memref<128x128xf32, #tpu.memory_space<vmem>>, vector<128x128xf32>
    %cst_10 = arith.constant dense<0.000000e+00> : vector<8x128xf32>
    %11 = tpu.matmul %6, %10, %cst_10 {dimension_numbers = #tpu.dot_dimension_numbers<[1], [0], [0], [1], [0, 0, 1, 1], [], []>} : vector<8x128xf32>, vector<128x128xf32>, vector<8x128xf32> -> vector<8x128xf32>
    %12 = arith.addf %9, %11 : vector<8x128xf32>
    %13 = math.tanh %12 : vector<8x128xf32>
    %14 = vector.extract_strided_slice %5 {offsets = [8, 0], sizes = [8, 128], strides = [1, 1]} : vector<64x128xf32> to vector<8x128xf32>
    %c0_11 = arith.constant 0 : index
    %c0_12 = arith.constant 0 : index
    %15 = vector.load %arg2[%c0_11, %c0_12] : memref<128x128xf32, #tpu.memory_space<vmem>>, vector<128x128xf32>
    %cst_13 = arith.constant dense<0.000000e+00> : vector<8x128xf32>
    %16 = tpu.matmul %13, %15, %cst_13 {dimension_numbers = #tpu.dot_dimension_numbers<[1], [0], [0], [1], [0, 0, 1, 1], [], []>} : vector<8x128xf32>, vector<128x128xf32>, vector<8x128xf32> -> vector<8x128xf32>
    %17 = arith.addf %14, %16 : vector<8x128xf32>
    %18 = math.tanh %17 : vector<8x128xf32>
    %c0_14 = arith.constant 0 : index
    %c0_15 = arith.constant 0 : index
    %19 = vector.load %arg4[%c0_14, %c0_15] : memref<128x128xf32, #tpu.memory_space<vmem>>, vector<128x128xf32>
    %cst_16 = arith.constant dense<0.000000e+00> : vector<8x128xf32>
    %20 = tpu.matmul %13, %19, %cst_16 {dimension_numbers = #tpu.dot_dimension_numbers<[1], [0], [0], [1], [0, 0, 1, 1], [], []>} : vector<8x128xf32>, vector<128x128xf32>, vector<8x128xf32> -> vector<8x128xf32>
    %c0_17 = arith.constant 0 : index
    %c0_18 = arith.constant 0 : index
    %21 = vector.load %arg6[%c0_17, %c0_18] : memref<1x128xf32, #tpu.memory_space<vmem>>, vector<1x128xf32>
    %22 = vector.broadcast %21 : vector<1x128xf32> to vector<8x128xf32>
    %23 = arith.addf %20, %22 : vector<8x128xf32>
    %c0_19 = arith.constant 0 : index
    %c0_20 = arith.constant 0 : index
    %24 = vector.load %arg5[%c0_19, %c0_20] : memref<128x128xf32, #tpu.memory_space<vmem>>, vector<128x128xf32>
    %cst_21 = arith.constant dense<0.000000e+00> : vector<8x128xf32>
    %25 = tpu.matmul %7, %24, %cst_21 {dimension_numbers = #tpu.dot_dimension_numbers<[1], [0], [0], [1], [0, 0, 1, 1], [], []>} : vector<8x128xf32>, vector<128x128xf32>, vector<8x128xf32> -> vector<8x128xf32>
    %26 = arith.addf %23, %25 : vector<8x128xf32>
    %27 = math.tanh %26 : vector<8x128xf32>
    %28 = vector.extract_strided_slice %5 {offsets = [16, 0], sizes = [8, 128], strides = [1, 1]} : vector<64x128xf32> to vector<8x128xf32>
    %c0_22 = arith.constant 0 : index
    %c0_23 = arith.constant 0 : index
    %29 = vector.load %arg2[%c0_22, %c0_23] : memref<128x128xf32, #tpu.memory_space<vmem>>, vector<128x128xf32>
    %cst_24 = arith.constant dense<0.000000e+00> : vector<8x128xf32>
    %30 = tpu.matmul %18, %29, %cst_24 {dimension_numbers = #tpu.dot_dimension_numbers<[1], [0], [0], [1], [0, 0, 1, 1], [], []>} : vector<8x128xf32>, vector<128x128xf32>, vector<8x128xf32> -> vector<8x128xf32>
    %31 = arith.addf %28, %30 : vector<8x128xf32>
    %32 = math.tanh %31 : vector<8x128xf32>
    %c0_25 = arith.constant 0 : index
    %c0_26 = arith.constant 0 : index
    %33 = vector.load %arg4[%c0_25, %c0_26] : memref<128x128xf32, #tpu.memory_space<vmem>>, vector<128x128xf32>
    %cst_27 = arith.constant dense<0.000000e+00> : vector<8x128xf32>
    %34 = tpu.matmul %18, %33, %cst_27 {dimension_numbers = #tpu.dot_dimension_numbers<[1], [0], [0], [1], [0, 0, 1, 1], [], []>} : vector<8x128xf32>, vector<128x128xf32>, vector<8x128xf32> -> vector<8x128xf32>
    %c0_28 = arith.constant 0 : index
    %c0_29 = arith.constant 0 : index
    %35 = vector.load %arg6[%c0_28, %c0_29] : memref<1x128xf32, #tpu.memory_space<vmem>>, vector<1x128xf32>
    %36 = vector.broadcast %35 : vector<1x128xf32> to vector<8x128xf32>
    %37 = arith.addf %34, %36 : vector<8x128xf32>
    %c0_30 = arith.constant 0 : index
    %c0_31 = arith.constant 0 : index
    %38 = vector.load %arg5[%c0_30, %c0_31] : memref<128x128xf32, #tpu.memory_space<vmem>>, vector<128x128xf32>
    %cst_32 = arith.constant dense<0.000000e+00> : vector<8x128xf32>
    %39 = tpu.matmul %27, %38, %cst_32 {dimension_numbers = #tpu.dot_dimension_numbers<[1], [0], [0], [1], [0, 0, 1, 1], [], []>} : vector<8x128xf32>, vector<128x128xf32>, vector<8x128xf32> -> vector<8x128xf32>
    %40 = arith.addf %37, %39 : vector<8x128xf32>
    %41 = math.tanh %40 : vector<8x128xf32>
    %c0_33 = arith.constant 0 : index
    %c0_34 = arith.constant 0 : index
    %42 = vector.load %arg7[%c0_33, %c0_34] : memref<128x128xf32, #tpu.memory_space<vmem>>, vector<128x128xf32>
    %cst_35 = arith.constant dense<0.000000e+00> : vector<8x128xf32>
    %43 = tpu.matmul %27, %42, %cst_35 {dimension_numbers = #tpu.dot_dimension_numbers<[1], [0], [0], [1], [0, 0, 1, 1], [], []>} : vector<8x128xf32>, vector<128x128xf32>, vector<8x128xf32> -> vector<8x128xf32>
    %c0_36 = arith.constant 0 : index
    %c0_37 = arith.constant 0 : index
    %44 = vector.load %arg9[%c0_36, %c0_37] : memref<1x128xf32, #tpu.memory_space<vmem>>, vector<1x128xf32>
    %45 = vector.broadcast %44 : vector<1x128xf32> to vector<8x128xf32>
    %46 = arith.addf %43, %45 : vector<8x128xf32>
    %c0_38 = arith.constant 0 : index
    %c0_39 = arith.constant 0 : index
    %47 = vector.load %arg8[%c0_38, %c0_39] : memref<128x128xf32, #tpu.memory_space<vmem>>, vector<128x128xf32>
    %cst_40 = arith.constant dense<0.000000e+00> : vector<8x128xf32>
    %48 = tpu.matmul %8, %47, %cst_40 {dimension_numbers = #tpu.dot_dimension_numbers<[1], [0], [0], [1], [0, 0, 1, 1], [], []>} : vector<8x128xf32>, vector<128x128xf32>, vector<8x128xf32> -> vector<8x128xf32>
    %49 = arith.addf %46, %48 : vector<8x128xf32>
    %50 = math.tanh %49 : vector<8x128xf32>
    %c0_41 = arith.constant 0 : index
    %c0_42 = arith.constant 0 : index
    %51 = vector.load %arg13[%c0_41, %c0_42] : memref<64x128xf32, #tpu.memory_space<vmem>>, vector<8x128xf32>
    tpu.vector_store %arg13[%c0_41, %c0_42], %50 {strides = array<i32>} : memref<64x128xf32, #tpu.memory_space<vmem>>, vector<8x128xf32>,
    %52 = vector.extract_strided_slice %5 {offsets = [24, 0], sizes = [8, 128], strides = [1, 1]} : vector<64x128xf32> to vector<8x128xf32>
    %c0_43 = arith.constant 0 : index
    %c0_44 = arith.constant 0 : index
    %53 = vector.load %arg2[%c0_43, %c0_44] : memref<128x128xf32, #tpu.memory_space<vmem>>, vector<128x128xf32>
    %cst_45 = arith.constant dense<0.000000e+00> : vector<8x128xf32>
    %54 = tpu.matmul %32, %53, %cst_45 {dimension_numbers = #tpu.dot_dimension_numbers<[1], [0], [0], [1], [0, 0, 1, 1], [], []>} : vector<8x128xf32>, vector<128x128xf32>, vector<8x128xf32> -> vector<8x128xf32>
    %55 = arith.addf %52, %54 : vector<8x128xf32>
    %56 = math.tanh %55 : vector<8x128xf32>
    %c0_46 = arith.constant 0 : index
    %c0_47 = arith.constant 0 : index
    %57 = vector.load %arg4[%c0_46, %c0_47] : memref<128x128xf32, #tpu.memory_space<vmem>>, vector<128x128xf32>
    %cst_48 = arith.constant dense<0.000000e+00> : vector<8x128xf32>
    %58 = tpu.matmul %32, %57, %cst_48 {dimension_numbers = #tpu.dot_dimension_numbers<[1], [0], [0], [1], [0, 0, 1, 1], [], []>} : vector<8x128xf32>, vector<128x128xf32>, vector<8x128xf32> -> vector<8x128xf32>
    %c0_49 = arith.constant 0 : index
    %c0_50 = arith.constant 0 : index
    %59 = vector.load %arg6[%c0_49, %c0_50] : memref<1x128xf32, #tpu.memory_space<vmem>>, vector<1x128xf32>
    %60 = vector.broadcast %59 : vector<1x128xf32> to vector<8x128xf32>
    %61 = arith.addf %58, %60 : vector<8x128xf32>
    %c0_51 = arith.constant 0 : index
    %c0_52 = arith.constant 0 : index
    %62 = vector.load %arg5[%c0_51, %c0_52] : memref<128x128xf32, #tpu.memory_space<vmem>>, vector<128x128xf32>
    %cst_53 = arith.constant dense<0.000000e+00> : vector<8x128xf32>
    %63 = tpu.matmul %41, %62, %cst_53 {dimension_numbers = #tpu.dot_dimension_numbers<[1], [0], [0], [1], [0, 0, 1, 1], [], []>} : vector<8x128xf32>, vector<128x128xf32>, vector<8x128xf32> -> vector<8x128xf32>
    %64 = arith.addf %61, %63 : vector<8x128xf32>
    %65 = math.tanh %64 : vector<8x128xf32>
    %c0_54 = arith.constant 0 : index
    %c0_55 = arith.constant 0 : index
    %66 = vector.load %arg7[%c0_54, %c0_55] : memref<128x128xf32, #tpu.memory_space<vmem>>, vector<128x128xf32>
    %cst_56 = arith.constant dense<0.000000e+00> : vector<8x128xf32>
    %67 = tpu.matmul %41, %66, %cst_56 {dimension_numbers = #tpu.dot_dimension_numbers<[1], [0], [0], [1], [0, 0, 1, 1], [], []>} : vector<8x128xf32>, vector<128x128xf32>, vector<8x128xf32> -> vector<8x128xf32>
    %c0_57 = arith.constant 0 : index
    %c0_58 = arith.constant 0 : index
    %68 = vector.load %arg9[%c0_57, %c0_58] : memref<1x128xf32, #tpu.memory_space<vmem>>, vector<1x128xf32>
    %69 = vector.broadcast %68 : vector<1x128xf32> to vector<8x128xf32>
    %70 = arith.addf %67, %69 : vector<8x128xf32>
    %c0_59 = arith.constant 0 : index
    %c0_60 = arith.constant 0 : index
    %71 = vector.load %arg8[%c0_59, %c0_60] : memref<128x128xf32, #tpu.memory_space<vmem>>, vector<128x128xf32>
    %cst_61 = arith.constant dense<0.000000e+00> : vector<8x128xf32>
    %72 = tpu.matmul %50, %71, %cst_61 {dimension_numbers = #tpu.dot_dimension_numbers<[1], [0], [0], [1], [0, 0, 1, 1], [], []>} : vector<8x128xf32>, vector<128x128xf32>, vector<8x128xf32> -> vector<8x128xf32>
    %73 = arith.addf %70, %72 : vector<8x128xf32>
    %74 = math.tanh %73 : vector<8x128xf32>
    %c8 = arith.constant 8 : index
    %c0_62 = arith.constant 0 : index
    %75 = vector.load %arg13[%c8, %c0_62] : memref<64x128xf32, #tpu.memory_space<vmem>>, vector<8x128xf32>
    tpu.vector_store %arg13[%c8, %c0_62], %74 {strides = array<i32>} : memref<64x128xf32, #tpu.memory_space<vmem>>, vector<8x128xf32>,
    %76 = vector.extract_strided_slice %5 {offsets = [32, 0], sizes = [8, 128], strides = [1, 1]} : vector<64x128xf32> to vector<8x128xf32>
    %c0_63 = arith.constant 0 : index
    %c0_64 = arith.constant 0 : index
    %77 = vector.load %arg2[%c0_63, %c0_64] : memref<128x128xf32, #tpu.memory_space<vmem>>, vector<128x128xf32>
    %cst_65 = arith.constant dense<0.000000e+00> : vector<8x128xf32>
    %78 = tpu.matmul %56, %77, %cst_65 {dimension_numbers = #tpu.dot_dimension_numbers<[1], [0], [0], [1], [0, 0, 1, 1], [], []>} : vector<8x128xf32>, vector<128x128xf32>, vector<8x128xf32> -> vector<8x128xf32>
    %79 = arith.addf %76, %78 : vector<8x128xf32>
    %80 = math.tanh %79 : vector<8x128xf32>
    %c0_66 = arith.constant 0 : index
    %c0_67 = arith.constant 0 : index
    %81 = vector.load %arg4[%c0_66, %c0_67] : memref<128x128xf32, #tpu.memory_space<vmem>>, vector<128x128xf32>
    %cst_68 = arith.constant dense<0.000000e+00> : vector<8x128xf32>
    %82 = tpu.matmul %56, %81, %cst_68 {dimension_numbers = #tpu.dot_dimension_numbers<[1], [0], [0], [1], [0, 0, 1, 1], [], []>} : vector<8x128xf32>, vector<128x128xf32>, vector<8x128xf32> -> vector<8x128xf32>
    %c0_69 = arith.constant 0 : index
    %c0_70 = arith.constant 0 : index
    %83 = vector.load %arg6[%c0_69, %c0_70] : memref<1x128xf32, #tpu.memory_space<vmem>>, vector<1x128xf32>
    %84 = vector.broadcast %83 : vector<1x128xf32> to vector<8x128xf32>
    %85 = arith.addf %82, %84 : vector<8x128xf32>
    %c0_71 = arith.constant 0 : index
    %c0_72 = arith.constant 0 : index
    %86 = vector.load %arg5[%c0_71, %c0_72] : memref<128x128xf32, #tpu.memory_space<vmem>>, vector<128x128xf32>
    %cst_73 = arith.constant dense<0.000000e+00> : vector<8x128xf32>
    %87 = tpu.matmul %65, %86, %cst_73 {dimension_numbers = #tpu.dot_dimension_numbers<[1], [0], [0], [1], [0, 0, 1, 1], [], []>} : vector<8x128xf32>, vector<128x128xf32>, vector<8x128xf32> -> vector<8x128xf32>
    %88 = arith.addf %85, %87 : vector<8x128xf32>
    %89 = math.tanh %88 : vector<8x128xf32>
    %c0_74 = arith.constant 0 : index
    %c0_75 = arith.constant 0 : index
    %90 = vector.load %arg7[%c0_74, %c0_75] : memref<128x128xf32, #tpu.memory_space<vmem>>, vector<128x128xf32>
    %cst_76 = arith.constant dense<0.000000e+00> : vector<8x128xf32>
    %91 = tpu.matmul %65, %90, %cst_76 {dimension_numbers = #tpu.dot_dimension_numbers<[1], [0], [0], [1], [0, 0, 1, 1], [], []>} : vector<8x128xf32>, vector<128x128xf32>, vector<8x128xf32> -> vector<8x128xf32>
    %c0_77 = arith.constant 0 : index
    %c0_78 = arith.constant 0 : index
    %92 = vector.load %arg9[%c0_77, %c0_78] : memref<1x128xf32, #tpu.memory_space<vmem>>, vector<1x128xf32>
    %93 = vector.broadcast %92 : vector<1x128xf32> to vector<8x128xf32>
    %94 = arith.addf %91, %93 : vector<8x128xf32>
    %c0_79 = arith.constant 0 : index
    %c0_80 = arith.constant 0 : index
    %95 = vector.load %arg8[%c0_79, %c0_80] : memref<128x128xf32, #tpu.memory_space<vmem>>, vector<128x128xf32>
    %cst_81 = arith.constant dense<0.000000e+00> : vector<8x128xf32>
    %96 = tpu.matmul %74, %95, %cst_81 {dimension_numbers = #tpu.dot_dimension_numbers<[1], [0], [0], [1], [0, 0, 1, 1], [], []>} : vector<8x128xf32>, vector<128x128xf32>, vector<8x128xf32> -> vector<8x128xf32>
    %97 = arith.addf %94, %96 : vector<8x128xf32>
    %98 = math.tanh %97 : vector<8x128xf32>
    %c16 = arith.constant 16 : index
    %c0_82 = arith.constant 0 : index
    %99 = vector.load %arg13[%c16, %c0_82] : memref<64x128xf32, #tpu.memory_space<vmem>>, vector<8x128xf32>
    tpu.vector_store %arg13[%c16, %c0_82], %98 {strides = array<i32>} : memref<64x128xf32, #tpu.memory_space<vmem>>, vector<8x128xf32>,
    %100 = vector.extract_strided_slice %5 {offsets = [40, 0], sizes = [8, 128], strides = [1, 1]} : vector<64x128xf32> to vector<8x128xf32>
    %c0_83 = arith.constant 0 : index
    %c0_84 = arith.constant 0 : index
    %101 = vector.load %arg2[%c0_83, %c0_84] : memref<128x128xf32, #tpu.memory_space<vmem>>, vector<128x128xf32>
    %cst_85 = arith.constant dense<0.000000e+00> : vector<8x128xf32>
    %102 = tpu.matmul %80, %101, %cst_85 {dimension_numbers = #tpu.dot_dimension_numbers<[1], [0], [0], [1], [0, 0, 1, 1], [], []>} : vector<8x128xf32>, vector<128x128xf32>, vector<8x128xf32> -> vector<8x128xf32>
    %103 = arith.addf %100, %102 : vector<8x128xf32>
    %104 = math.tanh %103 : vector<8x128xf32>
    %c0_86 = arith.constant 0 : index
    %c0_87 = arith.constant 0 : index
    %105 = vector.load %arg4[%c0_86, %c0_87] : memref<128x128xf32, #tpu.memory_space<vmem>>, vector<128x128xf32>
    %cst_88 = arith.constant dense<0.000000e+00> : vector<8x128xf32>
    %106 = tpu.matmul %80, %105, %cst_88 {dimension_numbers = #tpu.dot_dimension_numbers<[1], [0], [0], [1], [0, 0, 1, 1], [], []>} : vector<8x128xf32>, vector<128x128xf32>, vector<8x128xf32> -> vector<8x128xf32>
    %c0_89 = arith.constant 0 : index
    %c0_90 = arith.constant 0 : index
    %107 = vector.load %arg6[%c0_89, %c0_90] : memref<1x128xf32, #tpu.memory_space<vmem>>, vector<1x128xf32>
    %108 = vector.broadcast %107 : vector<1x128xf32> to vector<8x128xf32>
    %109 = arith.addf %106, %108 : vector<8x128xf32>
    %c0_91 = arith.constant 0 : index
    %c0_92 = arith.constant 0 : index
    %110 = vector.load %arg5[%c0_91, %c0_92] : memref<128x128xf32, #tpu.memory_space<vmem>>, vector<128x128xf32>
    %cst_93 = arith.constant dense<0.000000e+00> : vector<8x128xf32>
    %111 = tpu.matmul %89, %110, %cst_93 {dimension_numbers = #tpu.dot_dimension_numbers<[1], [0], [0], [1], [0, 0, 1, 1], [], []>} : vector<8x128xf32>, vector<128x128xf32>, vector<8x128xf32> -> vector<8x128xf32>
    %112 = arith.addf %109, %111 : vector<8x128xf32>
    %113 = math.tanh %112 : vector<8x128xf32>
    %c0_94 = arith.constant 0 : index
    %c0_95 = arith.constant 0 : index
    %114 = vector.load %arg7[%c0_94, %c0_95] : memref<128x128xf32, #tpu.memory_space<vmem>>, vector<128x128xf32>
    %cst_96 = arith.constant dense<0.000000e+00> : vector<8x128xf32>
    %115 = tpu.matmul %89, %114, %cst_96 {dimension_numbers = #tpu.dot_dimension_numbers<[1], [0], [0], [1], [0, 0, 1, 1], [], []>} : vector<8x128xf32>, vector<128x128xf32>, vector<8x128xf32> -> vector<8x128xf32>
    %c0_97 = arith.constant 0 : index
    %c0_98 = arith.constant 0 : index
    %116 = vector.load %arg9[%c0_97, %c0_98] : memref<1x128xf32, #tpu.memory_space<vmem>>, vector<1x128xf32>
    %117 = vector.broadcast %116 : vector<1x128xf32> to vector<8x128xf32>
    %118 = arith.addf %115, %117 : vector<8x128xf32>
    %c0_99 = arith.constant 0 : index
    %c0_100 = arith.constant 0 : index
    %119 = vector.load %arg8[%c0_99, %c0_100] : memref<128x128xf32, #tpu.memory_space<vmem>>, vector<128x128xf32>
    %cst_101 = arith.constant dense<0.000000e+00> : vector<8x128xf32>
    %120 = tpu.matmul %98, %119, %cst_101 {dimension_numbers = #tpu.dot_dimension_numbers<[1], [0], [0], [1], [0, 0, 1, 1], [], []>} : vector<8x128xf32>, vector<128x128xf32>, vector<8x128xf32> -> vector<8x128xf32>
    %121 = arith.addf %118, %120 : vector<8x128xf32>
    %122 = math.tanh %121 : vector<8x128xf32>
    %c24 = arith.constant 24 : index
    %c0_102 = arith.constant 0 : index
    %123 = vector.load %arg13[%c24, %c0_102] : memref<64x128xf32, #tpu.memory_space<vmem>>, vector<8x128xf32>
    tpu.vector_store %arg13[%c24, %c0_102], %122 {strides = array<i32>} : memref<64x128xf32, #tpu.memory_space<vmem>>, vector<8x128xf32>,
    %124 = vector.extract_strided_slice %5 {offsets = [48, 0], sizes = [8, 128], strides = [1, 1]} : vector<64x128xf32> to vector<8x128xf32>
    %c0_103 = arith.constant 0 : index
    %c0_104 = arith.constant 0 : index
    %125 = vector.load %arg2[%c0_103, %c0_104] : memref<128x128xf32, #tpu.memory_space<vmem>>, vector<128x128xf32>
    %cst_105 = arith.constant dense<0.000000e+00> : vector<8x128xf32>
    %126 = tpu.matmul %104, %125, %cst_105 {dimension_numbers = #tpu.dot_dimension_numbers<[1], [0], [0], [1], [0, 0, 1, 1], [], []>} : vector<8x128xf32>, vector<128x128xf32>, vector<8x128xf32> -> vector<8x128xf32>
    %127 = arith.addf %124, %126 : vector<8x128xf32>
    %128 = math.tanh %127 : vector<8x128xf32>
    %c0_106 = arith.constant 0 : index
    %c0_107 = arith.constant 0 : index
    %129 = vector.load %arg4[%c0_106, %c0_107] : memref<128x128xf32, #tpu.memory_space<vmem>>, vector<128x128xf32>
    %cst_108 = arith.constant dense<0.000000e+00> : vector<8x128xf32>
    %130 = tpu.matmul %104, %129, %cst_108 {dimension_numbers = #tpu.dot_dimension_numbers<[1], [0], [0], [1], [0, 0, 1, 1], [], []>} : vector<8x128xf32>, vector<128x128xf32>, vector<8x128xf32> -> vector<8x128xf32>
    %c0_109 = arith.constant 0 : index
    %c0_110 = arith.constant 0 : index
    %131 = vector.load %arg6[%c0_109, %c0_110] : memref<1x128xf32, #tpu.memory_space<vmem>>, vector<1x128xf32>
    %132 = vector.broadcast %131 : vector<1x128xf32> to vector<8x128xf32>
    %133 = arith.addf %130, %132 : vector<8x128xf32>
    %c0_111 = arith.constant 0 : index
    %c0_112 = arith.constant 0 : index
    %134 = vector.load %arg5[%c0_111, %c0_112] : memref<128x128xf32, #tpu.memory_space<vmem>>, vector<128x128xf32>
    %cst_113 = arith.constant dense<0.000000e+00> : vector<8x128xf32>
    %135 = tpu.matmul %113, %134, %cst_113 {dimension_numbers = #tpu.dot_dimension_numbers<[1], [0], [0], [1], [0, 0, 1, 1], [], []>} : vector<8x128xf32>, vector<128x128xf32>, vector<8x128xf32> -> vector<8x128xf32>
    %136 = arith.addf %133, %135 : vector<8x128xf32>
    %137 = math.tanh %136 : vector<8x128xf32>
    %c0_114 = arith.constant 0 : index
    %c0_115 = arith.constant 0 : index
    %138 = vector.load %arg7[%c0_114, %c0_115] : memref<128x128xf32, #tpu.memory_space<vmem>>, vector<128x128xf32>
    %cst_116 = arith.constant dense<0.000000e+00> : vector<8x128xf32>
    %139 = tpu.matmul %113, %138, %cst_116 {dimension_numbers = #tpu.dot_dimension_numbers<[1], [0], [0], [1], [0, 0, 1, 1], [], []>} : vector<8x128xf32>, vector<128x128xf32>, vector<8x128xf32> -> vector<8x128xf32>
    %c0_117 = arith.constant 0 : index
    %c0_118 = arith.constant 0 : index
    %140 = vector.load %arg9[%c0_117, %c0_118] : memref<1x128xf32, #tpu.memory_space<vmem>>, vector<1x128xf32>
    %141 = vector.broadcast %140 : vector<1x128xf32> to vector<8x128xf32>
    %142 = arith.addf %139, %141 : vector<8x128xf32>
    %c0_119 = arith.constant 0 : index
    %c0_120 = arith.constant 0 : index
    %143 = vector.load %arg8[%c0_119, %c0_120] : memref<128x128xf32, #tpu.memory_space<vmem>>, vector<128x128xf32>
    %cst_121 = arith.constant dense<0.000000e+00> : vector<8x128xf32>
    %144 = tpu.matmul %122, %143, %cst_121 {dimension_numbers = #tpu.dot_dimension_numbers<[1], [0], [0], [1], [0, 0, 1, 1], [], []>} : vector<8x128xf32>, vector<128x128xf32>, vector<8x128xf32> -> vector<8x128xf32>
    %145 = arith.addf %142, %144 : vector<8x128xf32>
    %146 = math.tanh %145 : vector<8x128xf32>
    %c32 = arith.constant 32 : index
    %c0_122 = arith.constant 0 : index
    %147 = vector.load %arg13[%c32, %c0_122] : memref<64x128xf32, #tpu.memory_space<vmem>>, vector<8x128xf32>
    tpu.vector_store %arg13[%c32, %c0_122], %146 {strides = array<i32>} : memref<64x128xf32, #tpu.memory_space<vmem>>, vector<8x128xf32>,
    %148 = vector.extract_strided_slice %5 {offsets = [56, 0], sizes = [8, 128], strides = [1, 1]} : vector<64x128xf32> to vector<8x128xf32>
    %c0_123 = arith.constant 0 : index
    %c0_124 = arith.constant 0 : index
    %149 = vector.load %arg2[%c0_123, %c0_124] : memref<128x128xf32, #tpu.memory_space<vmem>>, vector<128x128xf32>
    %cst_125 = arith.constant dense<0.000000e+00> : vector<8x128xf32>
    %150 = tpu.matmul %128, %149, %cst_125 {dimension_numbers = #tpu.dot_dimension_numbers<[1], [0], [0], [1], [0, 0, 1, 1], [], []>} : vector<8x128xf32>, vector<128x128xf32>, vector<8x128xf32> -> vector<8x128xf32>
    %151 = arith.addf %148, %150 : vector<8x128xf32>
    %152 = math.tanh %151 : vector<8x128xf32>
    %c0_126 = arith.constant 0 : index
    %c0_127 = arith.constant 0 : index
    %153 = vector.load %arg4[%c0_126, %c0_127] : memref<128x128xf32, #tpu.memory_space<vmem>>, vector<128x128xf32>
    %cst_128 = arith.constant dense<0.000000e+00> : vector<8x128xf32>
    %154 = tpu.matmul %128, %153, %cst_128 {dimension_numbers = #tpu.dot_dimension_numbers<[1], [0], [0], [1], [0, 0, 1, 1], [], []>} : vector<8x128xf32>, vector<128x128xf32>, vector<8x128xf32> -> vector<8x128xf32>
    %c0_129 = arith.constant 0 : index
    %c0_130 = arith.constant 0 : index
    %155 = vector.load %arg6[%c0_129, %c0_130] : memref<1x128xf32, #tpu.memory_space<vmem>>, vector<1x128xf32>
    %156 = vector.broadcast %155 : vector<1x128xf32> to vector<8x128xf32>
    %157 = arith.addf %154, %156 : vector<8x128xf32>
    %c0_131 = arith.constant 0 : index
    %c0_132 = arith.constant 0 : index
    %158 = vector.load %arg5[%c0_131, %c0_132] : memref<128x128xf32, #tpu.memory_space<vmem>>, vector<128x128xf32>
    %cst_133 = arith.constant dense<0.000000e+00> : vector<8x128xf32>
    %159 = tpu.matmul %137, %158, %cst_133 {dimension_numbers = #tpu.dot_dimension_numbers<[1], [0], [0], [1], [0, 0, 1, 1], [], []>} : vector<8x128xf32>, vector<128x128xf32>, vector<8x128xf32> -> vector<8x128xf32>
    %160 = arith.addf %157, %159 : vector<8x128xf32>
    %161 = math.tanh %160 : vector<8x128xf32>
    %c0_134 = arith.constant 0 : index
    %c0_135 = arith.constant 0 : index
    %162 = vector.load %arg7[%c0_134, %c0_135] : memref<128x128xf32, #tpu.memory_space<vmem>>, vector<128x128xf32>
    %cst_136 = arith.constant dense<0.000000e+00> : vector<8x128xf32>
    %163 = tpu.matmul %137, %162, %cst_136 {dimension_numbers = #tpu.dot_dimension_numbers<[1], [0], [0], [1], [0, 0, 1, 1], [], []>} : vector<8x128xf32>, vector<128x128xf32>, vector<8x128xf32> -> vector<8x128xf32>
    %c0_137 = arith.constant 0 : index
    %c0_138 = arith.constant 0 : index
    %164 = vector.load %arg9[%c0_137, %c0_138] : memref<1x128xf32, #tpu.memory_space<vmem>>, vector<1x128xf32>
    %165 = vector.broadcast %164 : vector<1x128xf32> to vector<8x128xf32>
    %166 = arith.addf %163, %165 : vector<8x128xf32>
    %c0_139 = arith.constant 0 : index
    %c0_140 = arith.constant 0 : index
    %167 = vector.load %arg8[%c0_139, %c0_140] : memref<128x128xf32, #tpu.memory_space<vmem>>, vector<128x128xf32>
    %cst_141 = arith.constant dense<0.000000e+00> : vector<8x128xf32>
    %168 = tpu.matmul %146, %167, %cst_141 {dimension_numbers = #tpu.dot_dimension_numbers<[1], [0], [0], [1], [0, 0, 1, 1], [], []>} : vector<8x128xf32>, vector<128x128xf32>, vector<8x128xf32> -> vector<8x128xf32>
    %169 = arith.addf %166, %168 : vector<8x128xf32>
    %170 = math.tanh %169 : vector<8x128xf32>
    %c40 = arith.constant 40 : index
    %c0_142 = arith.constant 0 : index
    %171 = vector.load %arg13[%c40, %c0_142] : memref<64x128xf32, #tpu.memory_space<vmem>>, vector<8x128xf32>
    tpu.vector_store %arg13[%c40, %c0_142], %170 {strides = array<i32>} : memref<64x128xf32, #tpu.memory_space<vmem>>, vector<8x128xf32>,
    %c0_143 = arith.constant 0 : index
    %c0_144 = arith.constant 0 : index
    %172 = vector.load %arg4[%c0_143, %c0_144] : memref<128x128xf32, #tpu.memory_space<vmem>>, vector<128x128xf32>
    %cst_145 = arith.constant dense<0.000000e+00> : vector<8x128xf32>
    %173 = tpu.matmul %152, %172, %cst_145 {dimension_numbers = #tpu.dot_dimension_numbers<[1], [0], [0], [1], [0, 0, 1, 1], [], []>} : vector<8x128xf32>, vector<128x128xf32>, vector<8x128xf32> -> vector<8x128xf32>
    %c0_146 = arith.constant 0 : index
    %c0_147 = arith.constant 0 : index
    %174 = vector.load %arg6[%c0_146, %c0_147] : memref<1x128xf32, #tpu.memory_space<vmem>>, vector<1x128xf32>
    %175 = vector.broadcast %174 : vector<1x128xf32> to vector<8x128xf32>
    %176 = arith.addf %173, %175 : vector<8x128xf32>
    %c0_148 = arith.constant 0 : index
    %c0_149 = arith.constant 0 : index
    %177 = vector.load %arg5[%c0_148, %c0_149] : memref<128x128xf32, #tpu.memory_space<vmem>>, vector<128x128xf32>
    %cst_150 = arith.constant dense<0.000000e+00> : vector<8x128xf32>
    %178 = tpu.matmul %161, %177, %cst_150 {dimension_numbers = #tpu.dot_dimension_numbers<[1], [0], [0], [1], [0, 0, 1, 1], [], []>} : vector<8x128xf32>, vector<128x128xf32>, vector<8x128xf32> -> vector<8x128xf32>
    %179 = arith.addf %176, %178 : vector<8x128xf32>
    %180 = math.tanh %179 : vector<8x128xf32>
    %c0_151 = arith.constant 0 : index
    %c0_152 = arith.constant 0 : index
    %181 = vector.load %arg7[%c0_151, %c0_152] : memref<128x128xf32, #tpu.memory_space<vmem>>, vector<128x128xf32>
    %cst_153 = arith.constant dense<0.000000e+00> : vector<8x128xf32>
    %182 = tpu.matmul %161, %181, %cst_153 {dimension_numbers = #tpu.dot_dimension_numbers<[1], [0], [0], [1], [0, 0, 1, 1], [], []>} : vector<8x128xf32>, vector<128x128xf32>, vector<8x128xf32> -> vector<8x128xf32>
    %c0_154 = arith.constant 0 : index
    %c0_155 = arith.constant 0 : index
    %183 = vector.load %arg9[%c0_154, %c0_155] : memref<1x128xf32, #tpu.memory_space<vmem>>, vector<1x128xf32>
    %184 = vector.broadcast %183 : vector<1x128xf32> to vector<8x128xf32>
    %185 = arith.addf %182, %184 : vector<8x128xf32>
    %c0_156 = arith.constant 0 : index
    %c0_157 = arith.constant 0 : index
    %186 = vector.load %arg8[%c0_156, %c0_157] : memref<128x128xf32, #tpu.memory_space<vmem>>, vector<128x128xf32>
    %cst_158 = arith.constant dense<0.000000e+00> : vector<8x128xf32>
    %187 = tpu.matmul %170, %186, %cst_158 {dimension_numbers = #tpu.dot_dimension_numbers<[1], [0], [0], [1], [0, 0, 1, 1], [], []>} : vector<8x128xf32>, vector<128x128xf32>, vector<8x128xf32> -> vector<8x128xf32>
    %188 = arith.addf %185, %187 : vector<8x128xf32>
    %189 = math.tanh %188 : vector<8x128xf32>
    %c48 = arith.constant 48 : index
    %c0_159 = arith.constant 0 : index
    %190 = vector.load %arg13[%c48, %c0_159] : memref<64x128xf32, #tpu.memory_space<vmem>>, vector<8x128xf32>
    tpu.vector_store %arg13[%c48, %c0_159], %189 {strides = array<i32>} : memref<64x128xf32, #tpu.memory_space<vmem>>, vector<8x128xf32>,
    %c0_160 = arith.constant 0 : index
    %c0_161 = arith.constant 0 : index
    %191 = vector.load %arg7[%c0_160, %c0_161] : memref<128x128xf32, #tpu.memory_space<vmem>>, vector<128x128xf32>
    %cst_162 = arith.constant dense<0.000000e+00> : vector<8x128xf32>
    %192 = tpu.matmul %180, %191, %cst_162 {dimension_numbers = #tpu.dot_dimension_numbers<[1], [0], [0], [1], [0, 0, 1, 1], [], []>} : vector<8x128xf32>, vector<128x128xf32>, vector<8x128xf32> -> vector<8x128xf32>
    %c0_163 = arith.constant 0 : index
    %c0_164 = arith.constant 0 : index
    %193 = vector.load %arg9[%c0_163, %c0_164] : memref<1x128xf32, #tpu.memory_space<vmem>>, vector<1x128xf32>
    %194 = vector.broadcast %193 : vector<1x128xf32> to vector<8x128xf32>
    %195 = arith.addf %192, %194 : vector<8x128xf32>
    %c0_165 = arith.constant 0 : index
    %c0_166 = arith.constant 0 : index
    %196 = vector.load %arg8[%c0_165, %c0_166] : memref<128x128xf32, #tpu.memory_space<vmem>>, vector<128x128xf32>
    %cst_167 = arith.constant dense<0.000000e+00> : vector<8x128xf32>
    %197 = tpu.matmul %189, %196, %cst_167 {dimension_numbers = #tpu.dot_dimension_numbers<[1], [0], [0], [1], [0, 0, 1, 1], [], []>} : vector<8x128xf32>, vector<128x128xf32>, vector<8x128xf32> -> vector<8x128xf32>
    %198 = arith.addf %195, %197 : vector<8x128xf32>
    %199 = math.tanh %198 : vector<8x128xf32>
    %c56 = arith.constant 56 : index
    %c0_168 = arith.constant 0 : index
    %200 = vector.load %arg13[%c56, %c0_168] : memref<64x128xf32, #tpu.memory_space<vmem>>, vector<8x128xf32>
    tpu.vector_store %arg13[%c56, %c0_168], %199 {strides = array<i32>} : memref<64x128xf32, #tpu.memory_space<vmem>>, vector<8x128xf32>,
    %c0_169 = arith.constant 0 : index
    %c0_170 = arith.constant 0 : index
    %201 = vector.load %arg13[%c0_169, %c0_170] : memref<64x128xf32, #tpu.memory_space<vmem>>, vector<64x128xf32>
    %c0_171 = arith.constant 0 : index
    %c0_172 = arith.constant 0 : index
    %202 = vector.load %arg10[%c0_171, %c0_172] : memref<128x128xf32, #tpu.memory_space<vmem>>, vector<128x128xf32>
    %cst_173 = arith.constant dense<0.000000e+00> : vector<64x128xf32>
    %203 = tpu.matmul %201, %202, %cst_173 {dimension_numbers = #tpu.dot_dimension_numbers<[1], [0], [0], [1], [0, 0, 1, 1], [], []>} : vector<64x128xf32>, vector<128x128xf32>, vector<64x128xf32> -> vector<64x128xf32>
    %c0_174 = arith.constant 0 : index
    %c0_175 = arith.constant 0 : index
    %204 = vector.load %arg11[%c0_174, %c0_175] : memref<1x128xf32, #tpu.memory_space<vmem>>, vector<1x128xf32>
    %205 = vector.broadcast %204 : vector<1x128xf32> to vector<64x128xf32>
    %206 = arith.addf %203, %205 : vector<64x128xf32>
    %c0_176 = arith.constant 0 : index
    %c0_177 = arith.constant 0 : index
    %207 = vector.load %arg12[%c0_176, %c0_177] : memref<64x128xf32, #tpu.memory_space<vmem>>, vector<64x128xf32>
    tpu.vector_store %arg12[%c0_176, %c0_177], %206 {strides = array<i32>} : memref<64x128xf32, #tpu.memory_space<vmem>>, vector<64x128xf32>,
    return
  }
}

</mosaic_0001>

<llo_original>
// kernel: tpu_custom_call.1
$region0: #{tpu_custom_call.1}
  #allocation0 [shape = 'u32[]', space=smem, size = 0x4, offset = 0x4, fixed_abs, tag = 'smem constant byte address 0x4 - core index']
  #allocation1 [shape = 'u32[144,128]{1,0:T(1,128)}', space=vmem, size = 0x12000, scoped, tag = 'internal scratch']
  #allocation2 [shape = 'f32[64,128]{1,0:T(8,128)}', space=vmem, size = 0x8000, scoped, tag = 'scratch operand']
  %s0 = inlined_call_operand.hbm [shape: f32[64,128], index: 0, kind: input, shape index: {}]
  %s1 = inlined_call_operand.hbm [shape: f32[128,128], index: 1, kind: input, shape index: {}]
  %s2 = inlined_call_operand.hbm [shape: f32[128,128], index: 2, kind: input, shape index: {}]
  %s3 = inlined_call_operand.vmem [shape: f32[1,128], index: 3, kind: input, shape index: {}]
  %s4 = inlined_call_operand.hbm [shape: f32[128,128], index: 4, kind: input, shape index: {}]
  %s5 = inlined_call_operand.hbm [shape: f32[128,128], index: 5, kind: input, shape index: {}]
  %s6 = inlined_call_operand.vmem [shape: f32[1,128], index: 6, kind: input, shape index: {}]
  %s7 = inlined_call_operand.hbm [shape: f32[128,128], index: 7, kind: input, shape index: {}]
  %s8 = inlined_call_operand.hbm [shape: f32[128,128], index: 8, kind: input, shape index: {}]
  %s9 = inlined_call_operand.vmem [shape: f32[1,128], index: 9, kind: input, shape index: {}]
  %s10 = inlined_call_operand.hbm [shape: f32[128,128], index: 10, kind: input, shape index: {}]
  %s11 = inlined_call_operand.vmem [shape: f32[1,128], index: 11, kind: input, shape index: {}]
  %s12 = inlined_call_operand.hbm [shape: f32[64,128], index: 12, kind: output, shape index: {}]
  %s13 = sld [smem:[#allocation0]]
  $region90: #{tpu_custom_call.1} parent=0
    _
  %s15 = ssub.s32 1, %s13
  %s16 = scalar_select 0, %s15, %s13
  $region1: #{tpu_custom_call.1} parent=0
    #allocation3 [shape = 'u8[32768]{0}', space=vmem, size = 0x8000, scoped, tag = 'input window, operand 0, single buffered']
    #allocation4 [shape = 's32[1]{0}', space=sflag, size = 0x4, scoped, tag = 'scoped memory for tpu_custom_call.1']
    #allocation5 [shape = 's32[1]{0}', space=sflag, size = 0x4, scoped, tag = 'scoped memory for tpu_custom_call.1']
    #allocation6 [shape = 'u8[65536]{0}', space=vmem, size = 0x10000, scoped, tag = 'input window, operand 1, single buffered']
    #allocation7 [shape = 's32[1]{0}', space=sflag, size = 0x4, scoped, tag = 'scoped memory for tpu_custom_call.1']
    #allocation8 [shape = 'u8[65536]{0}', space=vmem, size = 0x10000, scoped, tag = 'input window, operand 2, single buffered']
    #allocation9 [shape = 'u8[65536]{0}', space=vmem, size = 0x10000, scoped, tag = 'input window, operand 4, single buffered']
    #allocation10 [shape = 's32[1]{0}', space=sflag, size = 0x4, scoped, tag = 'scoped memory for tpu_custom_call.1']
    #allocation11 [shape = 'u8[65536]{0}', space=vmem, size = 0x10000, scoped, tag = 'input window, operand 5, single buffered']
    #allocation12 [shape = 'u8[65536]{0}', space=vmem, size = 0x10000, scoped, tag = 'input window, operand 7, single buffered']
    #allocation13 [shape = 's32[1]{0}', space=sflag, size = 0x4, scoped, tag = 'scoped memory for tpu_custom_call.1']
    #allocation14 [shape = 'u8[65536]{0}', space=vmem, size = 0x10000, scoped, tag = 'input window, operand 8, single buffered']
    #allocation15 [shape = 'u8[65536]{0}', space=vmem, size = 0x10000, scoped, tag = 'input window, operand 10, single buffered']
    #allocation16 [shape = 's32[1]{0}', space=sflag, size = 0x4, scoped, tag = 'scoped memory for tpu_custom_call.1']
    #allocation17 [shape = 'u8[32768]{0}', space=vmem, size = 0x8000, scoped, tag = 'output window, operand 0, single buffered']
    %17 = vsyncpa [#allocation4], 0
    %18 = vsyncpa [#allocation7], 0
    %19 = vsyncpa [#allocation10], 0
    %20 = vsyncpa [#allocation13], 0
    %21 = vsyncpa [#allocation16], 0
    %22 = vsyncpa [#allocation5], 0
    // Predicated region
    $region2: #{tpu_custom_call.1} parent=1 // pred_check
      _
    $region3: #{tpu_custom_call.1} parent=1 // pred_check_branch
      %24 = sbr.rel (0) target = $region5
    $region4: #{tpu_custom_call.1} parent=1 // pred_region
      %s26 = ssub.s32 1024, 1024
      %27 = vsyncadd [#allocation4], %s26
      %s28 = sshll.u32 [#allocation3], 4
      %s29 = int_to_ptr.vmem [resolvable:$true] %s28
      %34 = dma.hbm_to_vmem [thread:$0]  %s0, 1024, %s29, [#allocation4], 128, 128, 8
    $region5: #{tpu_custom_call.1} parent=1 // pred_fallthru
      _
    // Predicated region
    $region6: #{tpu_custom_call.1} parent=1 // pred_check
      _
    $region7: #{tpu_custom_call.1} parent=1 // pred_check_branch
      %36 = sbr.rel (0) target = $region9
    $region8: #{tpu_custom_call.1} parent=1 // pred_region
      %s38 = ssub.s32 2048, 2048
      %39 = vsyncadd [#allocation7], %s38
      %s40 = sshll.u32 [#allocation6], 4
      %s41 = int_to_ptr.vmem [resolvable:$true] %s40
      %46 = dma.hbm_to_vmem [thread:$0]  %s1, 2048, %s41, [#allocation7], 128, 128, 8
    $region9: #{tpu_custom_call.1} parent=1 // pred_fallthru
      _
    // Predicated region
    $region10: #{tpu_custom_call.1} parent=1 // pred_check
      _
    $region11: #{tpu_custom_call.1} parent=1 // pred_check_branch
      %48 = sbr.rel (0) target = $region13
    $region12: #{tpu_custom_call.1} parent=1 // pred_region
      %s50 = ssub.s32 2048, 2048
      %51 = vsyncadd [#allocation7], %s50
      %s52 = sshll.u32 [#allocation8], 4
      %s53 = int_to_ptr.vmem [resolvable:$true] %s52
      %58 = dma.hbm_to_vmem [thread:$0]  %s2, 2048, %s53, [#allocation7], 128, 128, 8
    $region13: #{tpu_custom_call.1} parent=1 // pred_fallthru
      _
    // Predicated region
    $region14: #{tpu_custom_call.1} parent=1 // pred_check
      _
    $region15: #{tpu_custom_call.1} parent=1 // pred_check_branch
      %60 = sbr.rel (0) target = $region17
    $region16: #{tpu_custom_call.1} parent=1 // pred_region
      _
    $region17: #{tpu_custom_call.1} parent=1 // pred_fallthru
      _
    // Predicated region
    $region18: #{tpu_custom_call.1} parent=1 // pred_check
      _
    $region19: #{tpu_custom_call.1} parent=1 // pred_check_branch
      %62 = sbr.rel (0) target = $region21
    $region20: #{tpu_custom_call.1} parent=1 // pred_region
      %s64 = ssub.s32 2048, 2048
      %65 = vsyncadd [#allocation10], %s64
      %s66 = sshll.u32 [#allocation9], 4
      %s67 = int_to_ptr.vmem [resolvable:$true] %s66
      %72 = dma.hbm_to_vmem [thread:$0]  %s4, 2048, %s67, [#allocation10], 128, 128, 8
    $region21: #{tpu_custom_call.1} parent=1 // pred_fallthru
      _
    // Predicated region
    $region22: #{tpu_custom_call.1} parent=1 // pred_check
      _
    $region23: #{tpu_custom_call.1} parent=1 // pred_check_branch
      %74 = sbr.rel (0) target = $region25
    $region24: #{tpu_custom_call.1} parent=1 // pred_region
      %s76 = ssub.s32 2048, 2048
      %77 = vsyncadd [#allocation10], %s76
      %s78 = sshll.u32 [#allocation11], 4
      %s79 = int_to_ptr.vmem [resolvable:$true] %s78
      %84 = dma.hbm_to_vmem [thread:$0]  %s5, 2048, %s79, [#allocation10], 128, 128, 8
    $region25: #{tpu_custom_call.1} parent=1 // pred_fallthru
      _
    // Predicated region
    $region26: #{tpu_custom_call.1} parent=1 // pred_check
      _
    $region27: #{tpu_custom_call.1} parent=1 // pred_check_branch
      %86 = sbr.rel (0) target = $region29
    $region28: #{tpu_custom_call.1} parent=1 // pred_region
      _
    $region29: #{tpu_custom_call.1} parent=1 // pred_fallthru
      _
    // Predicated region
    $region30: #{tpu_custom_call.1} parent=1 // pred_check
      _
    $region31: #{tpu_custom_call.1} parent=1 // pred_check_branch
      %88 = sbr.rel (0) target = $region33
    $region32: #{tpu_custom_call.1} parent=1 // pred_region
      %s90 = ssub.s32 2048, 2048
      %91 = vsyncadd [#allocation13], %s90
      %s92 = sshll.u32 [#allocation12], 4
      %s93 = int_to_ptr.vmem [resolvable:$true] %s92
      %98 = dma.hbm_to_vmem [thread:$0]  %s7, 2048, %s93, [#allocation13], 128, 128, 8
    $region33: #{tpu_custom_call.1} parent=1 // pred_fallthru
      _
    // Predicated region
    $region34: #{tpu_custom_call.1} parent=1 // pred_check
      _
    $region35: #{tpu_custom_call.1} parent=1 // pred_check_branch
      %100 = sbr.rel (0) target = $region37
    $region36: #{tpu_custom_call.1} parent=1 // pred_region
      %s102 = ssub.s32 2048, 2048
      %103 = vsyncadd [#allocation13], %s102
      %s104 = sshll.u32 [#allocation14], 4
      %s105 = int_to_ptr.vmem [resolvable:$true] %s104
      %110 = dma.hbm_to_vmem [thread:$0]  %s8, 2048, %s105, [#allocation13], 128, 128, 8
    $region37: #{tpu_custom_call.1} parent=1 // pred_fallthru
      _
    // Predicated region
    $region38: #{tpu_custom_call.1} parent=1 // pred_check
      _
    $region39: #{tpu_custom_call.1} parent=1 // pred_check_branch
      %112 = sbr.rel (0) target = $region41
    $region40: #{tpu_custom_call.1} parent=1 // pred_region
      _
    $region41: #{tpu_custom_call.1} parent=1 // pred_fallthru
      _
    // Predicated region
    $region42: #{tpu_custom_call.1} parent=1 // pred_check
      _
    $region43: #{tpu_custom_call.1} parent=1 // pred_check_branch
      %114 = sbr.rel (0) target = $region45
    $region44: #{tpu_custom_call.1} parent=1 // pred_region
      %s116 = ssub.s32 2048, 2048
      %117 = vsyncadd [#allocation16], %s116
      %s118 = sshll.u32 [#allocation15], 4
      %s119 = int_to_ptr.vmem [resolvable:$true] %s118
      %124 = dma.hbm_to_vmem [thread:$0]  %s10, 2048, %s119, [#allocation16], 128, 128, 8
    $region45: #{tpu_custom_call.1} parent=1 // pred_fallthru
      _
    // Predicated region
    $region46: #{tpu_custom_call.1} parent=1 // pred_check
      _
    $region47: #{tpu_custom_call.1} parent=1 // pred_check_branch
      %126 = sbr.rel (0) target = $region49
    $region48: #{tpu_custom_call.1} parent=1 // pred_region
      _
    $region49: #{tpu_custom_call.1} parent=1 // pred_fallthru
      _
    // Predicated region
    $region50: #{tpu_custom_call.1} parent=1 // pred_check
      _
    $region51: #{tpu_custom_call.1} parent=1 // pred_check_branch
      %128 = sbr.rel (0) target = $region53
    $region52: #{tpu_custom_call.1} parent=1 // pred_region
      %129 = dma.done [#allocation4], 1024
    $region53: #{tpu_custom_call.1} parent=1 // pred_fallthru
      _
    // Predicated region
    $region54: #{tpu_custom_call.1} parent=1 // pred_check
      _
    $region55: #{tpu_custom_call.1} parent=1 // pred_check_branch
      %131 = sbr.rel (0) target = $region57
    $region56: #{tpu_custom_call.1} parent=1 // pred_region
      %132 = dma.done [#allocation7], 2048
    $region57: #{tpu_custom_call.1} parent=1 // pred_fallthru
      _
    // Predicated region
    $region58: #{tpu_custom_call.1} parent=1 // pred_check
      _
    $region59: #{tpu_custom_call.1} parent=1 // pred_check_branch
      %134 = sbr.rel (0) target = $region61
    $region60: #{tpu_custom_call.1} parent=1 // pred_region
      %135 = dma.done [#allocation7], 2048
    $region61: #{tpu_custom_call.1} parent=1 // pred_fallthru
      _
    // Predicated region
    $region62: #{tpu_custom_call.1} parent=1 // pred_check
      _
    $region63: #{tpu_custom_call.1} parent=1 // pred_check_branch
      %137 = sbr.rel (0) target = $region65
    $region64: #{tpu_custom_call.1} parent=1 // pred_region
      %138 = dma.done [#allocation10], 2048
    $region65: #{tpu_custom_call.1} parent=1 // pred_fallthru
      _
    // Predicated region
    $region66: #{tpu_custom_call.1} parent=1 // pred_check
      _
    $region67: #{tpu_custom_call.1} parent=1 // pred_check_branch
      %140 = sbr.rel (0) target = $region69
    $region68: #{tpu_custom_call.1} parent=1 // pred_region
      %141 = dma.done [#allocation10], 2048
    $region69: #{tpu_custom_call.1} parent=1 // pred_fallthru
      _
    // Predicated region
    $region70: #{tpu_custom_call.1} parent=1 // pred_check
      _
    $region71: #{tpu_custom_call.1} parent=1 // pred_check_branch
      %143 = sbr.rel (0) target = $region73
    $region72: #{tpu_custom_call.1} parent=1 // pred_region
      %144 = dma.done [#allocation13], 2048
    $region73: #{tpu_custom_call.1} parent=1 // pred_fallthru
      _
    // Predicated region
    $region74: #{tpu_custom_call.1} parent=1 // pred_check
      _
    $region75: #{tpu_custom_call.1} parent=1 // pred_check_branch
      %146 = sbr.rel (0) target = $region77
    $region76: #{tpu_custom_call.1} parent=1 // pred_region
      %147 = dma.done [#allocation13], 2048
    $region77: #{tpu_custom_call.1} parent=1 // pred_fallthru
      _
    // Predicated region
    $region78: #{tpu_custom_call.1} parent=1 // pred_check
      _
    $region79: #{tpu_custom_call.1} parent=1 // pred_check_branch
      %149 = sbr.rel (0) target = $region81
    $region80: #{tpu_custom_call.1} parent=1 // pred_region
      %150 = dma.done [#allocation16], 2048
    $region81: #{tpu_custom_call.1} parent=1 // pred_fallthru
      _
    %v151 = vld [vmem:[#allocation3] sm:$0xff]
    %v152 = vld [vmem:[#allocation3 + $0x8] sm:$0xff]
    %v153 = vld [vmem:[#allocation3 + $0x10] sm:$0xff]
    %v154 = vld [vmem:[#allocation3 + $0x18] sm:$0xff]
    %v155 = vld [vmem:[#allocation3 + $0x20] sm:$0xff]
    %v156 = vld [vmem:[#allocation3 + $0x28] sm:$0xff]
    %v157 = vld [vmem:[#allocation3 + $0x30] sm:$0xff]
    %v158 = vld [vmem:[#allocation3 + $0x38] sm:$0xff]
    %v159 = vld [vmem:[#allocation6] sm:$0xff]
    %v160 = vld [vmem:[#allocation6 + $0x8] sm:$0xff]
    %v161 = vld [vmem:[#allocation6 + $0x10] sm:$0xff]
    %v162 = vld [vmem:[#allocation6 + $0x18] sm:$0xff]
    %v163 = vld [vmem:[#allocation6 + $0x20] sm:$0xff]
    %v164 = vld [vmem:[#allocation6 + $0x28] sm:$0xff]
    %v165 = vld [vmem:[#allocation6 + $0x30] sm:$0xff]
    %v166 = vld [vmem:[#allocation6 + $0x38] sm:$0xff]
    %v167 = vld [vmem:[#allocation6 + $0x40] sm:$0xff]
    %v168 = vld [vmem:[#allocation6 + $0x48] sm:$0xff]
    %v169 = vld [vmem:[#allocation6 + $0x50] sm:$0xff]
    %v170 = vld [vmem:[#allocation6 + $0x58] sm:$0xff]
    %v171 = vld [vmem:[#allocation6 + $0x60] sm:$0xff]
    %v172 = vld [vmem:[#allocation6 + $0x68] sm:$0xff]
    %v173 = vld [vmem:[#allocation6 + $0x70] sm:$0xff]
    %v174 = vld [vmem:[#allocation6 + $0x78] sm:$0xff]
    %v175 = vld [vmem:[%s3] sm:$0x1]
    %v177 = vlaneseq
    %v178 = vshrl.u32 %v177, 7
    %v179 = vsub.s32 0, %v178
    %v180 = vrot.slane %v175, %v179
    %182 = vmatprep.subr.mxu0 0.0
    %183 = vmatpush1.msra.mxu0 %v174
    %184 = vmatprep.subr.mxu0 0.0
    %185 = vmatpush1.msra.mxu0 %v173
    %186 = vmatprep.subr.mxu0 0.0
    %187 = vmatpush1.msra.mxu0 %v172
    %188 = vmatprep.subr.mxu0 0.0
    %189 = vmatpush1.msra.mxu0 %v171
    %190 = vmatprep.subr.mxu0 0.0
    %191 = vmatpush1.msra.mxu0 %v170
    %192 = vmatprep.subr.mxu0 0.0
    %193 = vmatpush1.msra.mxu0 %v169
    %194 = vmatprep.subr.mxu0 0.0
    %195 = vmatpush1.msra.mxu0 %v168
    %196 = vmatprep.subr.mxu0 0.0
    %197 = vmatpush1.msra.mxu0 %v167
    %198 = vmatprep.subr.mxu0 0.0
    %199 = vmatpush1.msra.mxu0 %v166
    %200 = vmatprep.subr.mxu0 0.0
    %201 = vmatpush1.msra.mxu0 %v165
    %202 = vmatprep.subr.mxu0 0.0
    %203 = vmatpush1.msra.mxu0 %v164
    %204 = vmatprep.subr.mxu0 0.0
    %205 = vmatpush1.msra.mxu0 %v163
    %206 = vmatprep.subr.mxu0 0.0
    %207 = vmatpush1.msra.mxu0 %v162
    %208 = vmatprep.subr.mxu0 0.0
    %209 = vmatpush1.msra.mxu0 %v161
    %210 = vmatprep.subr.mxu0 0.0
    %211 = vmatpush1.msra.mxu0 %v160
    %212 = vmatprep.subr.mxu0 0.0
    %213 = vmatpush1.msra.mxu0 %v159
    %214 = vmatprep.subr.mxu0 0.0
    %215 = vmatpush2.msra.mxu0 0.0
    %216 = vmatprep.subr.mxu0 0.0
    %217 = vmatpush2.msra.mxu0 0.0
    %218 = vmatprep.subr.mxu0 0.0
    %219 = vmatpush2.msra.mxu0 0.0
    %220 = vmatprep.subr.mxu0 0.0
    %221 = vmatpush2.msra.mxu0 0.0
    %222 = vmatprep.subr.mxu0 0.0
    %223 = vmatpush2.msra.mxu0 0.0
    %224 = vmatprep.subr.mxu0 0.0
    %225 = vmatpush2.msra.mxu0 0.0
    %226 = vmatprep.subr.mxu0 0.0
    %227 = vmatpush2.msra.mxu0 0.0
    %228 = vmatprep.subr.mxu0 0.0
    %229 = vmatpush2.msra.mxu0 0.0
    %230 = vmatprep.subr.mxu0 0.0
    %231 = vmatpush2.msra.mxu0 0.0
    %232 = vmatprep.subr.mxu0 0.0
    %233 = vmatpush2.msra.mxu0 0.0
    %234 = vmatprep.subr.mxu0 0.0
    %235 = vmatpush2.msra.mxu0 0.0
    %236 = vmatprep.subr.mxu0 0.0
    %237 = vmatpush2.msra.mxu0 0.0
    %238 = vmatprep.subr.mxu0 0.0
    %239 = vmatpush2.msra.mxu0 0.0
    %240 = vmatprep.subr.mxu0 0.0
    %241 = vmatpush2.msra.mxu0 0.0
    %242 = vmatprep.subr.mxu0 0.0
    %243 = vmatpush2.msra.mxu0 0.0
    %244 = vmatprep.subr.mxu0 0.0
    %245 = vmatpush2.msra.mxu0 0.0
    %246 = vmatprep.mubr.f32.mxu0 0.0
    %247 = vmatmul.mubr.f32.gmra.mxu0 %v151
    %v248 = vpop.f32.mrf.mxu0
    %v249 = vadd.f32 %v180, %v248
    %v250 = vpop.f32.mrf.mxu0
    %251 = vmatprep.mubr.f32.mxu0 0.0
    %252 = vmatmul.mubr.f32.gmra.mxu0 %v152
    %v253 = vpop.f32.mrf.mxu0
    %v254 = vadd.f32 %v180, %v253
    %v255 = vpop.f32.mrf.mxu0
    %256 = vmatprep.mubr.f32.mxu0 0.0
    %257 = vmatmul.mubr.f32.gmra.mxu0 %v153
    %v258 = vpop.f32.mrf.mxu0
    %v259 = vadd.f32 %v180, %v258
    %v260 = vpop.f32.mrf.mxu0
    %261 = vmatprep.mubr.f32.mxu0 0.0
    %262 = vmatmul.mubr.f32.gmra.mxu0 %v154
    %v263 = vpop.f32.mrf.mxu0
    %v264 = vadd.f32 %v180, %v263
    %v265 = vpop.f32.mrf.mxu0
    %266 = vmatprep.mubr.f32.mxu0 0.0
    %267 = vmatmul.mubr.f32.gmra.mxu0 %v155
    %v268 = vpop.f32.mrf.mxu0
    %v269 = vadd.f32 %v180, %v268
    %v270 = vpop.f32.mrf.mxu0
    %271 = vmatprep.mubr.f32.mxu0 0.0
    %272 = vmatmul.mubr.f32.gmra.mxu0 %v156
    %v273 = vpop.f32.mrf.mxu0
    %v274 = vadd.f32 %v180, %v273
    %v275 = vpop.f32.mrf.mxu0
    %276 = vmatprep.mubr.f32.mxu0 0.0
    %277 = vmatmul.mubr.f32.gmra.mxu0 %v157
    %v278 = vpop.f32.mrf.mxu0
    %v279 = vadd.f32 %v180, %v278
    %v280 = vpop.f32.mrf.mxu0
    %281 = vmatprep.mubr.f32.mxu0 0.0
    %282 = vmatmul.mubr.f32.gmra.mxu0 %v158
    %v283 = vpop.f32.mrf.mxu0
    %v284 = vadd.f32 %v180, %v283
    %v285 = vpop.f32.mrf.mxu0
    %286 = vdwg.mxu0
    %v287 = vld [vmem:[#allocation8] sm:$0xff]
    %v288 = vld [vmem:[#allocation8 + $0x8] sm:$0xff]
    %v289 = vld [vmem:[#allocation8 + $0x10] sm:$0xff]
    %v290 = vld [vmem:[#allocation8 + $0x18] sm:$0xff]
    %v291 = vld [vmem:[#allocation8 + $0x20] sm:$0xff]
    %v292 = vld [vmem:[#allocation8 + $0x28] sm:$0xff]
    %v293 = vld [vmem:[#allocation8 + $0x30] sm:$0xff]
    %v294 = vld [vmem:[#allocation8 + $0x38] sm:$0xff]
    %v295 = vld [vmem:[#allocation8 + $0x40] sm:$0xff]
    %v296 = vld [vmem:[#allocation8 + $0x48] sm:$0xff]
    %v297 = vld [vmem:[#allocation8 + $0x50] sm:$0xff]
    %v298 = vld [vmem:[#allocation8 + $0x58] sm:$0xff]
    %v299 = vld [vmem:[#allocation8 + $0x60] sm:$0xff]
    %v300 = vld [vmem:[#allocation8 + $0x68] sm:$0xff]
    %v301 = vld [vmem:[#allocation8 + $0x70] sm:$0xff]
    %v302 = vld [vmem:[#allocation8 + $0x78] sm:$0xff]
    %303 = vmatprep.subr.mxu0 0.0
    %304 = vmatpush1.msra.mxu0 %v302
    %305 = vmatprep.subr.mxu0 0.0
    %306 = vmatpush1.msra.mxu0 %v301
    %307 = vmatprep.subr.mxu0 0.0
    %308 = vmatpush1.msra.mxu0 %v300
    %309 = vmatprep.subr.mxu0 0.0
    %310 = vmatpush1.msra.mxu0 %v299
    %311 = vmatprep.subr.mxu0 0.0
    %312 = vmatpush1.msra.mxu0 %v298
    %313 = vmatprep.subr.mxu0 0.0
    %314 = vmatpush1.msra.mxu0 %v297
    %315 = vmatprep.subr.mxu0 0.0
    %316 = vmatpush1.msra.mxu0 %v296
    %317 = vmatprep.subr.mxu0 0.0
    %318 = vmatpush1.msra.mxu0 %v295
    %319 = vmatprep.subr.mxu0 0.0
    %320 = vmatpush1.msra.mxu0 %v294
    %321 = vmatprep.subr.mxu0 0.0
    %322 = vmatpush1.msra.mxu0 %v293
    %323 = vmatprep.subr.mxu0 0.0
    %324 = vmatpush1.msra.mxu0 %v292
    %325 = vmatprep.subr.mxu0 0.0
    %326 = vmatpush1.msra.mxu0 %v291
    %327 = vmatprep.subr.mxu0 0.0
    %328 = vmatpush1.msra.mxu0 %v290
    %329 = vmatprep.subr.mxu0 0.0
    %330 = vmatpush1.msra.mxu0 %v289
    %331 = vmatprep.subr.mxu0 0.0
    %332 = vmatpush1.msra.mxu0 %v288
    %333 = vmatprep.subr.mxu0 0.0
    %334 = vmatpush1.msra.mxu0 %v287
    %335 = vmatprep.subr.mxu0 0.0
    %336 = vmatpush2.msra.mxu0 0.0
    %337 = vmatprep.subr.mxu0 0.0
    %338 = vmatpush2.msra.mxu0 0.0
    %339 = vmatprep.subr.mxu0 0.0
    %340 = vmatpush2.msra.mxu0 0.0
    %341 = vmatprep.subr.mxu0 0.0
    %342 = vmatpush2.msra.mxu0 0.0
    %343 = vmatprep.subr.mxu0 0.0
    %344 = vmatpush2.msra.mxu0 0.0
    %345 = vmatprep.subr.mxu0 0.0
    %346 = vmatpush2.msra.mxu0 0.0
    %347 = vmatprep.subr.mxu0 0.0
    %348 = vmatpush2.msra.mxu0 0.0
    %349 = vmatprep.subr.mxu0 0.0
    %350 = vmatpush2.msra.mxu0 0.0
    %351 = vmatprep.subr.mxu0 0.0
    %352 = vmatpush2.msra.mxu0 0.0
    %353 = vmatprep.subr.mxu0 0.0
    %354 = vmatpush2.msra.mxu0 0.0
    %355 = vmatprep.subr.mxu0 0.0
    %356 = vmatpush2.msra.mxu0 0.0
    %357 = vmatprep.subr.mxu0 0.0
    %358 = vmatpush2.msra.mxu0 0.0
    %359 = vmatprep.subr.mxu0 0.0
    %360 = vmatpush2.msra.mxu0 0.0
    %361 = vmatprep.subr.mxu0 0.0
    %362 = vmatpush2.msra.mxu0 0.0
    %363 = vmatprep.subr.mxu0 0.0
    %364 = vmatpush2.msra.mxu0 0.0
    %365 = vmatprep.subr.mxu0 0.0
    %366 = vmatpush2.msra.mxu0 0.0
    %367 = vmatprep.mubr.f32.mxu0 0.0
    %368 = vmatmul.mubr.f32.gmra.mxu0 0.0
    %v369 = vpop.f32.mrf.mxu0
    %v370 = vadd.f32 0.0, %v369
    %v371 = vpop.f32.mrf.mxu0
    %372 = vdwg.mxu0
    %v373 = vadd.f32 %v249, %v370
    %v374 = vtanh.pop %v373
    %375 = vmatprep.subr.mxu0 0.0
    %376 = vmatpush1.msra.mxu0 %v302
    %377 = vmatprep.subr.mxu0 0.0
    %378 = vmatpush1.msra.mxu0 %v301
    %379 = vmatprep.subr.mxu0 0.0
    %380 = vmatpush1.msra.mxu0 %v300
    %381 = vmatprep.subr.mxu0 0.0
    %382 = vmatpush1.msra.mxu0 %v299
    %383 = vmatprep.subr.mxu0 0.0
    %384 = vmatpush1.msra.mxu0 %v298
    %385 = vmatprep.subr.mxu0 0.0
    %386 = vmatpush1.msra.mxu0 %v297
    %387 = vmatprep.subr.mxu0 0.0
    %388 = vmatpush1.msra.mxu0 %v296
    %389 = vmatprep.subr.mxu0 0.0
    %390 = vmatpush1.msra.mxu0 %v295
    %391 = vmatprep.subr.mxu0 0.0
    %392 = vmatpush1.msra.mxu0 %v294
    %393 = vmatprep.subr.mxu0 0.0
    %394 = vmatpush1.msra.mxu0 %v293
    %395 = vmatprep.subr.mxu0 0.0
    %396 = vmatpush1.msra.mxu0 %v292
    %397 = vmatprep.subr.mxu0 0.0
    %398 = vmatpush1.msra.mxu0 %v291
    %399 = vmatprep.subr.mxu0 0.0
    %400 = vmatpush1.msra.mxu0 %v290
    %401 = vmatprep.subr.mxu0 0.0
    %402 = vmatpush1.msra.mxu0 %v289
    %403 = vmatprep.subr.mxu0 0.0
    %404 = vmatpush1.msra.mxu0 %v288
    %405 = vmatprep.subr.mxu0 0.0
    %406 = vmatpush1.msra.mxu0 %v287
    %407 = vmatprep.subr.mxu0 0.0
    %408 = vmatpush2.msra.mxu0 0.0
    %409 = vmatprep.subr.mxu0 0.0
    %410 = vmatpush2.msra.mxu0 0.0
    %411 = vmatprep.subr.mxu0 0.0
    %412 = vmatpush2.msra.mxu0 0.0
    %413 = vmatprep.subr.mxu0 0.0
    %414 = vmatpush2.msra.mxu0 0.0
    %415 = vmatprep.subr.mxu0 0.0
    %416 = vmatpush2.msra.mxu0 0.0
    %417 = vmatprep.subr.mxu0 0.0
    %418 = vmatpush2.msra.mxu0 0.0
    %419 = vmatprep.subr.mxu0 0.0
    %420 = vmatpush2.msra.mxu0 0.0
    %421 = vmatprep.subr.mxu0 0.0
    %422 = vmatpush2.msra.mxu0 0.0
    %423 = vmatprep.subr.mxu0 0.0
    %424 = vmatpush2.msra.mxu0 0.0
    %425 = vmatprep.subr.mxu0 0.0
    %426 = vmatpush2.msra.mxu0 0.0
    %427 = vmatprep.subr.mxu0 0.0
    %428 = vmatpush2.msra.mxu0 0.0
    %429 = vmatprep.subr.mxu0 0.0
    %430 = vmatpush2.msra.mxu0 0.0
    %431 = vmatprep.subr.mxu0 0.0
    %432 = vmatpush2.msra.mxu0 0.0
    %433 = vmatprep.subr.mxu0 0.0
    %434 = vmatpush2.msra.mxu0 0.0
    %435 = vmatprep.subr.mxu0 0.0
    %436 = vmatpush2.msra.mxu0 0.0
    %437 = vmatprep.subr.mxu0 0.0
    %438 = vmatpush2.msra.mxu0 0.0
    %439 = vmatprep.mubr.f32.mxu0 0.0
    %440 = vmatmul.mubr.f32.gmra.mxu0 %v374
    %v441 = vpop.f32.mrf.mxu0
    %v442 = vadd.f32 0.0, %v441
    %v443 = vpop.f32.mrf.mxu0
    %444 = vdwg.mxu0
    %v445 = vadd.f32 %v254, %v442
    %v446 = vtanh.pop %v445
    %v447 = vld [vmem:[#allocation9] sm:$0xff]
    %v448 = vld [vmem:[#allocation9 + $0x8] sm:$0xff]
    %v449 = vld [vmem:[#allocation9 + $0x10] sm:$0xff]
    %v450 = vld [vmem:[#allocation9 + $0x18] sm:$0xff]
    %v451 = vld [vmem:[#allocation9 + $0x20] sm:$0xff]
    %v452 = vld [vmem:[#allocation9 + $0x28] sm:$0xff]
    %v453 = vld [vmem:[#allocation9 + $0x30] sm:$0xff]
    %v454 = vld [vmem:[#allocation9 + $0x38] sm:$0xff]
    %v455 = vld [vmem:[#allocation9 + $0x40] sm:$0xff]
    %v456 = vld [vmem:[#allocation9 + $0x48] sm:$0xff]
    %v457 = vld [vmem:[#allocation9 + $0x50] sm:$0xff]
    %v458 = vld [vmem:[#allocation9 + $0x58] sm:$0xff]
    %v459 = vld [vmem:[#allocation9 + $0x60] sm:$0xff]
    %v460 = vld [vmem:[#allocation9 + $0x68] sm:$0xff]
    %v461 = vld [vmem:[#allocation9 + $0x70] sm:$0xff]
    %v462 = vld [vmem:[#allocation9 + $0x78] sm:$0xff]
    %v463 = vld [vmem:[%s6] sm:$0x1]
    %v465 = vlaneseq
    %v466 = vshrl.u32 %v465, 7
    %v467 = vsub.s32 0, %v466
    %v468 = vrot.slane %v463, %v467
    %470 = vmatprep.subr.mxu0 0.0
    %471 = vmatpush1.msra.mxu0 %v462
    %472 = vmatprep.subr.mxu0 0.0
    %473 = vmatpush1.msra.mxu0 %v461
    %474 = vmatprep.subr.mxu0 0.0
    %475 = vmatpush1.msra.mxu0 %v460
    %476 = vmatprep.subr.mxu0 0.0
    %477 = vmatpush1.msra.mxu0 %v459
    %478 = vmatprep.subr.mxu0 0.0
    %479 = vmatpush1.msra.mxu0 %v458
    %480 = vmatprep.subr.mxu0 0.0
    %481 = vmatpush1.msra.mxu0 %v457
    %482 = vmatprep.subr.mxu0 0.0
    %483 = vmatpush1.msra.mxu0 %v456
    %484 = vmatprep.subr.mxu0 0.0
    %485 = vmatpush1.msra.mxu0 %v455
    %486 = vmatprep.subr.mxu0 0.0
    %487 = vmatpush1.msra.mxu0 %v454
    %488 = vmatprep.subr.mxu0 0.0
    %489 = vmatpush1.msra.mxu0 %v453
    %490 = vmatprep.subr.mxu0 0.0
    %491 = vmatpush1.msra.mxu0 %v452
    %492 = vmatprep.subr.mxu0 0.0
    %493 = vmatpush1.msra.mxu0 %v451
    %494 = vmatprep.subr.mxu0 0.0
    %495 = vmatpush1.msra.mxu0 %v450
    %496 = vmatprep.subr.mxu0 0.0
    %497 = vmatpush1.msra.mxu0 %v449
    %498 = vmatprep.subr.mxu0 0.0
    %499 = vmatpush1.msra.mxu0 %v448
    %500 = vmatprep.subr.mxu0 0.0
    %501 = vmatpush1.msra.mxu0 %v447
    %502 = vmatprep.subr.mxu0 0.0
    %503 = vmatpush2.msra.mxu0 0.0
    %504 = vmatprep.subr.mxu0 0.0
    %505 = vmatpush2.msra.mxu0 0.0
    %506 = vmatprep.subr.mxu0 0.0
    %507 = vmatpush2.msra.mxu0 0.0
    %508 = vmatprep.subr.mxu0 0.0
    %509 = vmatpush2.msra.mxu0 0.0
    %510 = vmatprep.subr.mxu0 0.0
    %511 = vmatpush2.msra.mxu0 0.0
    %512 = vmatprep.subr.mxu0 0.0
    %513 = vmatpush2.msra.mxu0 0.0
    %514 = vmatprep.subr.mxu0 0.0
    %515 = vmatpush2.msra.mxu0 0.0
    %516 = vmatprep.subr.mxu0 0.0
    %517 = vmatpush2.msra.mxu0 0.0
    %518 = vmatprep.subr.mxu0 0.0
    %519 = vmatpush2.msra.mxu0 0.0
    %520 = vmatprep.subr.mxu0 0.0
    %521 = vmatpush2.msra.mxu0 0.0
    %522 = vmatprep.subr.mxu0 0.0
    %523 = vmatpush2.msra.mxu0 0.0
    %524 = vmatprep.subr.mxu0 0.0
    %525 = vmatpush2.msra.mxu0 0.0
    %526 = vmatprep.subr.mxu0 0.0
    %527 = vmatpush2.msra.mxu0 0.0
    %528 = vmatprep.subr.mxu0 0.0
    %529 = vmatpush2.msra.mxu0 0.0
    %530 = vmatprep.subr.mxu0 0.0
    %531 = vmatpush2.msra.mxu0 0.0
    %532 = vmatprep.subr.mxu0 0.0
    %533 = vmatpush2.msra.mxu0 0.0
    %534 = vmatprep.mubr.f32.mxu0 0.0
    %535 = vmatmul.mubr.f32.gmra.mxu0 %v374
    %v536 = vpop.f32.mrf.mxu0
    %v537 = vadd.f32 %v468, %v536
    %v538 = vpop.f32.mrf.mxu0
    %539 = vdwg.mxu0
    %v540 = vld [vmem:[#allocation11] sm:$0xff]
    %v541 = vld [vmem:[#allocation11 + $0x8] sm:$0xff]
    %v542 = vld [vmem:[#allocation11 + $0x10] sm:$0xff]
    %v543 = vld [vmem:[#allocation11 + $0x18] sm:$0xff]
    %v544 = vld [vmem:[#allocation11 + $0x20] sm:$0xff]
    %v545 = vld [vmem:[#allocation11 + $0x28] sm:$0xff]
    %v546 = vld [vmem:[#allocation11 + $0x30] sm:$0xff]
    %v547 = vld [vmem:[#allocation11 + $0x38] sm:$0xff]
    %v548 = vld [vmem:[#allocation11 + $0x40] sm:$0xff]
    %v549 = vld [vmem:[#allocation11 + $0x48] sm:$0xff]
    %v550 = vld [vmem:[#allocation11 + $0x50] sm:$0xff]
    %v551 = vld [vmem:[#allocation11 + $0x58] sm:$0xff]
    %v552 = vld [vmem:[#allocation11 + $0x60] sm:$0xff]
    %v553 = vld [vmem:[#allocation11 + $0x68] sm:$0xff]
    %v554 = vld [vmem:[#allocation11 + $0x70] sm:$0xff]
    %v555 = vld [vmem:[#allocation11 + $0x78] sm:$0xff]
    %556 = vmatprep.subr.mxu0 0.0
    %557 = vmatpush1.msra.mxu0 %v555
    %558 = vmatprep.subr.mxu0 0.0
    %559 = vmatpush1.msra.mxu0 %v554
    %560 = vmatprep.subr.mxu0 0.0
    %561 = vmatpush1.msra.mxu0 %v553
    %562 = vmatprep.subr.mxu0 0.0
    %563 = vmatpush1.msra.mxu0 %v552
    %564 = vmatprep.subr.mxu0 0.0
    %565 = vmatpush1.msra.mxu0 %v551
    %566 = vmatprep.subr.mxu0 0.0
    %567 = vmatpush1.msra.mxu0 %v550
    %568 = vmatprep.subr.mxu0 0.0
    %569 = vmatpush1.msra.mxu0 %v549
    %570 = vmatprep.subr.mxu0 0.0
    %571 = vmatpush1.msra.mxu0 %v548
    %572 = vmatprep.subr.mxu0 0.0
    %573 = vmatpush1.msra.mxu0 %v547
    %574 = vmatprep.subr.mxu0 0.0
    %575 = vmatpush1.msra.mxu0 %v546
    %576 = vmatprep.subr.mxu0 0.0
    %577 = vmatpush1.msra.mxu0 %v545
    %578 = vmatprep.subr.mxu0 0.0
    %579 = vmatpush1.msra.mxu0 %v544
    %580 = vmatprep.subr.mxu0 0.0
    %581 = vmatpush1.msra.mxu0 %v543
    %582 = vmatprep.subr.mxu0 0.0
    %583 = vmatpush1.msra.mxu0 %v542
    %584 = vmatprep.subr.mxu0 0.0
    %585 = vmatpush1.msra.mxu0 %v541
    %586 = vmatprep.subr.mxu0 0.0
    %587 = vmatpush1.msra.mxu0 %v540
    %588 = vmatprep.subr.mxu0 0.0
    %589 = vmatpush2.msra.mxu0 0.0
    %590 = vmatprep.subr.mxu0 0.0
    %591 = vmatpush2.msra.mxu0 0.0
    %592 = vmatprep.subr.mxu0 0.0
    %593 = vmatpush2.msra.mxu0 0.0
    %594 = vmatprep.subr.mxu0 0.0
    %595 = vmatpush2.msra.mxu0 0.0
    %596 = vmatprep.subr.mxu0 0.0
    %597 = vmatpush2.msra.mxu0 0.0
    %598 = vmatprep.subr.mxu0 0.0
    %599 = vmatpush2.msra.mxu0 0.0
    %600 = vmatprep.subr.mxu0 0.0
    %601 = vmatpush2.msra.mxu0 0.0
    %602 = vmatprep.subr.mxu0 0.0
    %603 = vmatpush2.msra.mxu0 0.0
    %604 = vmatprep.subr.mxu0 0.0
    %605 = vmatpush2.msra.mxu0 0.0
    %606 = vmatprep.subr.mxu0 0.0
    %607 = vmatpush2.msra.mxu0 0.0
    %608 = vmatprep.subr.mxu0 0.0
    %609 = vmatpush2.msra.mxu0 0.0
    %610 = vmatprep.subr.mxu0 0.0
    %611 = vmatpush2.msra.mxu0 0.0
    %612 = vmatprep.subr.mxu0 0.0
    %613 = vmatpush2.msra.mxu0 0.0
    %614 = vmatprep.subr.mxu0 0.0
    %615 = vmatpush2.msra.mxu0 0.0
    %616 = vmatprep.subr.mxu0 0.0
    %617 = vmatpush2.msra.mxu0 0.0
    %618 = vmatprep.subr.mxu0 0.0
    %619 = vmatpush2.msra.mxu0 0.0
    %620 = vmatprep.mubr.f32.mxu0 0.0
    %621 = vmatmul.mubr.f32.gmra.mxu0 0.0
    %v622 = vpop.f32.mrf.mxu0
    %v623 = vadd.f32 0.0, %v622
    %v624 = vpop.f32.mrf.mxu0
    %625 = vdwg.mxu0
    %v626 = vadd.f32 %v537, %v623
    %v627 = vtanh.pop %v626
    %628 = vmatprep.subr.mxu0 0.0
    %629 = vmatpush1.msra.mxu0 %v302
    %630 = vmatprep.subr.mxu0 0.0
    %631 = vmatpush1.msra.mxu0 %v301
    %632 = vmatprep.subr.mxu0 0.0
    %633 = vmatpush1.msra.mxu0 %v300
    %634 = vmatprep.subr.mxu0 0.0
    %635 = vmatpush1.msra.mxu0 %v299
    %636 = vmatprep.subr.mxu0 0.0
    %637 = vmatpush1.msra.mxu0 %v298
    %638 = vmatprep.subr.mxu0 0.0
    %639 = vmatpush1.msra.mxu0 %v297
    %640 = vmatprep.subr.mxu0 0.0
    %641 = vmatpush1.msra.mxu0 %v296
    %642 = vmatprep.subr.mxu0 0.0
    %643 = vmatpush1.msra.mxu0 %v295
    %644 = vmatprep.subr.mxu0 0.0
    %645 = vmatpush1.msra.mxu0 %v294
    %646 = vmatprep.subr.mxu0 0.0
    %647 = vmatpush1.msra.mxu0 %v293
    %648 = vmatprep.subr.mxu0 0.0
    %649 = vmatpush1.msra.mxu0 %v292
    %650 = vmatprep.subr.mxu0 0.0
    %651 = vmatpush1.msra.mxu0 %v291
    %652 = vmatprep.subr.mxu0 0.0
    %653 = vmatpush1.msra.mxu0 %v290
    %654 = vmatprep.subr.mxu0 0.0
    %655 = vmatpush1.msra.mxu0 %v289
    %656 = vmatprep.subr.mxu0 0.0
    %657 = vmatpush1.msra.mxu0 %v288
    %658 = vmatprep.subr.mxu0 0.0
    %659 = vmatpush1.msra.mxu0 %v287
    %660 = vmatprep.subr.mxu0 0.0
    %661 = vmatpush2.msra.mxu0 0.0
    %662 = vmatprep.subr.mxu0 0.0
    %663 = vmatpush2.msra.mxu0 0.0
    %664 = vmatprep.subr.mxu0 0.0
    %665 = vmatpush2.msra.mxu0 0.0
    %666 = vmatprep.subr.mxu0 0.0
    %667 = vmatpush2.msra.mxu0 0.0
    %668 = vmatprep.subr.mxu0 0.0
    %669 = vmatpush2.msra.mxu0 0.0
    %670 = vmatprep.subr.mxu0 0.0
    %671 = vmatpush2.msra.mxu0 0.0
    %672 = vmatprep.subr.mxu0 0.0
    %673 = vmatpush2.msra.mxu0 0.0
    %674 = vmatprep.subr.mxu0 0.0
    %675 = vmatpush2.msra.mxu0 0.0
    %676 = vmatprep.subr.mxu0 0.0
    %677 = vmatpush2.msra.mxu0 0.0
    %678 = vmatprep.subr.mxu0 0.0
    %679 = vmatpush2.msra.mxu0 0.0
    %680 = vmatprep.subr.mxu0 0.0
    %681 = vmatpush2.msra.mxu0 0.0
    %682 = vmatprep.subr.mxu0 0.0
    %683 = vmatpush2.msra.mxu0 0.0
    %684 = vmatprep.subr.mxu0 0.0
    %685 = vmatpush2.msra.mxu0 0.0
    %686 = vmatprep.subr.mxu0 0.0
    %687 = vmatpush2.msra.mxu0 0.0
    %688 = vmatprep.subr.mxu0 0.0
    %689 = vmatpush2.msra.mxu0 0.0
    %690 = vmatprep.subr.mxu0 0.0
    %691 = vmatpush2.msra.mxu0 0.0
    %692 = vmatprep.mubr.f32.mxu0 0.0
    %693 = vmatmul.mubr.f32.gmra.mxu0 %v446
    %v694 = vpop.f32.mrf.mxu0
    %v695 = vadd.f32 0.0, %v694
    %v696 = vpop.f32.mrf.mxu0
    %697 = vdwg.mxu0
    %v698 = vadd.f32 %v259, %v695
    %v699 = vtanh.pop %v698
    %700 = vmatprep.subr.mxu0 0.0
    %701 = vmatpush1.msra.mxu0 %v462
    %702 = vmatprep.subr.mxu0 0.0
    %703 = vmatpush1.msra.mxu0 %v461
    %704 = vmatprep.subr.mxu0 0.0
    %705 = vmatpush1.msra.mxu0 %v460
    %706 = vmatprep.subr.mxu0 0.0
    %707 = vmatpush1.msra.mxu0 %v459
    %708 = vmatprep.subr.mxu0 0.0
    %709 = vmatpush1.msra.mxu0 %v458
    %710 = vmatprep.subr.mxu0 0.0
    %711 = vmatpush1.msra.mxu0 %v457
    %712 = vmatprep.subr.mxu0 0.0
    %713 = vmatpush1.msra.mxu0 %v456
    %714 = vmatprep.subr.mxu0 0.0
    %715 = vmatpush1.msra.mxu0 %v455
    %716 = vmatprep.subr.mxu0 0.0
    %717 = vmatpush1.msra.mxu0 %v454
    %718 = vmatprep.subr.mxu0 0.0
    %719 = vmatpush1.msra.mxu0 %v453
    %720 = vmatprep.subr.mxu0 0.0
    %721 = vmatpush1.msra.mxu0 %v452
    %722 = vmatprep.subr.mxu0 0.0
    %723 = vmatpush1.msra.mxu0 %v451
    %724 = vmatprep.subr.mxu0 0.0
    %725 = vmatpush1.msra.mxu0 %v450
    %726 = vmatprep.subr.mxu0 0.0
    %727 = vmatpush1.msra.mxu0 %v449
    %728 = vmatprep.subr.mxu0 0.0
    %729 = vmatpush1.msra.mxu0 %v448
    %730 = vmatprep.subr.mxu0 0.0
    %731 = vmatpush1.msra.mxu0 %v447
    %732 = vmatprep.subr.mxu0 0.0
    %733 = vmatpush2.msra.mxu0 0.0
    %734 = vmatprep.subr.mxu0 0.0
    %735 = vmatpush2.msra.mxu0 0.0
    %736 = vmatprep.subr.mxu0 0.0
    %737 = vmatpush2.msra.mxu0 0.0
    %738 = vmatprep.subr.mxu0 0.0
    %739 = vmatpush2.msra.mxu0 0.0
    %740 = vmatprep.subr.mxu0 0.0
    %741 = vmatpush2.msra.mxu0 0.0
    %742 = vmatprep.subr.mxu0 0.0
    %743 = vmatpush2.msra.mxu0 0.0
    %744 = vmatprep.subr.mxu0 0.0
    %745 = vmatpush2.msra.mxu0 0.0
    %746 = vmatprep.subr.mxu0 0.0
    %747 = vmatpush2.msra.mxu0 0.0
    %748 = vmatprep.subr.mxu0 0.0
    %749 = vmatpush2.msra.mxu0 0.0
    %750 = vmatprep.subr.mxu0 0.0
    %751 = vmatpush2.msra.mxu0 0.0
    %752 = vmatprep.subr.mxu0 0.0
    %753 = vmatpush2.msra.mxu0 0.0
    %754 = vmatprep.subr.mxu0 0.0
    %755 = vmatpush2.msra.mxu0 0.0
    %756 = vmatprep.subr.mxu0 0.0
    %757 = vmatpush2.msra.mxu0 0.0
    %758 = vmatprep.subr.mxu0 0.0
    %759 = vmatpush2.msra.mxu0 0.0
    %760 = vmatprep.subr.mxu0 0.0
    %761 = vmatpush2.msra.mxu0 0.0
    %762 = vmatprep.subr.mxu0 0.0
    %763 = vmatpush2.msra.mxu0 0.0
    %764 = vmatprep.mubr.f32.mxu0 0.0
    %765 = vmatmul.mubr.f32.gmra.mxu0 %v446
    %v766 = vpop.f32.mrf.mxu0
    %v767 = vadd.f32 %v468, %v766
    %v768 = vpop.f32.mrf.mxu0
    %769 = vdwg.mxu0
    %770 = vmatprep.subr.mxu0 0.0
    %771 = vmatpush1.msra.mxu0 %v555
    %772 = vmatprep.subr.mxu0 0.0
    %773 = vmatpush1.msra.mxu0 %v554
    %774 = vmatprep.subr.mxu0 0.0
    %775 = vmatpush1.msra.mxu0 %v553
    %776 = vmatprep.subr.mxu0 0.0
    %777 = vmatpush1.msra.mxu0 %v552
    %778 = vmatprep.subr.mxu0 0.0
    %779 = vmatpush1.msra.mxu0 %v551
    %780 = vmatprep.subr.mxu0 0.0
    %781 = vmatpush1.msra.mxu0 %v550
    %782 = vmatprep.subr.mxu0 0.0
    %783 = vmatpush1.msra.mxu0 %v549
    %784 = vmatprep.subr.mxu0 0.0
    %785 = vmatpush1.msra.mxu0 %v548
    %786 = vmatprep.subr.mxu0 0.0
    %787 = vmatpush1.msra.mxu0 %v547
    %788 = vmatprep.subr.mxu0 0.0
    %789 = vmatpush1.msra.mxu0 %v546
    %790 = vmatprep.subr.mxu0 0.0
    %791 = vmatpush1.msra.mxu0 %v545
    %792 = vmatprep.subr.mxu0 0.0
    %793 = vmatpush1.msra.mxu0 %v544
    %794 = vmatprep.subr.mxu0 0.0
    %795 = vmatpush1.msra.mxu0 %v543
    %796 = vmatprep.subr.mxu0 0.0
    %797 = vmatpush1.msra.mxu0 %v542
    %798 = vmatprep.subr.mxu0 0.0
    %799 = vmatpush1.msra.mxu0 %v541
    %800 = vmatprep.subr.mxu0 0.0
    %801 = vmatpush1.msra.mxu0 %v540
    %802 = vmatprep.subr.mxu0 0.0
    %803 = vmatpush2.msra.mxu0 0.0
    %804 = vmatprep.subr.mxu0 0.0
    %805 = vmatpush2.msra.mxu0 0.0
    %806 = vmatprep.subr.mxu0 0.0
    %807 = vmatpush2.msra.mxu0 0.0
    %808 = vmatprep.subr.mxu0 0.0
    %809 = vmatpush2.msra.mxu0 0.0
    %810 = vmatprep.subr.mxu0 0.0
    %811 = vmatpush2.msra.mxu0 0.0
    %812 = vmatprep.subr.mxu0 0.0
    %813 = vmatpush2.msra.mxu0 0.0
    %814 = vmatprep.subr.mxu0 0.0
    %815 = vmatpush2.msra.mxu0 0.0
    %816 = vmatprep.subr.mxu0 0.0
    %817 = vmatpush2.msra.mxu0 0.0
    %818 = vmatprep.subr.mxu0 0.0
    %819 = vmatpush2.msra.mxu0 0.0
    %820 = vmatprep.subr.mxu0 0.0
    %821 = vmatpush2.msra.mxu0 0.0
    %822 = vmatprep.subr.mxu0 0.0
    %823 = vmatpush2.msra.mxu0 0.0
    %824 = vmatprep.subr.mxu0 0.0
    %825 = vmatpush2.msra.mxu0 0.0
    %826 = vmatprep.subr.mxu0 0.0
    %827 = vmatpush2.msra.mxu0 0.0
    %828 = vmatprep.subr.mxu0 0.0
    %829 = vmatpush2.msra.mxu0 0.0
    %830 = vmatprep.subr.mxu0 0.0
    %831 = vmatpush2.msra.mxu0 0.0
    %832 = vmatprep.subr.mxu0 0.0
    %833 = vmatpush2.msra.mxu0 0.0
    %834 = vmatprep.mubr.f32.mxu0 0.0
    %835 = vmatmul.mubr.f32.gmra.mxu0 %v627
    %v836 = vpop.f32.mrf.mxu0
    %v837 = vadd.f32 0.0, %v836
    %v838 = vpop.f32.mrf.mxu0
    %839 = vdwg.mxu0
    %v840 = vadd.f32 %v767, %v837
    %v841 = vtanh.pop %v840
    %v842 = vld [vmem:[#allocation12] sm:$0xff]
    %v843 = vld [vmem:[#allocation12 + $0x8] sm:$0xff]
    %v844 = vld [vmem:[#allocation12 + $0x10] sm:$0xff]
    %v845 = vld [vmem:[#allocation12 + $0x18] sm:$0xff]
    %v846 = vld [vmem:[#allocation12 + $0x20] sm:$0xff]
    %v847 = vld [vmem:[#allocation12 + $0x28] sm:$0xff]
    %v848 = vld [vmem:[#allocation12 + $0x30] sm:$0xff]
    %v849 = vld [vmem:[#allocation12 + $0x38] sm:$0xff]
    %v850 = vld [vmem:[#allocation12 + $0x40] sm:$0xff]
    %v851 = vld [vmem:[#allocation12 + $0x48] sm:$0xff]
    %v852 = vld [vmem:[#allocation12 + $0x50] sm:$0xff]
    %v853 = vld [vmem:[#allocation12 + $0x58] sm:$0xff]
    %v854 = vld [vmem:[#allocation12 + $0x60] sm:$0xff]
    %v855 = vld [vmem:[#allocation12 + $0x68] sm:$0xff]
    %v856 = vld [vmem:[#allocation12 + $0x70] sm:$0xff]
    %v857 = vld [vmem:[#allocation12 + $0x78] sm:$0xff]
    %v858 = vld [vmem:[%s9] sm:$0x1]
    %v860 = vlaneseq
    %v861 = vshrl.u32 %v860, 7
    %v862 = vsub.s32 0, %v861
    %v863 = vrot.slane %v858, %v862
    %865 = vmatprep.subr.mxu0 0.0
    %866 = vmatpush1.msra.mxu0 %v857
    %867 = vmatprep.subr.mxu0 0.0
    %868 = vmatpush1.msra.mxu0 %v856
    %869 = vmatprep.subr.mxu0 0.0
    %870 = vmatpush1.msra.mxu0 %v855
    %871 = vmatprep.subr.mxu0 0.0
    %872 = vmatpush1.msra.mxu0 %v854
    %873 = vmatprep.subr.mxu0 0.0
    %874 = vmatpush1.msra.mxu0 %v853
    %875 = vmatprep.subr.mxu0 0.0
    %876 = vmatpush1.msra.mxu0 %v852
    %877 = vmatprep.subr.mxu0 0.0
    %878 = vmatpush1.msra.mxu0 %v851
    %879 = vmatprep.subr.mxu0 0.0
    %880 = vmatpush1.msra.mxu0 %v850
    %881 = vmatprep.subr.mxu0 0.0
    %882 = vmatpush1.msra.mxu0 %v849
    %883 = vmatprep.subr.mxu0 0.0
    %884 = vmatpush1.msra.mxu0 %v848
    %885 = vmatprep.subr.mxu0 0.0
    %886 = vmatpush1.msra.mxu0 %v847
    %887 = vmatprep.subr.mxu0 0.0
    %888 = vmatpush1.msra.mxu0 %v846
    %889 = vmatprep.subr.mxu0 0.0
    %890 = vmatpush1.msra.mxu0 %v845
    %891 = vmatprep.subr.mxu0 0.0
    %892 = vmatpush1.msra.mxu0 %v844
    %893 = vmatprep.subr.mxu0 0.0
    %894 = vmatpush1.msra.mxu0 %v843
    %895 = vmatprep.subr.mxu0 0.0
    %896 = vmatpush1.msra.mxu0 %v842
    %897 = vmatprep.subr.mxu0 0.0
    %898 = vmatpush2.msra.mxu0 0.0
    %899 = vmatprep.subr.mxu0 0.0
    %900 = vmatpush2.msra.mxu0 0.0
    %901 = vmatprep.subr.mxu0 0.0
    %902 = vmatpush2.msra.mxu0 0.0
    %903 = vmatprep.subr.mxu0 0.0
    %904 = vmatpush2.msra.mxu0 0.0
    %905 = vmatprep.subr.mxu0 0.0
    %906 = vmatpush2.msra.mxu0 0.0
    %907 = vmatprep.subr.mxu0 0.0
    %908 = vmatpush2.msra.mxu0 0.0
    %909 = vmatprep.subr.mxu0 0.0
    %910 = vmatpush2.msra.mxu0 0.0
    %911 = vmatprep.subr.mxu0 0.0
    %912 = vmatpush2.msra.mxu0 0.0
    %913 = vmatprep.subr.mxu0 0.0
    %914 = vmatpush2.msra.mxu0 0.0
    %915 = vmatprep.subr.mxu0 0.0
    %916 = vmatpush2.msra.mxu0 0.0
    %917 = vmatprep.subr.mxu0 0.0
    %918 = vmatpush2.msra.mxu0 0.0
    %919 = vmatprep.subr.mxu0 0.0
    %920 = vmatpush2.msra.mxu0 0.0
    %921 = vmatprep.subr.mxu0 0.0
    %922 = vmatpush2.msra.mxu0 0.0
    %923 = vmatprep.subr.mxu0 0.0
    %924 = vmatpush2.msra.mxu0 0.0
    %925 = vmatprep.subr.mxu0 0.0
    %926 = vmatpush2.msra.mxu0 0.0
    %927 = vmatprep.subr.mxu0 0.0
    %928 = vmatpush2.msra.mxu0 0.0
    %929 = vmatprep.mubr.f32.mxu0 0.0
    %930 = vmatmul.mubr.f32.gmra.mxu0 %v627
    %v931 = vpop.f32.mrf.mxu0
    %v932 = vadd.f32 %v863, %v931
    %v933 = vpop.f32.mrf.mxu0
    %934 = vdwg.mxu0
    %v935 = vld [vmem:[#allocation14] sm:$0xff]
    %v936 = vld [vmem:[#allocation14 + $0x8] sm:$0xff]
    %v937 = vld [vmem:[#allocation14 + $0x10] sm:$0xff]
    %v938 = vld [vmem:[#allocation14 + $0x18] sm:$0xff]
    %v939 = vld [vmem:[#allocation14 + $0x20] sm:$0xff]
    %v940 = vld [vmem:[#allocation14 + $0x28] sm:$0xff]
    %v941 = vld [vmem:[#allocation14 + $0x30] sm:$0xff]
    %v942 = vld [vmem:[#allocation14 + $0x38] sm:$0xff]
    %v943 = vld [vmem:[#allocation14 + $0x40] sm:$0xff]
    %v944 = vld [vmem:[#allocation14 + $0x48] sm:$0xff]
    %v945 = vld [vmem:[#allocation14 + $0x50] sm:$0xff]
    %v946 = vld [vmem:[#allocation14 + $0x58] sm:$0xff]
    %v947 = vld [vmem:[#allocation14 + $0x60] sm:$0xff]
    %v948 = vld [vmem:[#allocation14 + $0x68] sm:$0xff]
    %v949 = vld [vmem:[#allocation14 + $0x70] sm:$0xff]
    %v950 = vld [vmem:[#allocation14 + $0x78] sm:$0xff]
    %951 = vmatprep.subr.mxu0 0.0
    %952 = vmatpush1.msra.mxu0 %v950
    %953 = vmatprep.subr.mxu0 0.0
    %954 = vmatpush1.msra.mxu0 %v949
    %955 = vmatprep.subr.mxu0 0.0
    %956 = vmatpush1.msra.mxu0 %v948
    %957 = vmatprep.subr.mxu0 0.0
    %958 = vmatpush1.msra.mxu0 %v947
    %959 = vmatprep.subr.mxu0 0.0
    %960 = vmatpush1.msra.mxu0 %v946
    %961 = vmatprep.subr.mxu0 0.0
    %962 = vmatpush1.msra.mxu0 %v945
    %963 = vmatprep.subr.mxu0 0.0
    %964 = vmatpush1.msra.mxu0 %v944
    %965 = vmatprep.subr.mxu0 0.0
    %966 = vmatpush1.msra.mxu0 %v943
    %967 = vmatprep.subr.mxu0 0.0
    %968 = vmatpush1.msra.mxu0 %v942
    %969 = vmatprep.subr.mxu0 0.0
    %970 = vmatpush1.msra.mxu0 %v941
    %971 = vmatprep.subr.mxu0 0.0
    %972 = vmatpush1.msra.mxu0 %v940
    %973 = vmatprep.subr.mxu0 0.0
    %974 = vmatpush1.msra.mxu0 %v939
    %975 = vmatprep.subr.mxu0 0.0
    %976 = vmatpush1.msra.mxu0 %v938
    %977 = vmatprep.subr.mxu0 0.0
    %978 = vmatpush1.msra.mxu0 %v937
    %979 = vmatprep.subr.mxu0 0.0
    %980 = vmatpush1.msra.mxu0 %v936
    %981 = vmatprep.subr.mxu0 0.0
    %982 = vmatpush1.msra.mxu0 %v935
    %983 = vmatprep.subr.mxu0 0.0
    %984 = vmatpush2.msra.mxu0 0.0
    %985 = vmatprep.subr.mxu0 0.0
    %986 = vmatpush2.msra.mxu0 0.0
    %987 = vmatprep.subr.mxu0 0.0
    %988 = vmatpush2.msra.mxu0 0.0
    %989 = vmatprep.subr.mxu0 0.0
    %990 = vmatpush2.msra.mxu0 0.0
    %991 = vmatprep.subr.mxu0 0.0
    %992 = vmatpush2.msra.mxu0 0.0
    %993 = vmatprep.subr.mxu0 0.0
    %994 = vmatpush2.msra.mxu0 0.0
    %995 = vmatprep.subr.mxu0 0.0
    %996 = vmatpush2.msra.mxu0 0.0
    %997 = vmatprep.subr.mxu0 0.0
    %998 = vmatpush2.msra.mxu0 0.0
    %999 = vmatprep.subr.mxu0 0.0
    %1000 = vmatpush2.msra.mxu0 0.0
    %1001 = vmatprep.subr.mxu0 0.0
    %1002 = vmatpush2.msra.mxu0 0.0
    %1003 = vmatprep.subr.mxu0 0.0
    %1004 = vmatpush2.msra.mxu0 0.0
    %1005 = vmatprep.subr.mxu0 0.0
    %1006 = vmatpush2.msra.mxu0 0.0
    %1007 = vmatprep.subr.mxu0 0.0
    %1008 = vmatpush2.msra.mxu0 0.0
    %1009 = vmatprep.subr.mxu0 0.0
    %1010 = vmatpush2.msra.mxu0 0.0
    %1011 = vmatprep.subr.mxu0 0.0
    %1012 = vmatpush2.msra.mxu0 0.0
    %1013 = vmatprep.subr.mxu0 0.0
    %1014 = vmatpush2.msra.mxu0 0.0
    %1015 = vmatprep.mubr.f32.mxu0 0.0
    %1016 = vmatmul.mubr.f32.gmra.mxu0 0.0
    %v1017 = vpop.f32.mrf.mxu0
    %v1018 = vadd.f32 0.0, %v1017
    %v1019 = vpop.f32.mrf.mxu0
    %1020 = vdwg.mxu0
    %v1021 = vadd.f32 %v932, %v1018
    %v1022 = vtanh.pop %v1021
    %1023 = vst [vmem:[#allocation2] sm:$0xff] %v1022
    %v1024 = vld [vmem:[#allocation8] sm:$0xff]
    %v1025 = vld [vmem:[#allocation8 + $0x8] sm:$0xff]
    %v1026 = vld [vmem:[#allocation8 + $0x10] sm:$0xff]
    %v1027 = vld [vmem:[#allocation8 + $0x18] sm:$0xff]
    %v1028 = vld [vmem:[#allocation8 + $0x20] sm:$0xff]
    %v1029 = vld [vmem:[#allocation8 + $0x28] sm:$0xff]
    %v1030 = vld [vmem:[#allocation8 + $0x30] sm:$0xff]
    %v1031 = vld [vmem:[#allocation8 + $0x38] sm:$0xff]
    %v1032 = vld [vmem:[#allocation8 + $0x40] sm:$0xff]
    %v1033 = vld [vmem:[#allocation8 + $0x48] sm:$0xff]
    %v1034 = vld [vmem:[#allocation8 + $0x50] sm:$0xff]
    %v1035 = vld [vmem:[#allocation8 + $0x58] sm:$0xff]
    %v1036 = vld [vmem:[#allocation8 + $0x60] sm:$0xff]
    %v1037 = vld [vmem:[#allocation8 + $0x68] sm:$0xff]
    %v1038 = vld [vmem:[#allocation8 + $0x70] sm:$0xff]
    %v1039 = vld [vmem:[#allocation8 + $0x78] sm:$0xff]
    %1040 = vmatprep.subr.mxu0 0.0
    %1041 = vmatpush1.msra.mxu0 %v1039
    %1042 = vmatprep.subr.mxu0 0.0
    %1043 = vmatpush1.msra.mxu0 %v1038
    %1044 = vmatprep.subr.mxu0 0.0
    %1045 = vmatpush1.msra.mxu0 %v1037
    %1046 = vmatprep.subr.mxu0 0.0
    %1047 = vmatpush1.msra.mxu0 %v1036
    %1048 = vmatprep.subr.mxu0 0.0
    %1049 = vmatpush1.msra.mxu0 %v1035
    %1050 = vmatprep.subr.mxu0 0.0
    %1051 = vmatpush1.msra.mxu0 %v1034
    %1052 = vmatprep.subr.mxu0 0.0
    %1053 = vmatpush1.msra.mxu0 %v1033
    %1054 = vmatprep.subr.mxu0 0.0
    %1055 = vmatpush1.msra.mxu0 %v1032
    %1056 = vmatprep.subr.mxu0 0.0
    %1057 = vmatpush1.msra.mxu0 %v1031
    %1058 = vmatprep.subr.mxu0 0.0
    %1059 = vmatpush1.msra.mxu0 %v1030
    %1060 = vmatprep.subr.mxu0 0.0
    %1061 = vmatpush1.msra.mxu0 %v1029
    %1062 = vmatprep.subr.mxu0 0.0
    %1063 = vmatpush1.msra.mxu0 %v1028
    %1064 = vmatprep.subr.mxu0 0.0
    %1065 = vmatpush1.msra.mxu0 %v1027
    %1066 = vmatprep.subr.mxu0 0.0
    %1067 = vmatpush1.msra.mxu0 %v1026
    %1068 = vmatprep.subr.mxu0 0.0
    %1069 = vmatpush1.msra.mxu0 %v1025
    %1070 = vmatprep.subr.mxu0 0.0
    %1071 = vmatpush1.msra.mxu0 %v1024
    %1072 = vmatprep.subr.mxu0 0.0
    %1073 = vmatpush2.msra.mxu0 0.0
    %1074 = vmatprep.subr.mxu0 0.0
    %1075 = vmatpush2.msra.mxu0 0.0
    %1076 = vmatprep.subr.mxu0 0.0
    %1077 = vmatpush2.msra.mxu0 0.0
    %1078 = vmatprep.subr.mxu0 0.0
    %1079 = vmatpush2.msra.mxu0 0.0
    %1080 = vmatprep.subr.mxu0 0.0
    %1081 = vmatpush2.msra.mxu0 0.0
    %1082 = vmatprep.subr.mxu0 0.0
    %1083 = vmatpush2.msra.mxu0 0.0
    %1084 = vmatprep.subr.mxu0 0.0
    %1085 = vmatpush2.msra.mxu0 0.0
    %1086 = vmatprep.subr.mxu0 0.0
    %1087 = vmatpush2.msra.mxu0 0.0
    %1088 = vmatprep.subr.mxu0 0.0
    %1089 = vmatpush2.msra.mxu0 0.0
    %1090 = vmatprep.subr.mxu0 0.0
    %1091 = vmatpush2.msra.mxu0 0.0
    %1092 = vmatprep.subr.mxu0 0.0
    %1093 = vmatpush2.msra.mxu0 0.0
    %1094 = vmatprep.subr.mxu0 0.0
    %1095 = vmatpush2.msra.mxu0 0.0
    %1096 = vmatprep.subr.mxu0 0.0
    %1097 = vmatpush2.msra.mxu0 0.0
    %1098 = vmatprep.subr.mxu0 0.0
    %1099 = vmatpush2.msra.mxu0 0.0
    %1100 = vmatprep.subr.mxu0 0.0
    %1101 = vmatpush2.msra.mxu0 0.0
    %1102 = vmatprep.subr.mxu0 0.0
    %1103 = vmatpush2.msra.mxu0 0.0
    %1104 = vmatprep.mubr.f32.mxu0 0.0
    %1105 = vmatmul.mubr.f32.gmra.mxu0 %v699
    %v1106 = vpop.f32.mrf.mxu0
    %v1107 = vadd.f32 0.0, %v1106
    %v1108 = vpop.f32.mrf.mxu0
    %1109 = vdwg.mxu0
    %v1110 = vadd.f32 %v264, %v1107
    %v1111 = vtanh.pop %v1110
    %v1112 = vld [vmem:[#allocation9] sm:$0xff]
    %v1113 = vld [vmem:[#allocation9 + $0x8] sm:$0xff]
    %v1114 = vld [vmem:[#allocation9 + $0x10] sm:$0xff]
    %v1115 = vld [vmem:[#allocation9 + $0x18] sm:$0xff]
    %v1116 = vld [vmem:[#allocation9 + $0x20] sm:$0xff]
    %v1117 = vld [vmem:[#allocation9 + $0x28] sm:$0xff]
    %v1118 = vld [vmem:[#allocation9 + $0x30] sm:$0xff]
    %v1119 = vld [vmem:[#allocation9 + $0x38] sm:$0xff]
    %v1120 = vld [vmem:[#allocation9 + $0x40] sm:$0xff]
    %v1121 = vld [vmem:[#allocation9 + $0x48] sm:$0xff]
    %v1122 = vld [vmem:[#allocation9 + $0x50] sm:$0xff]
    %v1123 = vld [vmem:[#allocation9 + $0x58] sm:$0xff]
    %v1124 = vld [vmem:[#allocation9 + $0x60] sm:$0xff]
    %v1125 = vld [vmem:[#allocation9 + $0x68] sm:$0xff]
    %v1126 = vld [vmem:[#allocation9 + $0x70] sm:$0xff]
    %v1127 = vld [vmem:[#allocation9 + $0x78] sm:$0xff]
    %v1128 = vld [vmem:[%s6] sm:$0x1]
    %v1130 = vlaneseq
    %v1131 = vshrl.u32 %v1130, 7
    %v1132 = vsub.s32 0, %v1131
    %v1133 = vrot.slane %v1128, %v1132
    %1135 = vmatprep.subr.mxu0 0.0
    %1136 = vmatpush1.msra.mxu0 %v1127
    %1137 = vmatprep.subr.mxu0 0.0
    %1138 = vmatpush1.msra.mxu0 %v1126
    %1139 = vmatprep.subr.mxu0 0.0
    %1140 = vmatpush1.msra.mxu0 %v1125
    %1141 = vmatprep.subr.mxu0 0.0
    %1142 = vmatpush1.msra.mxu0 %v1124
    %1143 = vmatprep.subr.mxu0 0.0
    %1144 = vmatpush1.msra.mxu0 %v1123
    %1145 = vmatprep.subr.mxu0 0.0
    %1146 = vmatpush1.msra.mxu0 %v1122
    %1147 = vmatprep.subr.mxu0 0.0
    %1148 = vmatpush1.msra.mxu0 %v1121
    %1149 = vmatprep.subr.mxu0 0.0
    %1150 = vmatpush1.msra.mxu0 %v1120
    %1151 = vmatprep.subr.mxu0 0.0
    %1152 = vmatpush1.msra.mxu0 %v1119
    %1153 = vmatprep.subr.mxu0 0.0
    %1154 = vmatpush1.msra.mxu0 %v1118
    %1155 = vmatprep.subr.mxu0 0.0
    %1156 = vmatpush1.msra.mxu0 %v1117
    %1157 = vmatprep.subr.mxu0 0.0
    %1158 = vmatpush1.msra.mxu0 %v1116
    %1159 = vmatprep.subr.mxu0 0.0
    %1160 = vmatpush1.msra.mxu0 %v1115
    %1161 = vmatprep.subr.mxu0 0.0
    %1162 = vmatpush1.msra.mxu0 %v1114
    %1163 = vmatprep.subr.mxu0 0.0
    %1164 = vmatpush1.msra.mxu0 %v1113
    %1165 = vmatprep.subr.mxu0 0.0
    %1166 = vmatpush1.msra.mxu0 %v1112
    %1167 = vmatprep.subr.mxu0 0.0
    %1168 = vmatpush2.msra.mxu0 0.0
    %1169 = vmatprep.subr.mxu0 0.0
    %1170 = vmatpush2.msra.mxu0 0.0
    %1171 = vmatprep.subr.mxu0 0.0
    %1172 = vmatpush2.msra.mxu0 0.0
    %1173 = vmatprep.subr.mxu0 0.0
    %1174 = vmatpush2.msra.mxu0 0.0
    %1175 = vmatprep.subr.mxu0 0.0
    %1176 = vmatpush2.msra.mxu0 0.0
    %1177 = vmatprep.subr.mxu0 0.0
    %1178 = vmatpush2.msra.mxu0 0.0
    %1179 = vmatprep.subr.mxu0 0.0
    %1180 = vmatpush2.msra.mxu0 0.0
    %1181 = vmatprep.subr.mxu0 0.0
    %1182 = vmatpush2.msra.mxu0 0.0
    %1183 = vmatprep.subr.mxu0 0.0
    %1184 = vmatpush2.msra.mxu0 0.0
    %1185 = vmatprep.subr.mxu0 0.0
    %1186 = vmatpush2.msra.mxu0 0.0
    %1187 = vmatprep.subr.mxu0 0.0
    %1188 = vmatpush2.msra.mxu0 0.0
    %1189 = vmatprep.subr.mxu0 0.0
    %1190 = vmatpush2.msra.mxu0 0.0
    %1191 = vmatprep.subr.mxu0 0.0
    %1192 = vmatpush2.msra.mxu0 0.0
    %1193 = vmatprep.subr.mxu0 0.0
    %1194 = vmatpush2.msra.mxu0 0.0
    %1195 = vmatprep.subr.mxu0 0.0
    %1196 = vmatpush2.msra.mxu0 0.0
    %1197 = vmatprep.subr.mxu0 0.0
    %1198 = vmatpush2.msra.mxu0 0.0
    %1199 = vmatprep.mubr.f32.mxu0 0.0
    %1200 = vmatmul.mubr.f32.gmra.mxu0 %v699
    %v1201 = vpop.f32.mrf.mxu0
    %v1202 = vadd.f32 %v1133, %v1201
    %v1203 = vpop.f32.mrf.mxu0
    %1204 = vdwg.mxu0
    %v1205 = vld [vmem:[#allocation11] sm:$0xff]
    %v1206 = vld [vmem:[#allocation11 + $0x8] sm:$0xff]
    %v1207 = vld [vmem:[#allocation11 + $0x10] sm:$0xff]
    %v1208 = vld [vmem:[#allocation11 + $0x18] sm:$0xff]
    %v1209 = vld [vmem:[#allocation11 + $0x20] sm:$0xff]
    %v1210 = vld [vmem:[#allocation11 + $0x28] sm:$0xff]
    %v1211 = vld [vmem:[#allocation11 + $0x30] sm:$0xff]
    %v1212 = vld [vmem:[#allocation11 + $0x38] sm:$0xff]
    %v1213 = vld [vmem:[#allocation11 + $0x40] sm:$0xff]
    %v1214 = vld [vmem:[#allocation11 + $0x48] sm:$0xff]
    %v1215 = vld [vmem:[#allocation11 + $0x50] sm:$0xff]
    %v1216 = vld [vmem:[#allocation11 + $0x58] sm:$0xff]
    %v1217 = vld [vmem:[#allocation11 + $0x60] sm:$0xff]
    %v1218 = vld [vmem:[#allocation11 + $0x68] sm:$0xff]
    %v1219 = vld [vmem:[#allocation11 + $0x70] sm:$0xff]
    %v1220 = vld [vmem:[#allocation11 + $0x78] sm:$0xff]
    %1221 = vmatprep.subr.mxu0 0.0
    %1222 = vmatpush1.msra.mxu0 %v1220
    %1223 = vmatprep.subr.mxu0 0.0
    %1224 = vmatpush1.msra.mxu0 %v1219
    %1225 = vmatprep.subr.mxu0 0.0
    %1226 = vmatpush1.msra.mxu0 %v1218
    %1227 = vmatprep.subr.mxu0 0.0
    %1228 = vmatpush1.msra.mxu0 %v1217
    %1229 = vmatprep.subr.mxu0 0.0
    %1230 = vmatpush1.msra.mxu0 %v1216
    %1231 = vmatprep.subr.mxu0 0.0
    %1232 = vmatpush1.msra.mxu0 %v1215
    %1233 = vmatprep.subr.mxu0 0.0
    %1234 = vmatpush1.msra.mxu0 %v1214
    %1235 = vmatprep.subr.mxu0 0.0
    %1236 = vmatpush1.msra.mxu0 %v1213
    %1237 = vmatprep.subr.mxu0 0.0
    %1238 = vmatpush1.msra.mxu0 %v1212
    %1239 = vmatprep.subr.mxu0 0.0
    %1240 = vmatpush1.msra.mxu0 %v1211
    %1241 = vmatprep.subr.mxu0 0.0
    %1242 = vmatpush1.msra.mxu0 %v1210
    %1243 = vmatprep.subr.mxu0 0.0
    %1244 = vmatpush1.msra.mxu0 %v1209
    %1245 = vmatprep.subr.mxu0 0.0
    %1246 = vmatpush1.msra.mxu0 %v1208
    %1247 = vmatprep.subr.mxu0 0.0
    %1248 = vmatpush1.msra.mxu0 %v1207
    %1249 = vmatprep.subr.mxu0 0.0
    %1250 = vmatpush1.msra.mxu0 %v1206
    %1251 = vmatprep.subr.mxu0 0.0
    %1252 = vmatpush1.msra.mxu0 %v1205
    %1253 = vmatprep.subr.mxu0 0.0
    %1254 = vmatpush2.msra.mxu0 0.0
    %1255 = vmatprep.subr.mxu0 0.0
    %1256 = vmatpush2.msra.mxu0 0.0
    %1257 = vmatprep.subr.mxu0 0.0
    %1258 = vmatpush2.msra.mxu0 0.0
    %1259 = vmatprep.subr.mxu0 0.0
    %1260 = vmatpush2.msra.mxu0 0.0
    %1261 = vmatprep.subr.mxu0 0.0
    %1262 = vmatpush2.msra.mxu0 0.0
    %1263 = vmatprep.subr.mxu0 0.0
    %1264 = vmatpush2.msra.mxu0 0.0
    %1265 = vmatprep.subr.mxu0 0.0
    %1266 = vmatpush2.msra.mxu0 0.0
    %1267 = vmatprep.subr.mxu0 0.0
    %1268 = vmatpush2.msra.mxu0 0.0
    %1269 = vmatprep.subr.mxu0 0.0
    %1270 = vmatpush2.msra.mxu0 0.0
    %1271 = vmatprep.subr.mxu0 0.0
    %1272 = vmatpush2.msra.mxu0 0.0
    %1273 = vmatprep.subr.mxu0 0.0
    %1274 = vmatpush2.msra.mxu0 0.0
    %1275 = vmatprep.subr.mxu0 0.0
    %1276 = vmatpush2.msra.mxu0 0.0
    %1277 = vmatprep.subr.mxu0 0.0
    %1278 = vmatpush2.msra.mxu0 0.0
    %1279 = vmatprep.subr.mxu0 0.0
    %1280 = vmatpush2.msra.mxu0 0.0
    %1281 = vmatprep.subr.mxu0 0.0
    %1282 = vmatpush2.msra.mxu0 0.0
    %1283 = vmatprep.subr.mxu0 0.0
    %1284 = vmatpush2.msra.mxu0 0.0
    %1285 = vmatprep.mubr.f32.mxu0 0.0
    %1286 = vmatmul.mubr.f32.gmra.mxu0 %v841
    %v1287 = vpop.f32.mrf.mxu0
    %v1288 = vadd.f32 0.0, %v1287
    %v1289 = vpop.f32.mrf.mxu0
    %1290 = vdwg.mxu0
    %v1291 = vadd.f32 %v1202, %v1288
    %v1292 = vtanh.pop %v1291
    %v1293 = vld [vmem:[#allocation12] sm:$0xff]
    %v1294 = vld [vmem:[#allocation12 + $0x8] sm:$0xff]
    %v1295 = vld [vmem:[#allocation12 + $0x10] sm:$0xff]
    %v1296 = vld [vmem:[#allocation12 + $0x18] sm:$0xff]
    %v1297 = vld [vmem:[#allocation12 + $0x20] sm:$0xff]
    %v1298 = vld [vmem:[#allocation12 + $0x28] sm:$0xff]
    %v1299 = vld [vmem:[#allocation12 + $0x30] sm:$0xff]
    %v1300 = vld [vmem:[#allocation12 + $0x38] sm:$0xff]
    %v1301 = vld [vmem:[#allocation12 + $0x40] sm:$0xff]
    %v1302 = vld [vmem:[#allocation12 + $0x48] sm:$0xff]
    %v1303 = vld [vmem:[#allocation12 + $0x50] sm:$0xff]
    %v1304 = vld [vmem:[#allocation12 + $0x58] sm:$0xff]
    %v1305 = vld [vmem:[#allocation12 + $0x60] sm:$0xff]
    %v1306 = vld [vmem:[#allocation12 + $0x68] sm:$0xff]
    %v1307 = vld [vmem:[#allocation12 + $0x70] sm:$0xff]
    %v1308 = vld [vmem:[#allocation12 + $0x78] sm:$0xff]
    %v1309 = vld [vmem:[%s9] sm:$0x1]
    %v1311 = vlaneseq
    %v1312 = vshrl.u32 %v1311, 7
    %v1313 = vsub.s32 0, %v1312
    %v1314 = vrot.slane %v1309, %v1313
    %1316 = vmatprep.subr.mxu0 0.0
    %1317 = vmatpush1.msra.mxu0 %v1308
    %1318 = vmatprep.subr.mxu0 0.0
    %1319 = vmatpush1.msra.mxu0 %v1307
    %1320 = vmatprep.subr.mxu0 0.0
    %1321 = vmatpush1.msra.mxu0 %v1306
    %1322 = vmatprep.subr.mxu0 0.0
    %1323 = vmatpush1.msra.mxu0 %v1305
    %1324 = vmatprep.subr.mxu0 0.0
    %1325 = vmatpush1.msra.mxu0 %v1304
    %1326 = vmatprep.subr.mxu0 0.0
    %1327 = vmatpush1.msra.mxu0 %v1303
    %1328 = vmatprep.subr.mxu0 0.0
    %1329 = vmatpush1.msra.mxu0 %v1302
    %1330 = vmatprep.subr.mxu0 0.0
    %1331 = vmatpush1.msra.mxu0 %v1301
    %1332 = vmatprep.subr.mxu0 0.0
    %1333 = vmatpush1.msra.mxu0 %v1300
    %1334 = vmatprep.subr.mxu0 0.0
    %1335 = vmatpush1.msra.mxu0 %v1299
    %1336 = vmatprep.subr.mxu0 0.0
    %1337 = vmatpush1.msra.mxu0 %v1298
    %1338 = vmatprep.subr.mxu0 0.0
    %1339 = vmatpush1.msra.mxu0 %v1297
    %1340 = vmatprep.subr.mxu0 0.0
    %1341 = vmatpush1.msra.mxu0 %v1296
    %1342 = vmatprep.subr.mxu0 0.0
    %1343 = vmatpush1.msra.mxu0 %v1295
    %1344 = vmatprep.subr.mxu0 0.0
    %1345 = vmatpush1.msra.mxu0 %v1294
    %1346 = vmatprep.subr.mxu0 0.0
    %1347 = vmatpush1.msra.mxu0 %v1293
    %1348 = vmatprep.subr.mxu0 0.0
    %1349 = vmatpush2.msra.mxu0 0.0
    %1350 = vmatprep.subr.mxu0 0.0
    %1351 = vmatpush2.msra.mxu0 0.0
    %1352 = vmatprep.subr.mxu0 0.0
    %1353 = vmatpush2.msra.mxu0 0.0
    %1354 = vmatprep.subr.mxu0 0.0
    %1355 = vmatpush2.msra.mxu0 0.0
    %1356 = vmatprep.subr.mxu0 0.0
    %1357 = vmatpush2.msra.mxu0 0.0
    %1358 = vmatprep.subr.mxu0 0.0
    %1359 = vmatpush2.msra.mxu0 0.0
    %1360 = vmatprep.subr.mxu0 0.0
    %1361 = vmatpush2.msra.mxu0 0.0
    %1362 = vmatprep.subr.mxu0 0.0
    %1363 = vmatpush2.msra.mxu0 0.0
    %1364 = vmatprep.subr.mxu0 0.0
    %1365 = vmatpush2.msra.mxu0 0.0
    %1366 = vmatprep.subr.mxu0 0.0
    %1367 = vmatpush2.msra.mxu0 0.0
    %1368 = vmatprep.subr.mxu0 0.0
    %1369 = vmatpush2.msra.mxu0 0.0
    %1370 = vmatprep.subr.mxu0 0.0
    %1371 = vmatpush2.msra.mxu0 0.0
    %1372 = vmatprep.subr.mxu0 0.0
    %1373 = vmatpush2.msra.mxu0 0.0
    %1374 = vmatprep.subr.mxu0 0.0
    %1375 = vmatpush2.msra.mxu0 0.0
    %1376 = vmatprep.subr.mxu0 0.0
    %1377 = vmatpush2.msra.mxu0 0.0
    %1378 = vmatprep.subr.mxu0 0.0
    %1379 = vmatpush2.msra.mxu0 0.0
    %1380 = vmatprep.mubr.f32.mxu0 0.0
    %1381 = vmatmul.mubr.f32.gmra.mxu0 %v841
    %v1382 = vpop.f32.mrf.mxu0
    %v1383 = vadd.f32 %v1314, %v1382
    %v1384 = vpop.f32.mrf.mxu0
    %1385 = vdwg.mxu0
    %v1386 = vld [vmem:[#allocation14] sm:$0xff]
    %v1387 = vld [vmem:[#allocation14 + $0x8] sm:$0xff]
    %v1388 = vld [vmem:[#allocation14 + $0x10] sm:$0xff]
    %v1389 = vld [vmem:[#allocation14 + $0x18] sm:$0xff]
    %v1390 = vld [vmem:[#allocation14 + $0x20] sm:$0xff]
    %v1391 = vld [vmem:[#allocation14 + $0x28] sm:$0xff]
    %v1392 = vld [vmem:[#allocation14 + $0x30] sm:$0xff]
    %v1393 = vld [vmem:[#allocation14 + $0x38] sm:$0xff]
    %v1394 = vld [vmem:[#allocation14 + $0x40] sm:$0xff]
    %v1395 = vld [vmem:[#allocation14 + $0x48] sm:$0xff]
    %v1396 = vld [vmem:[#allocation14 + $0x50] sm:$0xff]
    %v1397 = vld [vmem:[#allocation14 + $0x58] sm:$0xff]
    %v1398 = vld [vmem:[#allocation14 + $0x60] sm:$0xff]
    %v1399 = vld [vmem:[#allocation14 + $0x68] sm:$0xff]
    %v1400 = vld [vmem:[#allocation14 + $0x70] sm:$0xff]
    %v1401 = vld [vmem:[#allocation14 + $0x78] sm:$0xff]
    %1402 = vmatprep.subr.mxu0 0.0
    %1403 = vmatpush1.msra.mxu0 %v1401
    %1404 = vmatprep.subr.mxu0 0.0
    %1405 = vmatpush1.msra.mxu0 %v1400
    %1406 = vmatprep.subr.mxu0 0.0
    %1407 = vmatpush1.msra.mxu0 %v1399
    %1408 = vmatprep.subr.mxu0 0.0
    %1409 = vmatpush1.msra.mxu0 %v1398
    %1410 = vmatprep.subr.mxu0 0.0
    %1411 = vmatpush1.msra.mxu0 %v1397
    %1412 = vmatprep.subr.mxu0 0.0
    %1413 = vmatpush1.msra.mxu0 %v1396
    %1414 = vmatprep.subr.mxu0 0.0
    %1415 = vmatpush1.msra.mxu0 %v1395
    %1416 = vmatprep.subr.mxu0 0.0
    %1417 = vmatpush1.msra.mxu0 %v1394
    %1418 = vmatprep.subr.mxu0 0.0
    %1419 = vmatpush1.msra.mxu0 %v1393
    %1420 = vmatprep.subr.mxu0 0.0
    %1421 = vmatpush1.msra.mxu0 %v1392
    %1422 = vmatprep.subr.mxu0 0.0
    %1423 = vmatpush1.msra.mxu0 %v1391
    %1424 = vmatprep.subr.mxu0 0.0
    %1425 = vmatpush1.msra.mxu0 %v1390
    %1426 = vmatprep.subr.mxu0 0.0
    %1427 = vmatpush1.msra.mxu0 %v1389
    %1428 = vmatprep.subr.mxu0 0.0
    %1429 = vmatpush1.msra.mxu0 %v1388
    %1430 = vmatprep.subr.mxu0 0.0
    %1431 = vmatpush1.msra.mxu0 %v1387
    %1432 = vmatprep.subr.mxu0 0.0
    %1433 = vmatpush1.msra.mxu0 %v1386
    %1434 = vmatprep.subr.mxu0 0.0
    %1435 = vmatpush2.msra.mxu0 0.0
    %1436 = vmatprep.subr.mxu0 0.0
    %1437 = vmatpush2.msra.mxu0 0.0
    %1438 = vmatprep.subr.mxu0 0.0
    %1439 = vmatpush2.msra.mxu0 0.0
    %1440 = vmatprep.subr.mxu0 0.0
    %1441 = vmatpush2.msra.mxu0 0.0
    %1442 = vmatprep.subr.mxu0 0.0
    %1443 = vmatpush2.msra.mxu0 0.0
    %1444 = vmatprep.subr.mxu0 0.0
    %1445 = vmatpush2.msra.mxu0 0.0
    %1446 = vmatprep.subr.mxu0 0.0
    %1447 = vmatpush2.msra.mxu0 0.0
    %1448 = vmatprep.subr.mxu0 0.0
    %1449 = vmatpush2.msra.mxu0 0.0
    %1450 = vmatprep.subr.mxu0 0.0
    %1451 = vmatpush2.msra.mxu0 0.0
    %1452 = vmatprep.subr.mxu0 0.0
    %1453 = vmatpush2.msra.mxu0 0.0
    %1454 = vmatprep.subr.mxu0 0.0
    %1455 = vmatpush2.msra.mxu0 0.0
    %1456 = vmatprep.subr.mxu0 0.0
    %1457 = vmatpush2.msra.mxu0 0.0
    %1458 = vmatprep.subr.mxu0 0.0
    %1459 = vmatpush2.msra.mxu0 0.0
    %1460 = vmatprep.subr.mxu0 0.0
    %1461 = vmatpush2.msra.mxu0 0.0
    %1462 = vmatprep.subr.mxu0 0.0
    %1463 = vmatpush2.msra.mxu0 0.0
    %1464 = vmatprep.subr.mxu0 0.0
    %1465 = vmatpush2.msra.mxu0 0.0
    %1466 = vmatprep.mubr.f32.mxu0 0.0
    %1467 = vmatmul.mubr.f32.gmra.mxu0 %v1022
    %v1468 = vpop.f32.mrf.mxu0
    %v1469 = vadd.f32 0.0, %v1468
    %v1470 = vpop.f32.mrf.mxu0
    %1471 = vdwg.mxu0
    %v1472 = vadd.f32 %v1383, %v1469
    %v1473 = vtanh.pop %v1472
    %1474 = vst [vmem:[#allocation2 + $0x8] sm:$0xff] %v1473
    %v1475 = vld [vmem:[#allocation8] sm:$0xff]
    %v1476 = vld [vmem:[#allocation8 + $0x8] sm:$0xff]
    %v1477 = vld [vmem:[#allocation8 + $0x10] sm:$0xff]
    %v1478 = vld [vmem:[#allocation8 + $0x18] sm:$0xff]
    %v1479 = vld [vmem:[#allocation8 + $0x20] sm:$0xff]
    %v1480 = vld [vmem:[#allocation8 + $0x28] sm:$0xff]
    %v1481 = vld [vmem:[#allocation8 + $0x30] sm:$0xff]
    %v1482 = vld [vmem:[#allocation8 + $0x38] sm:$0xff]
    %v1483 = vld [vmem:[#allocation8 + $0x40] sm:$0xff]
    %v1484 = vld [vmem:[#allocation8 + $0x48] sm:$0xff]
    %v1485 = vld [vmem:[#allocation8 + $0x50] sm:$0xff]
    %v1486 = vld [vmem:[#allocation8 + $0x58] sm:$0xff]
    %v1487 = vld [vmem:[#allocation8 + $0x60] sm:$0xff]
    %v1488 = vld [vmem:[#allocation8 + $0x68] sm:$0xff]
    %v1489 = vld [vmem:[#allocation8 + $0x70] sm:$0xff]
    %v1490 = vld [vmem:[#allocation8 + $0x78] sm:$0xff]
    %1491 = vmatprep.subr.mxu0 0.0
    %1492 = vmatpush1.msra.mxu0 %v1490
    %1493 = vmatprep.subr.mxu0 0.0
    %1494 = vmatpush1.msra.mxu0 %v1489
    %1495 = vmatprep.subr.mxu0 0.0
    %1496 = vmatpush1.msra.mxu0 %v1488
    %1497 = vmatprep.subr.mxu0 0.0
    %1498 = vmatpush1.msra.mxu0 %v1487
    %1499 = vmatprep.subr.mxu0 0.0
    %1500 = vmatpush1.msra.mxu0 %v1486
    %1501 = vmatprep.subr.mxu0 0.0
    %1502 = vmatpush1.msra.mxu0 %v1485
    %1503 = vmatprep.subr.mxu0 0.0
    %1504 = vmatpush1.msra.mxu0 %v1484
    %1505 = vmatprep.subr.mxu0 0.0
    %1506 = vmatpush1.msra.mxu0 %v1483
    %1507 = vmatprep.subr.mxu0 0.0
    %1508 = vmatpush1.msra.mxu0 %v1482
    %1509 = vmatprep.subr.mxu0 0.0
    %1510 = vmatpush1.msra.mxu0 %v1481
    %1511 = vmatprep.subr.mxu0 0.0
    %1512 = vmatpush1.msra.mxu0 %v1480
    %1513 = vmatprep.subr.mxu0 0.0
    %1514 = vmatpush1.msra.mxu0 %v1479
    %1515 = vmatprep.subr.mxu0 0.0
    %1516 = vmatpush1.msra.mxu0 %v1478
    %1517 = vmatprep.subr.mxu0 0.0
    %1518 = vmatpush1.msra.mxu0 %v1477
    %1519 = vmatprep.subr.mxu0 0.0
    %1520 = vmatpush1.msra.mxu0 %v1476
    %1521 = vmatprep.subr.mxu0 0.0
    %1522 = vmatpush1.msra.mxu0 %v1475
    %1523 = vmatprep.subr.mxu0 0.0
    %1524 = vmatpush2.msra.mxu0 0.0
    %1525 = vmatprep.subr.mxu0 0.0
    %1526 = vmatpush2.msra.mxu0 0.0
    %1527 = vmatprep.subr.mxu0 0.0
    %1528 = vmatpush2.msra.mxu0 0.0
    %1529 = vmatprep.subr.mxu0 0.0
    %1530 = vmatpush2.msra.mxu0 0.0
    %1531 = vmatprep.subr.mxu0 0.0
    %1532 = vmatpush2.msra.mxu0 0.0
    %1533 = vmatprep.subr.mxu0 0.0
    %1534 = vmatpush2.msra.mxu0 0.0
    %1535 = vmatprep.subr.mxu0 0.0
    %1536 = vmatpush2.msra.mxu0 0.0
    %1537 = vmatprep.subr.mxu0 0.0
    %1538 = vmatpush2.msra.mxu0 0.0
    %1539 = vmatprep.subr.mxu0 0.0
    %1540 = vmatpush2.msra.mxu0 0.0
    %1541 = vmatprep.subr.mxu0 0.0
    %1542 = vmatpush2.msra.mxu0 0.0
    %1543 = vmatprep.subr.mxu0 0.0
    %1544 = vmatpush2.msra.mxu0 0.0
    %1545 = vmatprep.subr.mxu0 0.0
    %1546 = vmatpush2.msra.mxu0 0.0
    %1547 = vmatprep.subr.mxu0 0.0
    %1548 = vmatpush2.msra.mxu0 0.0
    %1549 = vmatprep.subr.mxu0 0.0
    %1550 = vmatpush2.msra.mxu0 0.0
    %1551 = vmatprep.subr.mxu0 0.0
    %1552 = vmatpush2.msra.mxu0 0.0
    %1553 = vmatprep.subr.mxu0 0.0
    %1554 = vmatpush2.msra.mxu0 0.0
    %1555 = vmatprep.mubr.f32.mxu0 0.0
    %1556 = vmatmul.mubr.f32.gmra.mxu0 %v1111
    %v1557 = vpop.f32.mrf.mxu0
    %v1558 = vadd.f32 0.0, %v1557
    %v1559 = vpop.f32.mrf.mxu0
    %1560 = vdwg.mxu0
    %v1561 = vadd.f32 %v269, %v1558
    %v1562 = vtanh.pop %v1561
    %v1563 = vld [vmem:[#allocation9] sm:$0xff]
    %v1564 = vld [vmem:[#allocation9 + $0x8] sm:$0xff]
    %v1565 = vld [vmem:[#allocation9 + $0x10] sm:$0xff]
    %v1566 = vld [vmem:[#allocation9 + $0x18] sm:$0xff]
    %v1567 = vld [vmem:[#allocation9 + $0x20] sm:$0xff]
    %v1568 = vld [vmem:[#allocation9 + $0x28] sm:$0xff]
    %v1569 = vld [vmem:[#allocation9 + $0x30] sm:$0xff]
    %v1570 = vld [vmem:[#allocation9 + $0x38] sm:$0xff]
    %v1571 = vld [vmem:[#allocation9 + $0x40] sm:$0xff]
    %v1572 = vld [vmem:[#allocation9 + $0x48] sm:$0xff]
    %v1573 = vld [vmem:[#allocation9 + $0x50] sm:$0xff]
    %v1574 = vld [vmem:[#allocation9 + $0x58] sm:$0xff]
    %v1575 = vld [vmem:[#allocation9 + $0x60] sm:$0xff]
    %v1576 = vld [vmem:[#allocation9 + $0x68] sm:$0xff]
    %v1577 = vld [vmem:[#allocation9 + $0x70] sm:$0xff]
    %v1578 = vld [vmem:[#allocation9 + $0x78] sm:$0xff]
    %v1579 = vld [vmem:[%s6] sm:$0x1]
    %v1581 = vlaneseq
    %v1582 = vshrl.u32 %v1581, 7
    %v1583 = vsub.s32 0, %v1582
    %v1584 = vrot.slane %v1579, %v1583
    %1586 = vmatprep.subr.mxu0 0.0
    %1587 = vmatpush1.msra.mxu0 %v1578
    %1588 = vmatprep.subr.mxu0 0.0
    %1589 = vmatpush1.msra.mxu0 %v1577
    %1590 = vmatprep.subr.mxu0 0.0
    %1591 = vmatpush1.msra.mxu0 %v1576
    %1592 = vmatprep.subr.mxu0 0.0
    %1593 = vmatpush1.msra.mxu0 %v1575
    %1594 = vmatprep.subr.mxu0 0.0
    %1595 = vmatpush1.msra.mxu0 %v1574
    %1596 = vmatprep.subr.mxu0 0.0
    %1597 = vmatpush1.msra.mxu0 %v1573
    %1598 = vmatprep.subr.mxu0 0.0
    %1599 = vmatpush1.msra.mxu0 %v1572
    %1600 = vmatprep.subr.mxu0 0.0
    %1601 = vmatpush1.msra.mxu0 %v1571
    %1602 = vmatprep.subr.mxu0 0.0
    %1603 = vmatpush1.msra.mxu0 %v1570
    %1604 = vmatprep.subr.mxu0 0.0
    %1605 = vmatpush1.msra.mxu0 %v1569
    %1606 = vmatprep.subr.mxu0 0.0
    %1607 = vmatpush1.msra.mxu0 %v1568
    %1608 = vmatprep.subr.mxu0 0.0
    %1609 = vmatpush1.msra.mxu0 %v1567
    %1610 = vmatprep.subr.mxu0 0.0
    %1611 = vmatpush1.msra.mxu0 %v1566
    %1612 = vmatprep.subr.mxu0 0.0
    %1613 = vmatpush1.msra.mxu0 %v1565
    %1614 = vmatprep.subr.mxu0 0.0
    %1615 = vmatpush1.msra.mxu0 %v1564
    %1616 = vmatprep.subr.mxu0 0.0
    %1617 = vmatpush1.msra.mxu0 %v1563
    %1618 = vmatprep.subr.mxu0 0.0
    %1619 = vmatpush2.msra.mxu0 0.0
    %1620 = vmatprep.subr.mxu0 0.0
    %1621 = vmatpush2.msra.mxu0 0.0
    %1622 = vmatprep.subr.mxu0 0.0
    %1623 = vmatpush2.msra.mxu0 0.0
    %1624 = vmatprep.subr.mxu0 0.0
    %1625 = vmatpush2.msra.mxu0 0.0
    %1626 = vmatprep.subr.mxu0 0.0
    %1627 = vmatpush2.msra.mxu0 0.0
    %1628 = vmatprep.subr.mxu0 0.0
    %1629 = vmatpush2.msra.mxu0 0.0
    %1630 = vmatprep.subr.mxu0 0.0
    %1631 = vmatpush2.msra.mxu0 0.0
    %1632 = vmatprep.subr.mxu0 0.0
    %1633 = vmatpush2.msra.mxu0 0.0
    %1634 = vmatprep.subr.mxu0 0.0
    %1635 = vmatpush2.msra.mxu0 0.0
    %1636 = vmatprep.subr.mxu0 0.0
    %1637 = vmatpush2.msra.mxu0 0.0
    %1638 = vmatprep.subr.mxu0 0.0
    %1639 = vmatpush2.msra.mxu0 0.0
    %1640 = vmatprep.subr.mxu0 0.0
    %1641 = vmatpush2.msra.mxu0 0.0
    %1642 = vmatprep.subr.mxu0 0.0
    %1643 = vmatpush2.msra.mxu0 0.0
    %1644 = vmatprep.subr.mxu0 0.0
    %1645 = vmatpush2.msra.mxu0 0.0
    %1646 = vmatprep.subr.mxu0 0.0
    %1647 = vmatpush2.msra.mxu0 0.0
    %1648 = vmatprep.subr.mxu0 0.0
    %1649 = vmatpush2.msra.mxu0 0.0
    %1650 = vmatprep.mubr.f32.mxu0 0.0
    %1651 = vmatmul.mubr.f32.gmra.mxu0 %v1111
    %v1652 = vpop.f32.mrf.mxu0
    %v1653 = vadd.f32 %v1584, %v1652
    %v1654 = vpop.f32.mrf.mxu0
    %1655 = vdwg.mxu0
    %v1656 = vld [vmem:[#allocation11] sm:$0xff]
    %v1657 = vld [vmem:[#allocation11 + $0x8] sm:$0xff]
    %v1658 = vld [vmem:[#allocation11 + $0x10] sm:$0xff]
    %v1659 = vld [vmem:[#allocation11 + $0x18] sm:$0xff]
    %v1660 = vld [vmem:[#allocation11 + $0x20] sm:$0xff]
    %v1661 = vld [vmem:[#allocation11 + $0x28] sm:$0xff]
    %v1662 = vld [vmem:[#allocation11 + $0x30] sm:$0xff]
    %v1663 = vld [vmem:[#allocation11 + $0x38] sm:$0xff]
    %v1664 = vld [vmem:[#allocation11 + $0x40] sm:$0xff]
    %v1665 = vld [vmem:[#allocation11 + $0x48] sm:$0xff]
    %v1666 = vld [vmem:[#allocation11 + $0x50] sm:$0xff]
    %v1667 = vld [vmem:[#allocation11 + $0x58] sm:$0xff]
    %v1668 = vld [vmem:[#allocation11 + $0x60] sm:$0xff]
    %v1669 = vld [vmem:[#allocation11 + $0x68] sm:$0xff]
    %v1670 = vld [vmem:[#allocation11 + $0x70] sm:$0xff]
    %v1671 = vld [vmem:[#allocation11 + $0x78] sm:$0xff]
    %1672 = vmatprep.subr.mxu0 0.0
    %1673 = vmatpush1.msra.mxu0 %v1671
    %1674 = vmatprep.subr.mxu0 0.0
    %1675 = vmatpush1.msra.mxu0 %v1670
    %1676 = vmatprep.subr.mxu0 0.0
    %1677 = vmatpush1.msra.mxu0 %v1669
    %1678 = vmatprep.subr.mxu0 0.0
    %1679 = vmatpush1.msra.mxu0 %v1668
    %1680 = vmatprep.subr.mxu0 0.0
    %1681 = vmatpush1.msra.mxu0 %v1667
    %1682 = vmatprep.subr.mxu0 0.0
    %1683 = vmatpush1.msra.mxu0 %v1666
    %1684 = vmatprep.subr.mxu0 0.0
    %1685 = vmatpush1.msra.mxu0 %v1665
    %1686 = vmatprep.subr.mxu0 0.0
    %1687 = vmatpush1.msra.mxu0 %v1664
    %1688 = vmatprep.subr.mxu0 0.0
    %1689 = vmatpush1.msra.mxu0 %v1663
    %1690 = vmatprep.subr.mxu0 0.0
    %1691 = vmatpush1.msra.mxu0 %v1662
    %1692 = vmatprep.subr.mxu0 0.0
    %1693 = vmatpush1.msra.mxu0 %v1661
    %1694 = vmatprep.subr.mxu0 0.0
    %1695 = vmatpush1.msra.mxu0 %v1660
    %1696 = vmatprep.subr.mxu0 0.0
    %1697 = vmatpush1.msra.mxu0 %v1659
    %1698 = vmatprep.subr.mxu0 0.0
    %1699 = vmatpush1.msra.mxu0 %v1658
    %1700 = vmatprep.subr.mxu0 0.0
    %1701 = vmatpush1.msra.mxu0 %v1657
    %1702 = vmatprep.subr.mxu0 0.0
    %1703 = vmatpush1.msra.mxu0 %v1656
    %1704 = vmatprep.subr.mxu0 0.0
    %1705 = vmatpush2.msra.mxu0 0.0
    %1706 = vmatprep.subr.mxu0 0.0
    %1707 = vmatpush2.msra.mxu0 0.0
    %1708 = vmatprep.subr.mxu0 0.0
    %1709 = vmatpush2.msra.mxu0 0.0
    %1710 = vmatprep.subr.mxu0 0.0
    %1711 = vmatpush2.msra.mxu0 0.0
    %1712 = vmatprep.subr.mxu0 0.0
    %1713 = vmatpush2.msra.mxu0 0.0
    %1714 = vmatprep.subr.mxu0 0.0
    %1715 = vmatpush2.msra.mxu0 0.0
    %1716 = vmatprep.subr.mxu0 0.0
    %1717 = vmatpush2.msra.mxu0 0.0
    %1718 = vmatprep.subr.mxu0 0.0
    %1719 = vmatpush2.msra.mxu0 0.0
    %1720 = vmatprep.subr.mxu0 0.0
    %1721 = vmatpush2.msra.mxu0 0.0
    %1722 = vmatprep.subr.mxu0 0.0
    %1723 = vmatpush2.msra.mxu0 0.0
    %1724 = vmatprep.subr.mxu0 0.0
    %1725 = vmatpush2.msra.mxu0 0.0
    %1726 = vmatprep.subr.mxu0 0.0
    %1727 = vmatpush2.msra.mxu0 0.0
    %1728 = vmatprep.subr.mxu0 0.0
    %1729 = vmatpush2.msra.mxu0 0.0
    %1730 = vmatprep.subr.mxu0 0.0
    %1731 = vmatpush2.msra.mxu0 0.0
    %1732 = vmatprep.subr.mxu0 0.0
    %1733 = vmatpush2.msra.mxu0 0.0
    %1734 = vmatprep.subr.mxu0 0.0
    %1735 = vmatpush2.msra.mxu0 0.0
    %1736 = vmatprep.mubr.f32.mxu0 0.0
    %1737 = vmatmul.mubr.f32.gmra.mxu0 %v1292
    %v1738 = vpop.f32.mrf.mxu0
    %v1739 = vadd.f32 0.0, %v1738
    %v1740 = vpop.f32.mrf.mxu0
    %1741 = vdwg.mxu0
    %v1742 = vadd.f32 %v1653, %v1739
    %v1743 = vtanh.pop %v1742
    %v1744 = vld [vmem:[#allocation12] sm:$0xff]
    %v1745 = vld [vmem:[#allocation12 + $0x8] sm:$0xff]
    %v1746 = vld [vmem:[#allocation12 + $0x10] sm:$0xff]
    %v1747 = vld [vmem:[#allocation12 + $0x18] sm:$0xff]
    %v1748 = vld [vmem:[#allocation12 + $0x20] sm:$0xff]
    %v1749 = vld [vmem:[#allocation12 + $0x28] sm:$0xff]
    %v1750 = vld [vmem:[#allocation12 + $0x30] sm:$0xff]
    %v1751 = vld [vmem:[#allocation12 + $0x38] sm:$0xff]
    %v1752 = vld [vmem:[#allocation12 + $0x40] sm:$0xff]
    %v1753 = vld [vmem:[#allocation12 + $0x48] sm:$0xff]
    %v1754 = vld [vmem:[#allocation12 + $0x50] sm:$0xff]
    %v1755 = vld [vmem:[#allocation12 + $0x58] sm:$0xff]
    %v1756 = vld [vmem:[#allocation12 + $0x60] sm:$0xff]
    %v1757 = vld [vmem:[#allocation12 + $0x68] sm:$0xff]
    %v1758 = vld [vmem:[#allocation12 + $0x70] sm:$0xff]
    %v1759 = vld [vmem:[#allocation12 + $0x78] sm:$0xff]
    %v1760 = vld [vmem:[%s9] sm:$0x1]
    %v1762 = vlaneseq
    %v1763 = vshrl.u32 %v1762, 7
    %v1764 = vsub.s32 0, %v1763
    %v1765 = vrot.slane %v1760, %v1764
    %1767 = vmatprep.subr.mxu0 0.0
    %1768 = vmatpush1.msra.mxu0 %v1759
    %1769 = vmatprep.subr.mxu0 0.0
    %1770 = vmatpush1.msra.mxu0 %v1758
    %1771 = vmatprep.subr.mxu0 0.0
    %1772 = vmatpush1.msra.mxu0 %v1757
    %1773 = vmatprep.subr.mxu0 0.0
    %1774 = vmatpush1.msra.mxu0 %v1756
    %1775 = vmatprep.subr.mxu0 0.0
    %1776 = vmatpush1.msra.mxu0 %v1755
    %1777 = vmatprep.subr.mxu0 0.0
    %1778 = vmatpush1.msra.mxu0 %v1754
    %1779 = vmatprep.subr.mxu0 0.0
    %1780 = vmatpush1.msra.mxu0 %v1753
    %1781 = vmatprep.subr.mxu0 0.0
    %1782 = vmatpush1.msra.mxu0 %v1752
    %1783 = vmatprep.subr.mxu0 0.0
    %1784 = vmatpush1.msra.mxu0 %v1751
    %1785 = vmatprep.subr.mxu0 0.0
    %1786 = vmatpush1.msra.mxu0 %v1750
    %1787 = vmatprep.subr.mxu0 0.0
    %1788 = vmatpush1.msra.mxu0 %v1749
    %1789 = vmatprep.subr.mxu0 0.0
    %1790 = vmatpush1.msra.mxu0 %v1748
    %1791 = vmatprep.subr.mxu0 0.0
    %1792 = vmatpush1.msra.mxu0 %v1747
    %1793 = vmatprep.subr.mxu0 0.0
    %1794 = vmatpush1.msra.mxu0 %v1746
    %1795 = vmatprep.subr.mxu0 0.0
    %1796 = vmatpush1.msra.mxu0 %v1745
    %1797 = vmatprep.subr.mxu0 0.0
    %1798 = vmatpush1.msra.mxu0 %v1744
    %1799 = vmatprep.subr.mxu0 0.0
    %1800 = vmatpush2.msra.mxu0 0.0
    %1801 = vmatprep.subr.mxu0 0.0
    %1802 = vmatpush2.msra.mxu0 0.0
    %1803 = vmatprep.subr.mxu0 0.0
    %1804 = vmatpush2.msra.mxu0 0.0
    %1805 = vmatprep.subr.mxu0 0.0
    %1806 = vmatpush2.msra.mxu0 0.0
    %1807 = vmatprep.subr.mxu0 0.0
    %1808 = vmatpush2.msra.mxu0 0.0
    %1809 = vmatprep.subr.mxu0 0.0
    %1810 = vmatpush2.msra.mxu0 0.0
    %1811 = vmatprep.subr.mxu0 0.0
    %1812 = vmatpush2.msra.mxu0 0.0
    %1813 = vmatprep.subr.mxu0 0.0
    %1814 = vmatpush2.msra.mxu0 0.0
    %1815 = vmatprep.subr.mxu0 0.0
    %1816 = vmatpush2.msra.mxu0 0.0
    %1817 = vmatprep.subr.mxu0 0.0
    %1818 = vmatpush2.msra.mxu0 0.0
    %1819 = vmatprep.subr.mxu0 0.0
    %1820 = vmatpush2.msra.mxu0 0.0
    %1821 = vmatprep.subr.mxu0 0.0
    %1822 = vmatpush2.msra.mxu0 0.0
    %1823 = vmatprep.subr.mxu0 0.0
    %1824 = vmatpush2.msra.mxu0 0.0
    %1825 = vmatprep.subr.mxu0 0.0
    %1826 = vmatpush2.msra.mxu0 0.0
    %1827 = vmatprep.subr.mxu0 0.0
    %1828 = vmatpush2.msra.mxu0 0.0
    %1829 = vmatprep.subr.mxu0 0.0
    %1830 = vmatpush2.msra.mxu0 0.0
    %1831 = vmatprep.mubr.f32.mxu0 0.0
    %1832 = vmatmul.mubr.f32.gmra.mxu0 %v1292
    %v1833 = vpop.f32.mrf.mxu0
    %v1834 = vadd.f32 %v1765, %v1833
    %v1835 = vpop.f32.mrf.mxu0
    %1836 = vdwg.mxu0
    %v1837 = vld [vmem:[#allocation14] sm:$0xff]
    %v1838 = vld [vmem:[#allocation14 + $0x8] sm:$0xff]
    %v1839 = vld [vmem:[#allocation14 + $0x10] sm:$0xff]
    %v1840 = vld [vmem:[#allocation14 + $0x18] sm:$0xff]
    %v1841 = vld [vmem:[#allocation14 + $0x20] sm:$0xff]
    %v1842 = vld [vmem:[#allocation14 + $0x28] sm:$0xff]
    %v1843 = vld [vmem:[#allocation14 + $0x30] sm:$0xff]
    %v1844 = vld [vmem:[#allocation14 + $0x38] sm:$0xff]
    %v1845 = vld [vmem:[#allocation14 + $0x40] sm:$0xff]
    %v1846 = vld [vmem:[#allocation14 + $0x48] sm:$0xff]
    %v1847 = vld [vmem:[#allocation14 + $0x50] sm:$0xff]
    %v1848 = vld [vmem:[#allocation14 + $0x58] sm:$0xff]
    %v1849 = vld [vmem:[#allocation14 + $0x60] sm:$0xff]
    %v1850 = vld [vmem:[#allocation14 + $0x68] sm:$0xff]
    %v1851 = vld [vmem:[#allocation14 + $0x70] sm:$0xff]
    %v1852 = vld [vmem:[#allocation14 + $0x78] sm:$0xff]
    %1853 = vmatprep.subr.mxu0 0.0
    %1854 = vmatpush1.msra.mxu0 %v1852
    %1855 = vmatprep.subr.mxu0 0.0
    %1856 = vmatpush1.msra.mxu0 %v1851
    %1857 = vmatprep.subr.mxu0 0.0
    %1858 = vmatpush1.msra.mxu0 %v1850
    %1859 = vmatprep.subr.mxu0 0.0
    %1860 = vmatpush1.msra.mxu0 %v1849
    %1861 = vmatprep.subr.mxu0 0.0
    %1862 = vmatpush1.msra.mxu0 %v1848
    %1863 = vmatprep.subr.mxu0 0.0
    %1864 = vmatpush1.msra.mxu0 %v1847
    %1865 = vmatprep.subr.mxu0 0.0
    %1866 = vmatpush1.msra.mxu0 %v1846
    %1867 = vmatprep.subr.mxu0 0.0
    %1868 = vmatpush1.msra.mxu0 %v1845
    %1869 = vmatprep.subr.mxu0 0.0
    %1870 = vmatpush1.msra.mxu0 %v1844
    %1871 = vmatprep.subr.mxu0 0.0
    %1872 = vmatpush1.msra.mxu0 %v1843
    %1873 = vmatprep.subr.mxu0 0.0
    %1874 = vmatpush1.msra.mxu0 %v1842
    %1875 = vmatprep.subr.mxu0 0.0
    %1876 = vmatpush1.msra.mxu0 %v1841
    %1877 = vmatprep.subr.mxu0 0.0
    %1878 = vmatpush1.msra.mxu0 %v1840
    %1879 = vmatprep.subr.mxu0 0.0
    %1880 = vmatpush1.msra.mxu0 %v1839
    %1881 = vmatprep.subr.mxu0 0.0
    %1882 = vmatpush1.msra.mxu0 %v1838
    %1883 = vmatprep.subr.mxu0 0.0
    %1884 = vmatpush1.msra.mxu0 %v1837
    %1885 = vmatprep.subr.mxu0 0.0
    %1886 = vmatpush2.msra.mxu0 0.0
    %1887 = vmatprep.subr.mxu0 0.0
    %1888 = vmatpush2.msra.mxu0 0.0
    %1889 = vmatprep.subr.mxu0 0.0
    %1890 = vmatpush2.msra.mxu0 0.0
    %1891 = vmatprep.subr.mxu0 0.0
    %1892 = vmatpush2.msra.mxu0 0.0
    %1893 = vmatprep.subr.mxu0 0.0
    %1894 = vmatpush2.msra.mxu0 0.0
    %1895 = vmatprep.subr.mxu0 0.0
    %1896 = vmatpush2.msra.mxu0 0.0
    %1897 = vmatprep.subr.mxu0 0.0
    %1898 = vmatpush2.msra.mxu0 0.0
    %1899 = vmatprep.subr.mxu0 0.0
    %1900 = vmatpush2.msra.mxu0 0.0
    %1901 = vmatprep.subr.mxu0 0.0
    %1902 = vmatpush2.msra.mxu0 0.0
    %1903 = vmatprep.subr.mxu0 0.0
    %1904 = vmatpush2.msra.mxu0 0.0
    %1905 = vmatprep.subr.mxu0 0.0
    %1906 = vmatpush2.msra.mxu0 0.0
    %1907 = vmatprep.subr.mxu0 0.0
    %1908 = vmatpush2.msra.mxu0 0.0
    %1909 = vmatprep.subr.mxu0 0.0
    %1910 = vmatpush2.msra.mxu0 0.0
    %1911 = vmatprep.subr.mxu0 0.0
    %1912 = vmatpush2.msra.mxu0 0.0
    %1913 = vmatprep.subr.mxu0 0.0
    %1914 = vmatpush2.msra.mxu0 0.0
    %1915 = vmatprep.subr.mxu0 0.0
    %1916 = vmatpush2.msra.mxu0 0.0
    %1917 = vmatprep.mubr.f32.mxu0 0.0
    %1918 = vmatmul.mubr.f32.gmra.mxu0 %v1473
    %v1919 = vpop.f32.mrf.mxu0
    %v1920 = vadd.f32 0.0, %v1919
    %v1921 = vpop.f32.mrf.mxu0
    %1922 = vdwg.mxu0
    %v1923 = vadd.f32 %v1834, %v1920
    %v1924 = vtanh.pop %v1923
    %1925 = vst [vmem:[#allocation2 + $0x10] sm:$0xff] %v1924
    %v1926 = vld [vmem:[#allocation8] sm:$0xff]
    %v1927 = vld [vmem:[#allocation8 + $0x8] sm:$0xff]
    %v1928 = vld [vmem:[#allocation8 + $0x10] sm:$0xff]
    %v1929 = vld [vmem:[#allocation8 + $0x18] sm:$0xff]
    %v1930 = vld [vmem:[#allocation8 + $0x20] sm:$0xff]
    %v1931 = vld [vmem:[#allocation8 + $0x28] sm:$0xff]
    %v1932 = vld [vmem:[#allocation8 + $0x30] sm:$0xff]
    %v1933 = vld [vmem:[#allocation8 + $0x38] sm:$0xff]
    %v1934 = vld [vmem:[#allocation8 + $0x40] sm:$0xff]
    %v1935 = vld [vmem:[#allocation8 + $0x48] sm:$0xff]
    %v1936 = vld [vmem:[#allocation8 + $0x50] sm:$0xff]
    %v1937 = vld [vmem:[#allocation8 + $0x58] sm:$0xff]
    %v1938 = vld [vmem:[#allocation8 + $0x60] sm:$0xff]
    %v1939 = vld [vmem:[#allocation8 + $0x68] sm:$0xff]
    %v1940 = vld [vmem:[#allocation8 + $0x70] sm:$0xff]
    %v1941 = vld [vmem:[#allocation8 + $0x78] sm:$0xff]
    %1942 = vmatprep.subr.mxu0 0.0
    %1943 = vmatpush1.msra.mxu0 %v1941
    %1944 = vmatprep.subr.mxu0 0.0
    %1945 = vmatpush1.msra.mxu0 %v1940
    %1946 = vmatprep.subr.mxu0 0.0
    %1947 = vmatpush1.msra.mxu0 %v1939
    %1948 = vmatprep.subr.mxu0 0.0
    %1949 = vmatpush1.msra.mxu0 %v1938
    %1950 = vmatprep.subr.mxu0 0.0
    %1951 = vmatpush1.msra.mxu0 %v1937
    %1952 = vmatprep.subr.mxu0 0.0
    %1953 = vmatpush1.msra.mxu0 %v1936
    %1954 = vmatprep.subr.mxu0 0.0
    %1955 = vmatpush1.msra.mxu0 %v1935
    %1956 = vmatprep.subr.mxu0 0.0
    %1957 = vmatpush1.msra.mxu0 %v1934
    %1958 = vmatprep.subr.mxu0 0.0
    %1959 = vmatpush1.msra.mxu0 %v1933
    %1960 = vmatprep.subr.mxu0 0.0
    %1961 = vmatpush1.msra.mxu0 %v1932
    %1962 = vmatprep.subr.mxu0 0.0
    %1963 = vmatpush1.msra.mxu0 %v1931
    %1964 = vmatprep.subr.mxu0 0.0
    %1965 = vmatpush1.msra.mxu0 %v1930
    %1966 = vmatprep.subr.mxu0 0.0
    %1967 = vmatpush1.msra.mxu0 %v1929
    %1968 = vmatprep.subr.mxu0 0.0
    %1969 = vmatpush1.msra.mxu0 %v1928
    %1970 = vmatprep.subr.mxu0 0.0
    %1971 = vmatpush1.msra.mxu0 %v1927
    %1972 = vmatprep.subr.mxu0 0.0
    %1973 = vmatpush1.msra.mxu0 %v1926
    %1974 = vmatprep.subr.mxu0 0.0
    %1975 = vmatpush2.msra.mxu0 0.0
    %1976 = vmatprep.subr.mxu0 0.0
    %1977 = vmatpush2.msra.mxu0 0.0
    %1978 = vmatprep.subr.mxu0 0.0
    %1979 = vmatpush2.msra.mxu0 0.0
    %1980 = vmatprep.subr.mxu0 0.0
    %1981 = vmatpush2.msra.mxu0 0.0
    %1982 = vmatprep.subr.mxu0 0.0
    %1983 = vmatpush2.msra.mxu0 0.0
    %1984 = vmatprep.subr.mxu0 0.0
    %1985 = vmatpush2.msra.mxu0 0.0
    %1986 = vmatprep.subr.mxu0 0.0
    %1987 = vmatpush2.msra.mxu0 0.0
    %1988 = vmatprep.subr.mxu0 0.0
    %1989 = vmatpush2.msra.mxu0 0.0
    %1990 = vmatprep.subr.mxu0 0.0
    %1991 = vmatpush2.msra.mxu0 0.0
    %1992 = vmatprep.subr.mxu0 0.0
    %1993 = vmatpush2.msra.mxu0 0.0
    %1994 = vmatprep.subr.mxu0 0.0
    %1995 = vmatpush2.msra.mxu0 0.0
    %1996 = vmatprep.subr.mxu0 0.0
    %1997 = vmatpush2.msra.mxu0 0.0
    %1998 = vmatprep.subr.mxu0 0.0
    %1999 = vmatpush2.msra.mxu0 0.0
    %2000 = vmatprep.subr.mxu0 0.0
    %2001 = vmatpush2.msra.mxu0 0.0
    %2002 = vmatprep.subr.mxu0 0.0
    %2003 = vmatpush2.msra.mxu0 0.0
    %2004 = vmatprep.subr.mxu0 0.0
    %2005 = vmatpush2.msra.mxu0 0.0
    %2006 = vmatprep.mubr.f32.mxu0 0.0
    %2007 = vmatmul.mubr.f32.gmra.mxu0 %v1562
    %v2008 = vpop.f32.mrf.mxu0
    %v2009 = vadd.f32 0.0, %v2008
    %v2010 = vpop.f32.mrf.mxu0
    %2011 = vdwg.mxu0
    %v2012 = vadd.f32 %v274, %v2009
    %v2013 = vtanh.pop %v2012
    %v2014 = vld [vmem:[#allocation9] sm:$0xff]
    %v2015 = vld [vmem:[#allocation9 + $0x8] sm:$0xff]
    %v2016 = vld [vmem:[#allocation9 + $0x10] sm:$0xff]
    %v2017 = vld [vmem:[#allocation9 + $0x18] sm:$0xff]
    %v2018 = vld [vmem:[#allocation9 + $0x20] sm:$0xff]
    %v2019 = vld [vmem:[#allocation9 + $0x28] sm:$0xff]
    %v2020 = vld [vmem:[#allocation9 + $0x30] sm:$0xff]
    %v2021 = vld [vmem:[#allocation9 + $0x38] sm:$0xff]
    %v2022 = vld [vmem:[#allocation9 + $0x40] sm:$0xff]
    %v2023 = vld [vmem:[#allocation9 + $0x48] sm:$0xff]
    %v2024 = vld [vmem:[#allocation9 + $0x50] sm:$0xff]
    %v2025 = vld [vmem:[#allocation9 + $0x58] sm:$0xff]
    %v2026 = vld [vmem:[#allocation9 + $0x60] sm:$0xff]
    %v2027 = vld [vmem:[#allocation9 + $0x68] sm:$0xff]
    %v2028 = vld [vmem:[#allocation9 + $0x70] sm:$0xff]
    %v2029 = vld [vmem:[#allocation9 + $0x78] sm:$0xff]
    %v2030 = vld [vmem:[%s6] sm:$0x1]
    %v2032 = vlaneseq
    %v2033 = vshrl.u32 %v2032, 7
    %v2034 = vsub.s32 0, %v2033
    %v2035 = vrot.slane %v2030, %v2034
    %2037 = vmatprep.subr.mxu0 0.0
    %2038 = vmatpush1.msra.mxu0 %v2029
    %2039 = vmatprep.subr.mxu0 0.0
    %2040 = vmatpush1.msra.mxu0 %v2028
    %2041 = vmatprep.subr.mxu0 0.0
    %2042 = vmatpush1.msra.mxu0 %v2027
    %2043 = vmatprep.subr.mxu0 0.0
    %2044 = vmatpush1.msra.mxu0 %v2026
    %2045 = vmatprep.subr.mxu0 0.0
    %2046 = vmatpush1.msra.mxu0 %v2025
    %2047 = vmatprep.subr.mxu0 0.0
    %2048 = vmatpush1.msra.mxu0 %v2024
    %2049 = vmatprep.subr.mxu0 0.0
    %2050 = vmatpush1.msra.mxu0 %v2023
    %2051 = vmatprep.subr.mxu0 0.0
    %2052 = vmatpush1.msra.mxu0 %v2022
    %2053 = vmatprep.subr.mxu0 0.0
    %2054 = vmatpush1.msra.mxu0 %v2021
    %2055 = vmatprep.subr.mxu0 0.0
    %2056 = vmatpush1.msra.mxu0 %v2020
    %2057 = vmatprep.subr.mxu0 0.0
    %2058 = vmatpush1.msra.mxu0 %v2019
    %2059 = vmatprep.subr.mxu0 0.0
    %2060 = vmatpush1.msra.mxu0 %v2018
    %2061 = vmatprep.subr.mxu0 0.0
    %2062 = vmatpush1.msra.mxu0 %v2017
    %2063 = vmatprep.subr.mxu0 0.0
    %2064 = vmatpush1.msra.mxu0 %v2016
    %2065 = vmatprep.subr.mxu0 0.0
    %2066 = vmatpush1.msra.mxu0 %v2015
    %2067 = vmatprep.subr.mxu0 0.0
    %2068 = vmatpush1.msra.mxu0 %v2014
    %2069 = vmatprep.subr.mxu0 0.0
    %2070 = vmatpush2.msra.mxu0 0.0
    %2071 = vmatprep.subr.mxu0 0.0
    %2072 = vmatpush2.msra.mxu0 0.0
    %2073 = vmatprep.subr.mxu0 0.0
    %2074 = vmatpush2.msra.mxu0 0.0
    %2075 = vmatprep.subr.mxu0 0.0
    %2076 = vmatpush2.msra.mxu0 0.0
    %2077 = vmatprep.subr.mxu0 0.0
    %2078 = vmatpush2.msra.mxu0 0.0
    %2079 = vmatprep.subr.mxu0 0.0
    %2080 = vmatpush2.msra.mxu0 0.0
    %2081 = vmatprep.subr.mxu0 0.0
    %2082 = vmatpush2.msra.mxu0 0.0
    %2083 = vmatprep.subr.mxu0 0.0
    %2084 = vmatpush2.msra.mxu0 0.0
    %2085 = vmatprep.subr.mxu0 0.0
    %2086 = vmatpush2.msra.mxu0 0.0
    %2087 = vmatprep.subr.mxu0 0.0
    %2088 = vmatpush2.msra.mxu0 0.0
    %2089 = vmatprep.subr.mxu0 0.0
    %2090 = vmatpush2.msra.mxu0 0.0
    %2091 = vmatprep.subr.mxu0 0.0
    %2092 = vmatpush2.msra.mxu0 0.0
    %2093 = vmatprep.subr.mxu0 0.0
    %2094 = vmatpush2.msra.mxu0 0.0
    %2095 = vmatprep.subr.mxu0 0.0
    %2096 = vmatpush2.msra.mxu0 0.0
    %2097 = vmatprep.subr.mxu0 0.0
    %2098 = vmatpush2.msra.mxu0 0.0
    %2099 = vmatprep.subr.mxu0 0.0
    %2100 = vmatpush2.msra.mxu0 0.0
    %2101 = vmatprep.mubr.f32.mxu0 0.0
    %2102 = vmatmul.mubr.f32.gmra.mxu0 %v1562
    %v2103 = vpop.f32.mrf.mxu0
    %v2104 = vadd.f32 %v2035, %v2103
    %v2105 = vpop.f32.mrf.mxu0
    %2106 = vdwg.mxu0
    %v2107 = vld [vmem:[#allocation11] sm:$0xff]
    %v2108 = vld [vmem:[#allocation11 + $0x8] sm:$0xff]
    %v2109 = vld [vmem:[#allocation11 + $0x10] sm:$0xff]
    %v2110 = vld [vmem:[#allocation11 + $0x18] sm:$0xff]
    %v2111 = vld [vmem:[#allocation11 + $0x20] sm:$0xff]
    %v2112 = vld [vmem:[#allocation11 + $0x28] sm:$0xff]
    %v2113 = vld [vmem:[#allocation11 + $0x30] sm:$0xff]
    %v2114 = vld [vmem:[#allocation11 + $0x38] sm:$0xff]
    %v2115 = vld [vmem:[#allocation11 + $0x40] sm:$0xff]
    %v2116 = vld [vmem:[#allocation11 + $0x48] sm:$0xff]
    %v2117 = vld [vmem:[#allocation11 + $0x50] sm:$0xff]
    %v2118 = vld [vmem:[#allocation11 + $0x58] sm:$0xff]
    %v2119 = vld [vmem:[#allocation11 + $0x60] sm:$0xff]
    %v2120 = vld [vmem:[#allocation11 + $0x68] sm:$0xff]
    %v2121 = vld [vmem:[#allocation11 + $0x70] sm:$0xff]
    %v2122 = vld [vmem:[#allocation11 + $0x78] sm:$0xff]
    %2123 = vmatprep.subr.mxu0 0.0
    %2124 = vmatpush1.msra.mxu0 %v2122
    %2125 = vmatprep.subr.mxu0 0.0
    %2126 = vmatpush1.msra.mxu0 %v2121
    %2127 = vmatprep.subr.mxu0 0.0
    %2128 = vmatpush1.msra.mxu0 %v2120
    %2129 = vmatprep.subr.mxu0 0.0
    %2130 = vmatpush1.msra.mxu0 %v2119
    %2131 = vmatprep.subr.mxu0 0.0
    %2132 = vmatpush1.msra.mxu0 %v2118
    %2133 = vmatprep.subr.mxu0 0.0
    %2134 = vmatpush1.msra.mxu0 %v2117
    %2135 = vmatprep.subr.mxu0 0.0
    %2136 = vmatpush1.msra.mxu0 %v2116
    %2137 = vmatprep.subr.mxu0 0.0
    %2138 = vmatpush1.msra.mxu0 %v2115
    %2139 = vmatprep.subr.mxu0 0.0
    %2140 = vmatpush1.msra.mxu0 %v2114
    %2141 = vmatprep.subr.mxu0 0.0
    %2142 = vmatpush1.msra.mxu0 %v2113
    %2143 = vmatprep.subr.mxu0 0.0
    %2144 = vmatpush1.msra.mxu0 %v2112
    %2145 = vmatprep.subr.mxu0 0.0
    %2146 = vmatpush1.msra.mxu0 %v2111
    %2147 = vmatprep.subr.mxu0 0.0
    %2148 = vmatpush1.msra.mxu0 %v2110
    %2149 = vmatprep.subr.mxu0 0.0
    %2150 = vmatpush1.msra.mxu0 %v2109
    %2151 = vmatprep.subr.mxu0 0.0
    %2152 = vmatpush1.msra.mxu0 %v2108
    %2153 = vmatprep.subr.mxu0 0.0
    %2154 = vmatpush1.msra.mxu0 %v2107
    %2155 = vmatprep.subr.mxu0 0.0
    %2156 = vmatpush2.msra.mxu0 0.0
    %2157 = vmatprep.subr.mxu0 0.0
    %2158 = vmatpush2.msra.mxu0 0.0
    %2159 = vmatprep.subr.mxu0 0.0
    %2160 = vmatpush2.msra.mxu0 0.0
    %2161 = vmatprep.subr.mxu0 0.0
    %2162 = vmatpush2.msra.mxu0 0.0
    %2163 = vmatprep.subr.mxu0 0.0
    %2164 = vmatpush2.msra.mxu0 0.0
    %2165 = vmatprep.subr.mxu0 0.0
    %2166 = vmatpush2.msra.mxu0 0.0
    %2167 = vmatprep.subr.mxu0 0.0
    %2168 = vmatpush2.msra.mxu0 0.0
    %2169 = vmatprep.subr.mxu0 0.0
    %2170 = vmatpush2.msra.mxu0 0.0
    %2171 = vmatprep.subr.mxu0 0.0
    %2172 = vmatpush2.msra.mxu0 0.0
    %2173 = vmatprep.subr.mxu0 0.0
    %2174 = vmatpush2.msra.mxu0 0.0
    %2175 = vmatprep.subr.mxu0 0.0
    %2176 = vmatpush2.msra.mxu0 0.0
    %2177 = vmatprep.subr.mxu0 0.0
    %2178 = vmatpush2.msra.mxu0 0.0
    %2179 = vmatprep.subr.mxu0 0.0
    %2180 = vmatpush2.msra.mxu0 0.0
    %2181 = vmatprep.subr.mxu0 0.0
    %2182 = vmatpush2.msra.mxu0 0.0
    %2183 = vmatprep.subr.mxu0 0.0
    %2184 = vmatpush2.msra.mxu0 0.0
    %2185 = vmatprep.subr.mxu0 0.0
    %2186 = vmatpush2.msra.mxu0 0.0
    %2187 = vmatprep.mubr.f32.mxu0 0.0
    %2188 = vmatmul.mubr.f32.gmra.mxu0 %v1743
    %v2189 = vpop.f32.mrf.mxu0
    %v2190 = vadd.f32 0.0, %v2189
    %v2191 = vpop.f32.mrf.mxu0
    %2192 = vdwg.mxu0
    %v2193 = vadd.f32 %v2104, %v2190
    %v2194 = vtanh.pop %v2193
    %v2195 = vld [vmem:[#allocation12] sm:$0xff]
    %v2196 = vld [vmem:[#allocation12 + $0x8] sm:$0xff]
    %v2197 = vld [vmem:[#allocation12 + $0x10] sm:$0xff]
    %v2198 = vld [vmem:[#allocation12 + $0x18] sm:$0xff]
    %v2199 = vld [vmem:[#allocation12 + $0x20] sm:$0xff]
    %v2200 = vld [vmem:[#allocation12 + $0x28] sm:$0xff]
    %v2201 = vld [vmem:[#allocation12 + $0x30] sm:$0xff]
    %v2202 = vld [vmem:[#allocation12 + $0x38] sm:$0xff]
    %v2203 = vld [vmem:[#allocation12 + $0x40] sm:$0xff]
    %v2204 = vld [vmem:[#allocation12 + $0x48] sm:$0xff]
    %v2205 = vld [vmem:[#allocation12 + $0x50] sm:$0xff]
    %v2206 = vld [vmem:[#allocation12 + $0x58] sm:$0xff]
    %v2207 = vld [vmem:[#allocation12 + $0x60] sm:$0xff]
    %v2208 = vld [vmem:[#allocation12 + $0x68] sm:$0xff]
    %v2209 = vld [vmem:[#allocation12 + $0x70] sm:$0xff]
    %v2210 = vld [vmem:[#allocation12 + $0x78] sm:$0xff]
    %v2211 = vld [vmem:[%s9] sm:$0x1]
    %v2213 = vlaneseq
    %v2214 = vshrl.u32 %v2213, 7
    %v2215 = vsub.s32 0, %v2214
    %v2216 = vrot.slane %v2211, %v2215
    %2218 = vmatprep.subr.mxu0 0.0
    %2219 = vmatpush1.msra.mxu0 %v2210
    %2220 = vmatprep.subr.mxu0 0.0
    %2221 = vmatpush1.msra.mxu0 %v2209
    %2222 = vmatprep.subr.mxu0 0.0
    %2223 = vmatpush1.msra.mxu0 %v2208
    %2224 = vmatprep.subr.mxu0 0.0
    %2225 = vmatpush1.msra.mxu0 %v2207
    %2226 = vmatprep.subr.mxu0 0.0
    %2227 = vmatpush1.msra.mxu0 %v2206
    %2228 = vmatprep.subr.mxu0 0.0
    %2229 = vmatpush1.msra.mxu0 %v2205
    %2230 = vmatprep.subr.mxu0 0.0
    %2231 = vmatpush1.msra.mxu0 %v2204
    %2232 = vmatprep.subr.mxu0 0.0
    %2233 = vmatpush1.msra.mxu0 %v2203
    %2234 = vmatprep.subr.mxu0 0.0
    %2235 = vmatpush1.msra.mxu0 %v2202
    %2236 = vmatprep.subr.mxu0 0.0
    %2237 = vmatpush1.msra.mxu0 %v2201
    %2238 = vmatprep.subr.mxu0 0.0
    %2239 = vmatpush1.msra.mxu0 %v2200
    %2240 = vmatprep.subr.mxu0 0.0
    %2241 = vmatpush1.msra.mxu0 %v2199
    %2242 = vmatprep.subr.mxu0 0.0
    %2243 = vmatpush1.msra.mxu0 %v2198
    %2244 = vmatprep.subr.mxu0 0.0
    %2245 = vmatpush1.msra.mxu0 %v2197
    %2246 = vmatprep.subr.mxu0 0.0
    %2247 = vmatpush1.msra.mxu0 %v2196
    %2248 = vmatprep.subr.mxu0 0.0
    %2249 = vmatpush1.msra.mxu0 %v2195
    %2250 = vmatprep.subr.mxu0 0.0
    %2251 = vmatpush2.msra.mxu0 0.0
    %2252 = vmatprep.subr.mxu0 0.0
    %2253 = vmatpush2.msra.mxu0 0.0
    %2254 = vmatprep.subr.mxu0 0.0
    %2255 = vmatpush2.msra.mxu0 0.0
    %2256 = vmatprep.subr.mxu0 0.0
    %2257 = vmatpush2.msra.mxu0 0.0
    %2258 = vmatprep.subr.mxu0 0.0
    %2259 = vmatpush2.msra.mxu0 0.0
    %2260 = vmatprep.subr.mxu0 0.0
    %2261 = vmatpush2.msra.mxu0 0.0
    %2262 = vmatprep.subr.mxu0 0.0
    %2263 = vmatpush2.msra.mxu0 0.0
    %2264 = vmatprep.subr.mxu0 0.0
    %2265 = vmatpush2.msra.mxu0 0.0
    %2266 = vmatprep.subr.mxu0 0.0
    %2267 = vmatpush2.msra.mxu0 0.0
    %2268 = vmatprep.subr.mxu0 0.0
    %2269 = vmatpush2.msra.mxu0 0.0
    %2270 = vmatprep.subr.mxu0 0.0
    %2271 = vmatpush2.msra.mxu0 0.0
    %2272 = vmatprep.subr.mxu0 0.0
    %2273 = vmatpush2.msra.mxu0 0.0
    %2274 = vmatprep.subr.mxu0 0.0
    %2275 = vmatpush2.msra.mxu0 0.0
    %2276 = vmatprep.subr.mxu0 0.0
    %2277 = vmatpush2.msra.mxu0 0.0
    %2278 = vmatprep.subr.mxu0 0.0
    %2279 = vmatpush2.msra.mxu0 0.0
    %2280 = vmatprep.subr.mxu0 0.0
    %2281 = vmatpush2.msra.mxu0 0.0
    %2282 = vmatprep.mubr.f32.mxu0 0.0
    %2283 = vmatmul.mubr.f32.gmra.mxu0 %v1743
    %v2284 = vpop.f32.mrf.mxu0
    %v2285 = vadd.f32 %v2216, %v2284
    %v2286 = vpop.f32.mrf.mxu0
    %2287 = vdwg.mxu0
    %v2288 = vld [vmem:[#allocation14] sm:$0xff]
    %v2289 = vld [vmem:[#allocation14 + $0x8] sm:$0xff]
    %v2290 = vld [vmem:[#allocation14 + $0x10] sm:$0xff]
    %v2291 = vld [vmem:[#allocation14 + $0x18] sm:$0xff]
    %v2292 = vld [vmem:[#allocation14 + $0x20] sm:$0xff]
    %v2293 = vld [vmem:[#allocation14 + $0x28] sm:$0xff]
    %v2294 = vld [vmem:[#allocation14 + $0x30] sm:$0xff]
    %v2295 = vld [vmem:[#allocation14 + $0x38] sm:$0xff]
    %v2296 = vld [vmem:[#allocation14 + $0x40] sm:$0xff]
    %v2297 = vld [vmem:[#allocation14 + $0x48] sm:$0xff]
    %v2298 = vld [vmem:[#allocation14 + $0x50] sm:$0xff]
    %v2299 = vld [vmem:[#allocation14 + $0x58] sm:$0xff]
    %v2300 = vld [vmem:[#allocation14 + $0x60] sm:$0xff]
    %v2301 = vld [vmem:[#allocation14 + $0x68] sm:$0xff]
    %v2302 = vld [vmem:[#allocation14 + $0x70] sm:$0xff]
    %v2303 = vld [vmem:[#allocation14 + $0x78] sm:$0xff]
    %2304 = vmatprep.subr.mxu0 0.0
    %2305 = vmatpush1.msra.mxu0 %v2303
    %2306 = vmatprep.subr.mxu0 0.0
    %2307 = vmatpush1.msra.mxu0 %v2302
    %2308 = vmatprep.subr.mxu0 0.0
    %2309 = vmatpush1.msra.mxu0 %v2301
    %2310 = vmatprep.subr.mxu0 0.0
    %2311 = vmatpush1.msra.mxu0 %v2300
    %2312 = vmatprep.subr.mxu0 0.0
    %2313 = vmatpush1.msra.mxu0 %v2299
    %2314 = vmatprep.subr.mxu0 0.0
    %2315 = vmatpush1.msra.mxu0 %v2298
    %2316 = vmatprep.subr.mxu0 0.0
    %2317 = vmatpush1.msra.mxu0 %v2297
    %2318 = vmatprep.subr.mxu0 0.0
    %2319 = vmatpush1.msra.mxu0 %v2296
    %2320 = vmatprep.subr.mxu0 0.0
    %2321 = vmatpush1.msra.mxu0 %v2295
    %2322 = vmatprep.subr.mxu0 0.0
    %2323 = vmatpush1.msra.mxu0 %v2294
    %2324 = vmatprep.subr.mxu0 0.0
    %2325 = vmatpush1.msra.mxu0 %v2293
    %2326 = vmatprep.subr.mxu0 0.0
    %2327 = vmatpush1.msra.mxu0 %v2292
    %2328 = vmatprep.subr.mxu0 0.0
    %2329 = vmatpush1.msra.mxu0 %v2291
    %2330 = vmatprep.subr.mxu0 0.0
    %2331 = vmatpush1.msra.mxu0 %v2290
    %2332 = vmatprep.subr.mxu0 0.0
    %2333 = vmatpush1.msra.mxu0 %v2289
    %2334 = vmatprep.subr.mxu0 0.0
    %2335 = vmatpush1.msra.mxu0 %v2288
    %2336 = vmatprep.subr.mxu0 0.0
    %2337 = vmatpush2.msra.mxu0 0.0
    %2338 = vmatprep.subr.mxu0 0.0
    %2339 = vmatpush2.msra.mxu0 0.0
    %2340 = vmatprep.subr.mxu0 0.0
    %2341 = vmatpush2.msra.mxu0 0.0
    %2342 = vmatprep.subr.mxu0 0.0
    %2343 = vmatpush2.msra.mxu0 0.0
    %2344 = vmatprep.subr.mxu0 0.0
    %2345 = vmatpush2.msra.mxu0 0.0
    %2346 = vmatprep.subr.mxu0 0.0
    %2347 = vmatpush2.msra.mxu0 0.0
    %2348 = vmatprep.subr.mxu0 0.0
    %2349 = vmatpush2.msra.mxu0 0.0
    %2350 = vmatprep.subr.mxu0 0.0
    %2351 = vmatpush2.msra.mxu0 0.0
    %2352 = vmatprep.subr.mxu0 0.0
    %2353 = vmatpush2.msra.mxu0 0.0
    %2354 = vmatprep.subr.mxu0 0.0
    %2355 = vmatpush2.msra.mxu0 0.0
    %2356 = vmatprep.subr.mxu0 0.0
    %2357 = vmatpush2.msra.mxu0 0.0
    %2358 = vmatprep.subr.mxu0 0.0
    %2359 = vmatpush2.msra.mxu0 0.0
    %2360 = vmatprep.subr.mxu0 0.0
    %2361 = vmatpush2.msra.mxu0 0.0
    %2362 = vmatprep.subr.mxu0 0.0
    %2363 = vmatpush2.msra.mxu0 0.0
    %2364 = vmatprep.subr.mxu0 0.0
    %2365 = vmatpush2.msra.mxu0 0.0
    %2366 = vmatprep.subr.mxu0 0.0
    %2367 = vmatpush2.msra.mxu0 0.0
    %2368 = vmatprep.mubr.f32.mxu0 0.0
    %2369 = vmatmul.mubr.f32.gmra.mxu0 %v1924
    %v2370 = vpop.f32.mrf.mxu0
    %v2371 = vadd.f32 0.0, %v2370
    %v2372 = vpop.f32.mrf.mxu0
    %2373 = vdwg.mxu0
    %v2374 = vadd.f32 %v2285, %v2371
    %v2375 = vtanh.pop %v2374
    %2376 = vst [vmem:[#allocation2 + $0x18] sm:$0xff] %v2375
    %v2377 = vld [vmem:[#allocation8] sm:$0xff]
    %v2378 = vld [vmem:[#allocation8 + $0x8] sm:$0xff]
    %v2379 = vld [vmem:[#allocation8 + $0x10] sm:$0xff]
    %v2380 = vld [vmem:[#allocation8 + $0x18] sm:$0xff]
    %v2381 = vld [vmem:[#allocation8 + $0x20] sm:$0xff]
    %v2382 = vld [vmem:[#allocation8 + $0x28] sm:$0xff]
    %v2383 = vld [vmem:[#allocation8 + $0x30] sm:$0xff]
    %v2384 = vld [vmem:[#allocation8 + $0x38] sm:$0xff]
    %v2385 = vld [vmem:[#allocation8 + $0x40] sm:$0xff]
    %v2386 = vld [vmem:[#allocation8 + $0x48] sm:$0xff]
    %v2387 = vld [vmem:[#allocation8 + $0x50] sm:$0xff]
    %v2388 = vld [vmem:[#allocation8 + $0x58] sm:$0xff]
    %v2389 = vld [vmem:[#allocation8 + $0x60] sm:$0xff]
    %v2390 = vld [vmem:[#allocation8 + $0x68] sm:$0xff]
    %v2391 = vld [vmem:[#allocation8 + $0x70] sm:$0xff]
    %v2392 = vld [vmem:[#allocation8 + $0x78] sm:$0xff]
    %2393 = vmatprep.subr.mxu0 0.0
    %2394 = vmatpush1.msra.mxu0 %v2392
    %2395 = vmatprep.subr.mxu0 0.0
    %2396 = vmatpush1.msra.mxu0 %v2391
    %2397 = vmatprep.subr.mxu0 0.0
    %2398 = vmatpush1.msra.mxu0 %v2390
    %2399 = vmatprep.subr.mxu0 0.0
    %2400 = vmatpush1.msra.mxu0 %v2389
    %2401 = vmatprep.subr.mxu0 0.0
    %2402 = vmatpush1.msra.mxu0 %v2388
    %2403 = vmatprep.subr.mxu0 0.0
    %2404 = vmatpush1.msra.mxu0 %v2387
    %2405 = vmatprep.subr.mxu0 0.0
    %2406 = vmatpush1.msra.mxu0 %v2386
    %2407 = vmatprep.subr.mxu0 0.0
    %2408 = vmatpush1.msra.mxu0 %v2385
    %2409 = vmatprep.subr.mxu0 0.0
    %2410 = vmatpush1.msra.mxu0 %v2384
    %2411 = vmatprep.subr.mxu0 0.0
    %2412 = vmatpush1.msra.mxu0 %v2383
    %2413 = vmatprep.subr.mxu0 0.0
    %2414 = vmatpush1.msra.mxu0 %v2382
    %2415 = vmatprep.subr.mxu0 0.0
    %2416 = vmatpush1.msra.mxu0 %v2381
    %2417 = vmatprep.subr.mxu0 0.0
    %2418 = vmatpush1.msra.mxu0 %v2380
    %2419 = vmatprep.subr.mxu0 0.0
    %2420 = vmatpush1.msra.mxu0 %v2379
    %2421 = vmatprep.subr.mxu0 0.0
    %2422 = vmatpush1.msra.mxu0 %v2378
    %2423 = vmatprep.subr.mxu0 0.0
    %2424 = vmatpush1.msra.mxu0 %v2377
    %2425 = vmatprep.subr.mxu0 0.0
    %2426 = vmatpush2.msra.mxu0 0.0
    %2427 = vmatprep.subr.mxu0 0.0
    %2428 = vmatpush2.msra.mxu0 0.0
    %2429 = vmatprep.subr.mxu0 0.0
    %2430 = vmatpush2.msra.mxu0 0.0
    %2431 = vmatprep.subr.mxu0 0.0
    %2432 = vmatpush2.msra.mxu0 0.0
    %2433 = vmatprep.subr.mxu0 0.0
    %2434 = vmatpush2.msra.mxu0 0.0
    %2435 = vmatprep.subr.mxu0 0.0
    %2436 = vmatpush2.msra.mxu0 0.0
    %2437 = vmatprep.subr.mxu0 0.0
    %2438 = vmatpush2.msra.mxu0 0.0
    %2439 = vmatprep.subr.mxu0 0.0
    %2440 = vmatpush2.msra.mxu0 0.0
    %2441 = vmatprep.subr.mxu0 0.0
    %2442 = vmatpush2.msra.mxu0 0.0
    %2443 = vmatprep.subr.mxu0 0.0
    %2444 = vmatpush2.msra.mxu0 0.0
    %2445 = vmatprep.subr.mxu0 0.0
    %2446 = vmatpush2.msra.mxu0 0.0
    %2447 = vmatprep.subr.mxu0 0.0
    %2448 = vmatpush2.msra.mxu0 0.0
    %2449 = vmatprep.subr.mxu0 0.0
    %2450 = vmatpush2.msra.mxu0 0.0
    %2451 = vmatprep.subr.mxu0 0.0
    %2452 = vmatpush2.msra.mxu0 0.0
    %2453 = vmatprep.subr.mxu0 0.0
    %2454 = vmatpush2.msra.mxu0 0.0
    %2455 = vmatprep.subr.mxu0 0.0
    %2456 = vmatpush2.msra.mxu0 0.0
    %2457 = vmatprep.mubr.f32.mxu0 0.0
    %2458 = vmatmul.mubr.f32.gmra.mxu0 %v2013
    %v2459 = vpop.f32.mrf.mxu0
    %v2460 = vadd.f32 0.0, %v2459
    %v2461 = vpop.f32.mrf.mxu0
    %2462 = vdwg.mxu0
    %v2463 = vadd.f32 %v279, %v2460
    %v2464 = vtanh.pop %v2463
    %v2465 = vld [vmem:[#allocation9] sm:$0xff]
    %v2466 = vld [vmem:[#allocation9 + $0x8] sm:$0xff]
    %v2467 = vld [vmem:[#allocation9 + $0x10] sm:$0xff]
    %v2468 = vld [vmem:[#allocation9 + $0x18] sm:$0xff]
    %v2469 = vld [vmem:[#allocation9 + $0x20] sm:$0xff]
    %v2470 = vld [vmem:[#allocation9 + $0x28] sm:$0xff]
    %v2471 = vld [vmem:[#allocation9 + $0x30] sm:$0xff]
    %v2472 = vld [vmem:[#allocation9 + $0x38] sm:$0xff]
    %v2473 = vld [vmem:[#allocation9 + $0x40] sm:$0xff]
    %v2474 = vld [vmem:[#allocation9 + $0x48] sm:$0xff]
    %v2475 = vld [vmem:[#allocation9 + $0x50] sm:$0xff]
    %v2476 = vld [vmem:[#allocation9 + $0x58] sm:$0xff]
    %v2477 = vld [vmem:[#allocation9 + $0x60] sm:$0xff]
    %v2478 = vld [vmem:[#allocation9 + $0x68] sm:$0xff]
    %v2479 = vld [vmem:[#allocation9 + $0x70] sm:$0xff]
    %v2480 = vld [vmem:[#allocation9 + $0x78] sm:$0xff]
    %v2481 = vld [vmem:[%s6] sm:$0x1]
    %v2483 = vlaneseq
    %v2484 = vshrl.u32 %v2483, 7
    %v2485 = vsub.s32 0, %v2484
    %v2486 = vrot.slane %v2481, %v2485
    %2488 = vmatprep.subr.mxu0 0.0
    %2489 = vmatpush1.msra.mxu0 %v2480
    %2490 = vmatprep.subr.mxu0 0.0
    %2491 = vmatpush1.msra.mxu0 %v2479
    %2492 = vmatprep.subr.mxu0 0.0
    %2493 = vmatpush1.msra.mxu0 %v2478
    %2494 = vmatprep.subr.mxu0 0.0
    %2495 = vmatpush1.msra.mxu0 %v2477
    %2496 = vmatprep.subr.mxu0 0.0
    %2497 = vmatpush1.msra.mxu0 %v2476
    %2498 = vmatprep.subr.mxu0 0.0
    %2499 = vmatpush1.msra.mxu0 %v2475
    %2500 = vmatprep.subr.mxu0 0.0
    %2501 = vmatpush1.msra.mxu0 %v2474
    %2502 = vmatprep.subr.mxu0 0.0
    %2503 = vmatpush1.msra.mxu0 %v2473
    %2504 = vmatprep.subr.mxu0 0.0
    %2505 = vmatpush1.msra.mxu0 %v2472
    %2506 = vmatprep.subr.mxu0 0.0
    %2507 = vmatpush1.msra.mxu0 %v2471
    %2508 = vmatprep.subr.mxu0 0.0
    %2509 = vmatpush1.msra.mxu0 %v2470
    %2510 = vmatprep.subr.mxu0 0.0
    %2511 = vmatpush1.msra.mxu0 %v2469
    %2512 = vmatprep.subr.mxu0 0.0
    %2513 = vmatpush1.msra.mxu0 %v2468
    %2514 = vmatprep.subr.mxu0 0.0
    %2515 = vmatpush1.msra.mxu0 %v2467
    %2516 = vmatprep.subr.mxu0 0.0
    %2517 = vmatpush1.msra.mxu0 %v2466
    %2518 = vmatprep.subr.mxu0 0.0
    %2519 = vmatpush1.msra.mxu0 %v2465
    %2520 = vmatprep.subr.mxu0 0.0
    %2521 = vmatpush2.msra.mxu0 0.0
    %2522 = vmatprep.subr.mxu0 0.0
    %2523 = vmatpush2.msra.mxu0 0.0
    %2524 = vmatprep.subr.mxu0 0.0
    %2525 = vmatpush2.msra.mxu0 0.0
    %2526 = vmatprep.subr.mxu0 0.0
    %2527 = vmatpush2.msra.mxu0 0.0
    %2528 = vmatprep.subr.mxu0 0.0
    %2529 = vmatpush2.msra.mxu0 0.0
    %2530 = vmatprep.subr.mxu0 0.0
    %2531 = vmatpush2.msra.mxu0 0.0
    %2532 = vmatprep.subr.mxu0 0.0
    %2533 = vmatpush2.msra.mxu0 0.0
    %2534 = vmatprep.subr.mxu0 0.0
    %2535 = vmatpush2.msra.mxu0 0.0
    %2536 = vmatprep.subr.mxu0 0.0
    %2537 = vmatpush2.msra.mxu0 0.0
    %2538 = vmatprep.subr.mxu0 0.0
    %2539 = vmatpush2.msra.mxu0 0.0
    %2540 = vmatprep.subr.mxu0 0.0
    %2541 = vmatpush2.msra.mxu0 0.0
    %2542 = vmatprep.subr.mxu0 0.0
    %2543 = vmatpush2.msra.mxu0 0.0
    %2544 = vmatprep.subr.mxu0 0.0
    %2545 = vmatpush2.msra.mxu0 0.0
    %2546 = vmatprep.subr.mxu0 0.0
    %2547 = vmatpush2.msra.mxu0 0.0
    %2548 = vmatprep.subr.mxu0 0.0
    %2549 = vmatpush2.msra.mxu0 0.0
    %2550 = vmatprep.subr.mxu0 0.0
    %2551 = vmatpush2.msra.mxu0 0.0
    %2552 = vmatprep.mubr.f32.mxu0 0.0
    %2553 = vmatmul.mubr.f32.gmra.mxu0 %v2013
    %v2554 = vpop.f32.mrf.mxu0
    %v2555 = vadd.f32 %v2486, %v2554
    %v2556 = vpop.f32.mrf.mxu0
    %2557 = vdwg.mxu0
    %v2558 = vld [vmem:[#allocation11] sm:$0xff]
    %v2559 = vld [vmem:[#allocation11 + $0x8] sm:$0xff]
    %v2560 = vld [vmem:[#allocation11 + $0x10] sm:$0xff]
    %v2561 = vld [vmem:[#allocation11 + $0x18] sm:$0xff]
    %v2562 = vld [vmem:[#allocation11 + $0x20] sm:$0xff]
    %v2563 = vld [vmem:[#allocation11 + $0x28] sm:$0xff]
    %v2564 = vld [vmem:[#allocation11 + $0x30] sm:$0xff]
    %v2565 = vld [vmem:[#allocation11 + $0x38] sm:$0xff]
    %v2566 = vld [vmem:[#allocation11 + $0x40] sm:$0xff]
    %v2567 = vld [vmem:[#allocation11 + $0x48] sm:$0xff]
    %v2568 = vld [vmem:[#allocation11 + $0x50] sm:$0xff]
    %v2569 = vld [vmem:[#allocation11 + $0x58] sm:$0xff]
    %v2570 = vld [vmem:[#allocation11 + $0x60] sm:$0xff]
    %v2571 = vld [vmem:[#allocation11 + $0x68] sm:$0xff]
    %v2572 = vld [vmem:[#allocation11 + $0x70] sm:$0xff]
    %v2573 = vld [vmem:[#allocation11 + $0x78] sm:$0xff]
    %2574 = vmatprep.subr.mxu0 0.0
    %2575 = vmatpush1.msra.mxu0 %v2573
    %2576 = vmatprep.subr.mxu0 0.0
    %2577 = vmatpush1.msra.mxu0 %v2572
    %2578 = vmatprep.subr.mxu0 0.0
    %2579 = vmatpush1.msra.mxu0 %v2571
    %2580 = vmatprep.subr.mxu0 0.0
    %2581 = vmatpush1.msra.mxu0 %v2570
    %2582 = vmatprep.subr.mxu0 0.0
    %2583 = vmatpush1.msra.mxu0 %v2569
    %2584 = vmatprep.subr.mxu0 0.0
    %2585 = vmatpush1.msra.mxu0 %v2568
    %2586 = vmatprep.subr.mxu0 0.0
    %2587 = vmatpush1.msra.mxu0 %v2567
    %2588 = vmatprep.subr.mxu0 0.0
    %2589 = vmatpush1.msra.mxu0 %v2566
    %2590 = vmatprep.subr.mxu0 0.0
    %2591 = vmatpush1.msra.mxu0 %v2565
    %2592 = vmatprep.subr.mxu0 0.0
    %2593 = vmatpush1.msra.mxu0 %v2564
    %2594 = vmatprep.subr.mxu0 0.0
    %2595 = vmatpush1.msra.mxu0 %v2563
    %2596 = vmatprep.subr.mxu0 0.0
    %2597 = vmatpush1.msra.mxu0 %v2562
    %2598 = vmatprep.subr.mxu0 0.0
    %2599 = vmatpush1.msra.mxu0 %v2561
    %2600 = vmatprep.subr.mxu0 0.0
    %2601 = vmatpush1.msra.mxu0 %v2560
    %2602 = vmatprep.subr.mxu0 0.0
    %2603 = vmatpush1.msra.mxu0 %v2559
    %2604 = vmatprep.subr.mxu0 0.0
    %2605 = vmatpush1.msra.mxu0 %v2558
    %2606 = vmatprep.subr.mxu0 0.0
    %2607 = vmatpush2.msra.mxu0 0.0
    %2608 = vmatprep.subr.mxu0 0.0
    %2609 = vmatpush2.msra.mxu0 0.0
    %2610 = vmatprep.subr.mxu0 0.0
    %2611 = vmatpush2.msra.mxu0 0.0
    %2612 = vmatprep.subr.mxu0 0.0
    %2613 = vmatpush2.msra.mxu0 0.0
    %2614 = vmatprep.subr.mxu0 0.0
    %2615 = vmatpush2.msra.mxu0 0.0
    %2616 = vmatprep.subr.mxu0 0.0
    %2617 = vmatpush2.msra.mxu0 0.0
    %2618 = vmatprep.subr.mxu0 0.0
    %2619 = vmatpush2.msra.mxu0 0.0
    %2620 = vmatprep.subr.mxu0 0.0
    %2621 = vmatpush2.msra.mxu0 0.0
    %2622 = vmatprep.subr.mxu0 0.0
    %2623 = vmatpush2.msra.mxu0 0.0
    %2624 = vmatprep.subr.mxu0 0.0
    %2625 = vmatpush2.msra.mxu0 0.0
    %2626 = vmatprep.subr.mxu0 0.0
    %2627 = vmatpush2.msra.mxu0 0.0
    %2628 = vmatprep.subr.mxu0 0.0
    %2629 = vmatpush2.msra.mxu0 0.0
    %2630 = vmatprep.subr.mxu0 0.0
    %2631 = vmatpush2.msra.mxu0 0.0
    %2632 = vmatprep.subr.mxu0 0.0
    %2633 = vmatpush2.msra.mxu0 0.0
    %2634 = vmatprep.subr.mxu0 0.0
    %2635 = vmatpush2.msra.mxu0 0.0
    %2636 = vmatprep.subr.mxu0 0.0
    %2637 = vmatpush2.msra.mxu0 0.0
    %2638 = vmatprep.mubr.f32.mxu0 0.0
    %2639 = vmatmul.mubr.f32.gmra.mxu0 %v2194
    %v2640 = vpop.f32.mrf.mxu0
    %v2641 = vadd.f32 0.0, %v2640
    %v2642 = vpop.f32.mrf.mxu0
    %2643 = vdwg.mxu0
    %v2644 = vadd.f32 %v2555, %v2641
    %v2645 = vtanh.pop %v2644
    %v2646 = vld [vmem:[#allocation12] sm:$0xff]
    %v2647 = vld [vmem:[#allocation12 + $0x8] sm:$0xff]
    %v2648 = vld [vmem:[#allocation12 + $0x10] sm:$0xff]
    %v2649 = vld [vmem:[#allocation12 + $0x18] sm:$0xff]
    %v2650 = vld [vmem:[#allocation12 + $0x20] sm:$0xff]
    %v2651 = vld [vmem:[#allocation12 + $0x28] sm:$0xff]
    %v2652 = vld [vmem:[#allocation12 + $0x30] sm:$0xff]
    %v2653 = vld [vmem:[#allocation12 + $0x38] sm:$0xff]
    %v2654 = vld [vmem:[#allocation12 + $0x40] sm:$0xff]
    %v2655 = vld [vmem:[#allocation12 + $0x48] sm:$0xff]
    %v2656 = vld [vmem:[#allocation12 + $0x50] sm:$0xff]
    %v2657 = vld [vmem:[#allocation12 + $0x58] sm:$0xff]
    %v2658 = vld [vmem:[#allocation12 + $0x60] sm:$0xff]
    %v2659 = vld [vmem:[#allocation12 + $0x68] sm:$0xff]
    %v2660 = vld [vmem:[#allocation12 + $0x70] sm:$0xff]
    %v2661 = vld [vmem:[#allocation12 + $0x78] sm:$0xff]
    %v2662 = vld [vmem:[%s9] sm:$0x1]
    %v2664 = vlaneseq
    %v2665 = vshrl.u32 %v2664, 7
    %v2666 = vsub.s32 0, %v2665
    %v2667 = vrot.slane %v2662, %v2666
    %2669 = vmatprep.subr.mxu0 0.0
    %2670 = vmatpush1.msra.mxu0 %v2661
    %2671 = vmatprep.subr.mxu0 0.0
    %2672 = vmatpush1.msra.mxu0 %v2660
    %2673 = vmatprep.subr.mxu0 0.0
    %2674 = vmatpush1.msra.mxu0 %v2659
    %2675 = vmatprep.subr.mxu0 0.0
    %2676 = vmatpush1.msra.mxu0 %v2658
    %2677 = vmatprep.subr.mxu0 0.0
    %2678 = vmatpush1.msra.mxu0 %v2657
    %2679 = vmatprep.subr.mxu0 0.0
    %2680 = vmatpush1.msra.mxu0 %v2656
    %2681 = vmatprep.subr.mxu0 0.0
    %2682 = vmatpush1.msra.mxu0 %v2655
    %2683 = vmatprep.subr.mxu0 0.0
    %2684 = vmatpush1.msra.mxu0 %v2654
    %2685 = vmatprep.subr.mxu0 0.0
    %2686 = vmatpush1.msra.mxu0 %v2653
    %2687 = vmatprep.subr.mxu0 0.0
    %2688 = vmatpush1.msra.mxu0 %v2652
    %2689 = vmatprep.subr.mxu0 0.0
    %2690 = vmatpush1.msra.mxu0 %v2651
    %2691 = vmatprep.subr.mxu0 0.0
    %2692 = vmatpush1.msra.mxu0 %v2650
    %2693 = vmatprep.subr.mxu0 0.0
    %2694 = vmatpush1.msra.mxu0 %v2649
    %2695 = vmatprep.subr.mxu0 0.0
    %2696 = vmatpush1.msra.mxu0 %v2648
    %2697 = vmatprep.subr.mxu0 0.0
    %2698 = vmatpush1.msra.mxu0 %v2647
    %2699 = vmatprep.subr.mxu0 0.0
    %2700 = vmatpush1.msra.mxu0 %v2646
    %2701 = vmatprep.subr.mxu0 0.0
    %2702 = vmatpush2.msra.mxu0 0.0
    %2703 = vmatprep.subr.mxu0 0.0
    %2704 = vmatpush2.msra.mxu0 0.0
    %2705 = vmatprep.subr.mxu0 0.0
    %2706 = vmatpush2.msra.mxu0 0.0
    %2707 = vmatprep.subr.mxu0 0.0
    %2708 = vmatpush2.msra.mxu0 0.0
    %2709 = vmatprep.subr.mxu0 0.0
    %2710 = vmatpush2.msra.mxu0 0.0
    %2711 = vmatprep.subr.mxu0 0.0
    %2712 = vmatpush2.msra.mxu0 0.0
    %2713 = vmatprep.subr.mxu0 0.0
    %2714 = vmatpush2.msra.mxu0 0.0
    %2715 = vmatprep.subr.mxu0 0.0
    %2716 = vmatpush2.msra.mxu0 0.0
    %2717 = vmatprep.subr.mxu0 0.0
    %2718 = vmatpush2.msra.mxu0 0.0
    %2719 = vmatprep.subr.mxu0 0.0
    %2720 = vmatpush2.msra.mxu0 0.0
    %2721 = vmatprep.subr.mxu0 0.0
    %2722 = vmatpush2.msra.mxu0 0.0
    %2723 = vmatprep.subr.mxu0 0.0
    %2724 = vmatpush2.msra.mxu0 0.0
    %2725 = vmatprep.subr.mxu0 0.0
    %2726 = vmatpush2.msra.mxu0 0.0
    %2727 = vmatprep.subr.mxu0 0.0
    %2728 = vmatpush2.msra.mxu0 0.0
    %2729 = vmatprep.subr.mxu0 0.0
    %2730 = vmatpush2.msra.mxu0 0.0
    %2731 = vmatprep.subr.mxu0 0.0
    %2732 = vmatpush2.msra.mxu0 0.0
    %2733 = vmatprep.mubr.f32.mxu0 0.0
    %2734 = vmatmul.mubr.f32.gmra.mxu0 %v2194
    %v2735 = vpop.f32.mrf.mxu0
    %v2736 = vadd.f32 %v2667, %v2735
    %v2737 = vpop.f32.mrf.mxu0
    %2738 = vdwg.mxu0
    %v2739 = vld [vmem:[#allocation14] sm:$0xff]
    %v2740 = vld [vmem:[#allocation14 + $0x8] sm:$0xff]
    %v2741 = vld [vmem:[#allocation14 + $0x10] sm:$0xff]
    %v2742 = vld [vmem:[#allocation14 + $0x18] sm:$0xff]
    %v2743 = vld [vmem:[#allocation14 + $0x20] sm:$0xff]
    %v2744 = vld [vmem:[#allocation14 + $0x28] sm:$0xff]
    %v2745 = vld [vmem:[#allocation14 + $0x30] sm:$0xff]
    %v2746 = vld [vmem:[#allocation14 + $0x38] sm:$0xff]
    %v2747 = vld [vmem:[#allocation14 + $0x40] sm:$0xff]
    %v2748 = vld [vmem:[#allocation14 + $0x48] sm:$0xff]
    %v2749 = vld [vmem:[#allocation14 + $0x50] sm:$0xff]
    %v2750 = vld [vmem:[#allocation14 + $0x58] sm:$0xff]
    %v2751 = vld [vmem:[#allocation14 + $0x60] sm:$0xff]
    %v2752 = vld [vmem:[#allocation14 + $0x68] sm:$0xff]
    %v2753 = vld [vmem:[#allocation14 + $0x70] sm:$0xff]
    %v2754 = vld [vmem:[#allocation14 + $0x78] sm:$0xff]
    %2755 = vmatprep.subr.mxu0 0.0
    %2756 = vmatpush1.msra.mxu0 %v2754
    %2757 = vmatprep.subr.mxu0 0.0
    %2758 = vmatpush1.msra.mxu0 %v2753
    %2759 = vmatprep.subr.mxu0 0.0
    %2760 = vmatpush1.msra.mxu0 %v2752
    %2761 = vmatprep.subr.mxu0 0.0
    %2762 = vmatpush1.msra.mxu0 %v2751
    %2763 = vmatprep.subr.mxu0 0.0
    %2764 = vmatpush1.msra.mxu0 %v2750
    %2765 = vmatprep.subr.mxu0 0.0
    %2766 = vmatpush1.msra.mxu0 %v2749
    %2767 = vmatprep.subr.mxu0 0.0
    %2768 = vmatpush1.msra.mxu0 %v2748
    %2769 = vmatprep.subr.mxu0 0.0
    %2770 = vmatpush1.msra.mxu0 %v2747
    %2771 = vmatprep.subr.mxu0 0.0
    %2772 = vmatpush1.msra.mxu0 %v2746
    %2773 = vmatprep.subr.mxu0 0.0
    %2774 = vmatpush1.msra.mxu0 %v2745
    %2775 = vmatprep.subr.mxu0 0.0
    %2776 = vmatpush1.msra.mxu0 %v2744
    %2777 = vmatprep.subr.mxu0 0.0
    %2778 = vmatpush1.msra.mxu0 %v2743
    %2779 = vmatprep.subr.mxu0 0.0
    %2780 = vmatpush1.msra.mxu0 %v2742
    %2781 = vmatprep.subr.mxu0 0.0
    %2782 = vmatpush1.msra.mxu0 %v2741
    %2783 = vmatprep.subr.mxu0 0.0
    %2784 = vmatpush1.msra.mxu0 %v2740
    %2785 = vmatprep.subr.mxu0 0.0
    %2786 = vmatpush1.msra.mxu0 %v2739
    %2787 = vmatprep.subr.mxu0 0.0
    %2788 = vmatpush2.msra.mxu0 0.0
    %2789 = vmatprep.subr.mxu0 0.0
    %2790 = vmatpush2.msra.mxu0 0.0
    %2791 = vmatprep.subr.mxu0 0.0
    %2792 = vmatpush2.msra.mxu0 0.0
    %2793 = vmatprep.subr.mxu0 0.0
    %2794 = vmatpush2.msra.mxu0 0.0
    %2795 = vmatprep.subr.mxu0 0.0
    %2796 = vmatpush2.msra.mxu0 0.0
    %2797 = vmatprep.subr.mxu0 0.0
    %2798 = vmatpush2.msra.mxu0 0.0
    %2799 = vmatprep.subr.mxu0 0.0
    %2800 = vmatpush2.msra.mxu0 0.0
    %2801 = vmatprep.subr.mxu0 0.0
    %2802 = vmatpush2.msra.mxu0 0.0
    %2803 = vmatprep.subr.mxu0 0.0
    %2804 = vmatpush2.msra.mxu0 0.0
    %2805 = vmatprep.subr.mxu0 0.0
    %2806 = vmatpush2.msra.mxu0 0.0
    %2807 = vmatprep.subr.mxu0 0.0
    %2808 = vmatpush2.msra.mxu0 0.0
    %2809 = vmatprep.subr.mxu0 0.0
    %2810 = vmatpush2.msra.mxu0 0.0
    %2811 = vmatprep.subr.mxu0 0.0
    %2812 = vmatpush2.msra.mxu0 0.0
    %2813 = vmatprep.subr.mxu0 0.0
    %2814 = vmatpush2.msra.mxu0 0.0
    %2815 = vmatprep.subr.mxu0 0.0
    %2816 = vmatpush2.msra.mxu0 0.0
    %2817 = vmatprep.subr.mxu0 0.0
    %2818 = vmatpush2.msra.mxu0 0.0
    %2819 = vmatprep.mubr.f32.mxu0 0.0
    %2820 = vmatmul.mubr.f32.gmra.mxu0 %v2375
    %v2821 = vpop.f32.mrf.mxu0
    %v2822 = vadd.f32 0.0, %v2821
    %v2823 = vpop.f32.mrf.mxu0
    %2824 = vdwg.mxu0
    %v2825 = vadd.f32 %v2736, %v2822
    %v2826 = vtanh.pop %v2825
    %2827 = vst [vmem:[#allocation2 + $0x20] sm:$0xff] %v2826
    %v2828 = vld [vmem:[#allocation8] sm:$0xff]
    %v2829 = vld [vmem:[#allocation8 + $0x8] sm:$0xff]
    %v2830 = vld [vmem:[#allocation8 + $0x10] sm:$0xff]
    %v2831 = vld [vmem:[#allocation8 + $0x18] sm:$0xff]
    %v2832 = vld [vmem:[#allocation8 + $0x20] sm:$0xff]
    %v2833 = vld [vmem:[#allocation8 + $0x28] sm:$0xff]
    %v2834 = vld [vmem:[#allocation8 + $0x30] sm:$0xff]
    %v2835 = vld [vmem:[#allocation8 + $0x38] sm:$0xff]
    %v2836 = vld [vmem:[#allocation8 + $0x40] sm:$0xff]
    %v2837 = vld [vmem:[#allocation8 + $0x48] sm:$0xff]
    %v2838 = vld [vmem:[#allocation8 + $0x50] sm:$0xff]
    %v2839 = vld [vmem:[#allocation8 + $0x58] sm:$0xff]
    %v2840 = vld [vmem:[#allocation8 + $0x60] sm:$0xff]
    %v2841 = vld [vmem:[#allocation8 + $0x68] sm:$0xff]
    %v2842 = vld [vmem:[#allocation8 + $0x70] sm:$0xff]
    %v2843 = vld [vmem:[#allocation8 + $0x78] sm:$0xff]
    %2844 = vmatprep.subr.mxu0 0.0
    %2845 = vmatpush1.msra.mxu0 %v2843
    %2846 = vmatprep.subr.mxu0 0.0
    %2847 = vmatpush1.msra.mxu0 %v2842
    %2848 = vmatprep.subr.mxu0 0.0
    %2849 = vmatpush1.msra.mxu0 %v2841
    %2850 = vmatprep.subr.mxu0 0.0
    %2851 = vmatpush1.msra.mxu0 %v2840
    %2852 = vmatprep.subr.mxu0 0.0
    %2853 = vmatpush1.msra.mxu0 %v2839
    %2854 = vmatprep.subr.mxu0 0.0
    %2855 = vmatpush1.msra.mxu0 %v2838
    %2856 = vmatprep.subr.mxu0 0.0
    %2857 = vmatpush1.msra.mxu0 %v2837
    %2858 = vmatprep.subr.mxu0 0.0
    %2859 = vmatpush1.msra.mxu0 %v2836
    %2860 = vmatprep.subr.mxu0 0.0
    %2861 = vmatpush1.msra.mxu0 %v2835
    %2862 = vmatprep.subr.mxu0 0.0
    %2863 = vmatpush1.msra.mxu0 %v2834
    %2864 = vmatprep.subr.mxu0 0.0
    %2865 = vmatpush1.msra.mxu0 %v2833
    %2866 = vmatprep.subr.mxu0 0.0
    %2867 = vmatpush1.msra.mxu0 %v2832
    %2868 = vmatprep.subr.mxu0 0.0
    %2869 = vmatpush1.msra.mxu0 %v2831
    %2870 = vmatprep.subr.mxu0 0.0
    %2871 = vmatpush1.msra.mxu0 %v2830
    %2872 = vmatprep.subr.mxu0 0.0
    %2873 = vmatpush1.msra.mxu0 %v2829
    %2874 = vmatprep.subr.mxu0 0.0
    %2875 = vmatpush1.msra.mxu0 %v2828
    %2876 = vmatprep.subr.mxu0 0.0
    %2877 = vmatpush2.msra.mxu0 0.0
    %2878 = vmatprep.subr.mxu0 0.0
    %2879 = vmatpush2.msra.mxu0 0.0
    %2880 = vmatprep.subr.mxu0 0.0
    %2881 = vmatpush2.msra.mxu0 0.0
    %2882 = vmatprep.subr.mxu0 0.0
    %2883 = vmatpush2.msra.mxu0 0.0
    %2884 = vmatprep.subr.mxu0 0.0
    %2885 = vmatpush2.msra.mxu0 0.0
    %2886 = vmatprep.subr.mxu0 0.0
    %2887 = vmatpush2.msra.mxu0 0.0
    %2888 = vmatprep.subr.mxu0 0.0
    %2889 = vmatpush2.msra.mxu0 0.0
    %2890 = vmatprep.subr.mxu0 0.0
    %2891 = vmatpush2.msra.mxu0 0.0
    %2892 = vmatprep.subr.mxu0 0.0
    %2893 = vmatpush2.msra.mxu0 0.0
    %2894 = vmatprep.subr.mxu0 0.0
    %2895 = vmatpush2.msra.mxu0 0.0
    %2896 = vmatprep.subr.mxu0 0.0
    %2897 = vmatpush2.msra.mxu0 0.0
    %2898 = vmatprep.subr.mxu0 0.0
    %2899 = vmatpush2.msra.mxu0 0.0
    %2900 = vmatprep.subr.mxu0 0.0
    %2901 = vmatpush2.msra.mxu0 0.0
    %2902 = vmatprep.subr.mxu0 0.0
    %2903 = vmatpush2.msra.mxu0 0.0
    %2904 = vmatprep.subr.mxu0 0.0
    %2905 = vmatpush2.msra.mxu0 0.0
    %2906 = vmatprep.subr.mxu0 0.0
    %2907 = vmatpush2.msra.mxu0 0.0
    %2908 = vmatprep.mubr.f32.mxu0 0.0
    %2909 = vmatmul.mubr.f32.gmra.mxu0 %v2464
    %v2910 = vpop.f32.mrf.mxu0
    %v2911 = vadd.f32 0.0, %v2910
    %v2912 = vpop.f32.mrf.mxu0
    %2913 = vdwg.mxu0
    %v2914 = vadd.f32 %v284, %v2911
    %v2915 = vtanh.pop %v2914
    %v2916 = vld [vmem:[#allocation9] sm:$0xff]
    %v2917 = vld [vmem:[#allocation9 + $0x8] sm:$0xff]
    %v2918 = vld [vmem:[#allocation9 + $0x10] sm:$0xff]
    %v2919 = vld [vmem:[#allocation9 + $0x18] sm:$0xff]
    %v2920 = vld [vmem:[#allocation9 + $0x20] sm:$0xff]
    %v2921 = vld [vmem:[#allocation9 + $0x28] sm:$0xff]
    %v2922 = vld [vmem:[#allocation9 + $0x30] sm:$0xff]
    %v2923 = vld [vmem:[#allocation9 + $0x38] sm:$0xff]
    %v2924 = vld [vmem:[#allocation9 + $0x40] sm:$0xff]
    %v2925 = vld [vmem:[#allocation9 + $0x48] sm:$0xff]
    %v2926 = vld [vmem:[#allocation9 + $0x50] sm:$0xff]
    %v2927 = vld [vmem:[#allocation9 + $0x58] sm:$0xff]
    %v2928 = vld [vmem:[#allocation9 + $0x60] sm:$0xff]
    %v2929 = vld [vmem:[#allocation9 + $0x68] sm:$0xff]
    %v2930 = vld [vmem:[#allocation9 + $0x70] sm:$0xff]
    %v2931 = vld [vmem:[#allocation9 + $0x78] sm:$0xff]
    %v2932 = vld [vmem:[%s6] sm:$0x1]
    %v2934 = vlaneseq
    %v2935 = vshrl.u32 %v2934, 7
    %v2936 = vsub.s32 0, %v2935
    %v2937 = vrot.slane %v2932, %v2936
    %2939 = vmatprep.subr.mxu0 0.0
    %2940 = vmatpush1.msra.mxu0 %v2931
    %2941 = vmatprep.subr.mxu0 0.0
    %2942 = vmatpush1.msra.mxu0 %v2930
    %2943 = vmatprep.subr.mxu0 0.0
    %2944 = vmatpush1.msra.mxu0 %v2929
    %2945 = vmatprep.subr.mxu0 0.0
    %2946 = vmatpush1.msra.mxu0 %v2928
    %2947 = vmatprep.subr.mxu0 0.0
    %2948 = vmatpush1.msra.mxu0 %v2927
    %2949 = vmatprep.subr.mxu0 0.0
    %2950 = vmatpush1.msra.mxu0 %v2926
    %2951 = vmatprep.subr.mxu0 0.0
    %2952 = vmatpush1.msra.mxu0 %v2925
    %2953 = vmatprep.subr.mxu0 0.0
    %2954 = vmatpush1.msra.mxu0 %v2924
    %2955 = vmatprep.subr.mxu0 0.0
    %2956 = vmatpush1.msra.mxu0 %v2923
    %2957 = vmatprep.subr.mxu0 0.0
    %2958 = vmatpush1.msra.mxu0 %v2922
    %2959 = vmatprep.subr.mxu0 0.0
    %2960 = vmatpush1.msra.mxu0 %v2921
    %2961 = vmatprep.subr.mxu0 0.0
    %2962 = vmatpush1.msra.mxu0 %v2920
    %2963 = vmatprep.subr.mxu0 0.0
    %2964 = vmatpush1.msra.mxu0 %v2919
    %2965 = vmatprep.subr.mxu0 0.0
    %2966 = vmatpush1.msra.mxu0 %v2918
    %2967 = vmatprep.subr.mxu0 0.0
    %2968 = vmatpush1.msra.mxu0 %v2917
    %2969 = vmatprep.subr.mxu0 0.0
    %2970 = vmatpush1.msra.mxu0 %v2916
    %2971 = vmatprep.subr.mxu0 0.0
    %2972 = vmatpush2.msra.mxu0 0.0
    %2973 = vmatprep.subr.mxu0 0.0
    %2974 = vmatpush2.msra.mxu0 0.0
    %2975 = vmatprep.subr.mxu0 0.0
    %2976 = vmatpush2.msra.mxu0 0.0
    %2977 = vmatprep.subr.mxu0 0.0
    %2978 = vmatpush2.msra.mxu0 0.0
    %2979 = vmatprep.subr.mxu0 0.0
    %2980 = vmatpush2.msra.mxu0 0.0
    %2981 = vmatprep.subr.mxu0 0.0
    %2982 = vmatpush2.msra.mxu0 0.0
    %2983 = vmatprep.subr.mxu0 0.0
    %2984 = vmatpush2.msra.mxu0 0.0
    %2985 = vmatprep.subr.mxu0 0.0
    %2986 = vmatpush2.msra.mxu0 0.0
    %2987 = vmatprep.subr.mxu0 0.0
    %2988 = vmatpush2.msra.mxu0 0.0
    %2989 = vmatprep.subr.mxu0 0.0
    %2990 = vmatpush2.msra.mxu0 0.0
    %2991 = vmatprep.subr.mxu0 0.0
    %2992 = vmatpush2.msra.mxu0 0.0
    %2993 = vmatprep.subr.mxu0 0.0
    %2994 = vmatpush2.msra.mxu0 0.0
    %2995 = vmatprep.subr.mxu0 0.0
    %2996 = vmatpush2.msra.mxu0 0.0
    %2997 = vmatprep.subr.mxu0 0.0
    %2998 = vmatpush2.msra.mxu0 0.0
    %2999 = vmatprep.subr.mxu0 0.0
    %3000 = vmatpush2.msra.mxu0 0.0
    %3001 = vmatprep.subr.mxu0 0.0
    %3002 = vmatpush2.msra.mxu0 0.0
    %3003 = vmatprep.mubr.f32.mxu0 0.0
    %3004 = vmatmul.mubr.f32.gmra.mxu0 %v2464
    %v3005 = vpop.f32.mrf.mxu0
    %v3006 = vadd.f32 %v2937, %v3005
    %v3007 = vpop.f32.mrf.mxu0
    %3008 = vdwg.mxu0
    %v3009 = vld [vmem:[#allocation11] sm:$0xff]
    %v3010 = vld [vmem:[#allocation11 + $0x8] sm:$0xff]
    %v3011 = vld [vmem:[#allocation11 + $0x10] sm:$0xff]
    %v3012 = vld [vmem:[#allocation11 + $0x18] sm:$0xff]
    %v3013 = vld [vmem:[#allocation11 + $0x20] sm:$0xff]
    %v3014 = vld [vmem:[#allocation11 + $0x28] sm:$0xff]
    %v3015 = vld [vmem:[#allocation11 + $0x30] sm:$0xff]
    %v3016 = vld [vmem:[#allocation11 + $0x38] sm:$0xff]
    %v3017 = vld [vmem:[#allocation11 + $0x40] sm:$0xff]
    %v3018 = vld [vmem:[#allocation11 + $0x48] sm:$0xff]
    %v3019 = vld [vmem:[#allocation11 + $0x50] sm:$0xff]
    %v3020 = vld [vmem:[#allocation11 + $0x58] sm:$0xff]
    %v3021 = vld [vmem:[#allocation11 + $0x60] sm:$0xff]
    %v3022 = vld [vmem:[#allocation11 + $0x68] sm:$0xff]
    %v3023 = vld [vmem:[#allocation11 + $0x70] sm:$0xff]
    %v3024 = vld [vmem:[#allocation11 + $0x78] sm:$0xff]
    %3025 = vmatprep.subr.mxu0 0.0
    %3026 = vmatpush1.msra.mxu0 %v3024
    %3027 = vmatprep.subr.mxu0 0.0
    %3028 = vmatpush1.msra.mxu0 %v3023
    %3029 = vmatprep.subr.mxu0 0.0
    %3030 = vmatpush1.msra.mxu0 %v3022
    %3031 = vmatprep.subr.mxu0 0.0
    %3032 = vmatpush1.msra.mxu0 %v3021
    %3033 = vmatprep.subr.mxu0 0.0
    %3034 = vmatpush1.msra.mxu0 %v3020
    %3035 = vmatprep.subr.mxu0 0.0
    %3036 = vmatpush1.msra.mxu0 %v3019
    %3037 = vmatprep.subr.mxu0 0.0
    %3038 = vmatpush1.msra.mxu0 %v3018
    %3039 = vmatprep.subr.mxu0 0.0
    %3040 = vmatpush1.msra.mxu0 %v3017
    %3041 = vmatprep.subr.mxu0 0.0
    %3042 = vmatpush1.msra.mxu0 %v3016
    %3043 = vmatprep.subr.mxu0 0.0
    %3044 = vmatpush1.msra.mxu0 %v3015
    %3045 = vmatprep.subr.mxu0 0.0
    %3046 = vmatpush1.msra.mxu0 %v3014
    %3047 = vmatprep.subr.mxu0 0.0
    %3048 = vmatpush1.msra.mxu0 %v3013
    %3049 = vmatprep.subr.mxu0 0.0
    %3050 = vmatpush1.msra.mxu0 %v3012
    %3051 = vmatprep.subr.mxu0 0.0
    %3052 = vmatpush1.msra.mxu0 %v3011
    %3053 = vmatprep.subr.mxu0 0.0
    %3054 = vmatpush1.msra.mxu0 %v3010
    %3055 = vmatprep.subr.mxu0 0.0
    %3056 = vmatpush1.msra.mxu0 %v3009
    %3057 = vmatprep.subr.mxu0 0.0
    %3058 = vmatpush2.msra.mxu0 0.0
    %3059 = vmatprep.subr.mxu0 0.0
    %3060 = vmatpush2.msra.mxu0 0.0
    %3061 = vmatprep.subr.mxu0 0.0
    %3062 = vmatpush2.msra.mxu0 0.0
    %3063 = vmatprep.subr.mxu0 0.0
    %3064 = vmatpush2.msra.mxu0 0.0
    %3065 = vmatprep.subr.mxu0 0.0
    %3066 = vmatpush2.msra.mxu0 0.0
    %3067 = vmatprep.subr.mxu0 0.0
    %3068 = vmatpush2.msra.mxu0 0.0
    %3069 = vmatprep.subr.mxu0 0.0
    %3070 = vmatpush2.msra.mxu0 0.0
    %3071 = vmatprep.subr.mxu0 0.0
    %3072 = vmatpush2.msra.mxu0 0.0
    %3073 = vmatprep.subr.mxu0 0.0
    %3074 = vmatpush2.msra.mxu0 0.0
    %3075 = vmatprep.subr.mxu0 0.0
    %3076 = vmatpush2.msra.mxu0 0.0
    %3077 = vmatprep.subr.mxu0 0.0
    %3078 = vmatpush2.msra.mxu0 0.0
    %3079 = vmatprep.subr.mxu0 0.0
    %3080 = vmatpush2.msra.mxu0 0.0
    %3081 = vmatprep.subr.mxu0 0.0
    %3082 = vmatpush2.msra.mxu0 0.0
    %3083 = vmatprep.subr.mxu0 0.0
    %3084 = vmatpush2.msra.mxu0 0.0
    %3085 = vmatprep.subr.mxu0 0.0
    %3086 = vmatpush2.msra.mxu0 0.0
    %3087 = vmatprep.subr.mxu0 0.0
    %3088 = vmatpush2.msra.mxu0 0.0
    %3089 = vmatprep.mubr.f32.mxu0 0.0
    %3090 = vmatmul.mubr.f32.gmra.mxu0 %v2645
    %v3091 = vpop.f32.mrf.mxu0
    %v3092 = vadd.f32 0.0, %v3091
    %v3093 = vpop.f32.mrf.mxu0
    %3094 = vdwg.mxu0
    %v3095 = vadd.f32 %v3006, %v3092
    %v3096 = vtanh.pop %v3095
    %v3097 = vld [vmem:[#allocation12] sm:$0xff]
    %v3098 = vld [vmem:[#allocation12 + $0x8] sm:$0xff]
    %v3099 = vld [vmem:[#allocation12 + $0x10] sm:$0xff]
    %v3100 = vld [vmem:[#allocation12 + $0x18] sm:$0xff]
    %v3101 = vld [vmem:[#allocation12 + $0x20] sm:$0xff]
    %v3102 = vld [vmem:[#allocation12 + $0x28] sm:$0xff]
    %v3103 = vld [vmem:[#allocation12 + $0x30] sm:$0xff]
    %v3104 = vld [vmem:[#allocation12 + $0x38] sm:$0xff]
    %v3105 = vld [vmem:[#allocation12 + $0x40] sm:$0xff]
    %v3106 = vld [vmem:[#allocation12 + $0x48] sm:$0xff]
    %v3107 = vld [vmem:[#allocation12 + $0x50] sm:$0xff]
    %v3108 = vld [vmem:[#allocation12 + $0x58] sm:$0xff]
    %v3109 = vld [vmem:[#allocation12 + $0x60] sm:$0xff]
    %v3110 = vld [vmem:[#allocation12 + $0x68] sm:$0xff]
    %v3111 = vld [vmem:[#allocation12 + $0x70] sm:$0xff]
    %v3112 = vld [vmem:[#allocation12 + $0x78] sm:$0xff]
    %v3113 = vld [vmem:[%s9] sm:$0x1]
    %v3115 = vlaneseq
    %v3116 = vshrl.u32 %v3115, 7
    %v3117 = vsub.s32 0, %v3116
    %v3118 = vrot.slane %v3113, %v3117
    %3120 = vmatprep.subr.mxu0 0.0
    %3121 = vmatpush1.msra.mxu0 %v3112
    %3122 = vmatprep.subr.mxu0 0.0
    %3123 = vmatpush1.msra.mxu0 %v3111
    %3124 = vmatprep.subr.mxu0 0.0
    %3125 = vmatpush1.msra.mxu0 %v3110
    %3126 = vmatprep.subr.mxu0 0.0
    %3127 = vmatpush1.msra.mxu0 %v3109
    %3128 = vmatprep.subr.mxu0 0.0
    %3129 = vmatpush1.msra.mxu0 %v3108
    %3130 = vmatprep.subr.mxu0 0.0
    %3131 = vmatpush1.msra.mxu0 %v3107
    %3132 = vmatprep.subr.mxu0 0.0
    %3133 = vmatpush1.msra.mxu0 %v3106
    %3134 = vmatprep.subr.mxu0 0.0
    %3135 = vmatpush1.msra.mxu0 %v3105
    %3136 = vmatprep.subr.mxu0 0.0
    %3137 = vmatpush1.msra.mxu0 %v3104
    %3138 = vmatprep.subr.mxu0 0.0
    %3139 = vmatpush1.msra.mxu0 %v3103
    %3140 = vmatprep.subr.mxu0 0.0
    %3141 = vmatpush1.msra.mxu0 %v3102
    %3142 = vmatprep.subr.mxu0 0.0
    %3143 = vmatpush1.msra.mxu0 %v3101
    %3144 = vmatprep.subr.mxu0 0.0
    %3145 = vmatpush1.msra.mxu0 %v3100
    %3146 = vmatprep.subr.mxu0 0.0
    %3147 = vmatpush1.msra.mxu0 %v3099
    %3148 = vmatprep.subr.mxu0 0.0
    %3149 = vmatpush1.msra.mxu0 %v3098
    %3150 = vmatprep.subr.mxu0 0.0
    %3151 = vmatpush1.msra.mxu0 %v3097
    %3152 = vmatprep.subr.mxu0 0.0
    %3153 = vmatpush2.msra.mxu0 0.0
    %3154 = vmatprep.subr.mxu0 0.0
    %3155 = vmatpush2.msra.mxu0 0.0
    %3156 = vmatprep.subr.mxu0 0.0
    %3157 = vmatpush2.msra.mxu0 0.0
    %3158 = vmatprep.subr.mxu0 0.0
    %3159 = vmatpush2.msra.mxu0 0.0
    %3160 = vmatprep.subr.mxu0 0.0
    %3161 = vmatpush2.msra.mxu0 0.0
    %3162 = vmatprep.subr.mxu0 0.0
    %3163 = vmatpush2.msra.mxu0 0.0
    %3164 = vmatprep.subr.mxu0 0.0
    %3165 = vmatpush2.msra.mxu0 0.0
    %3166 = vmatprep.subr.mxu0 0.0
    %3167 = vmatpush2.msra.mxu0 0.0
    %3168 = vmatprep.subr.mxu0 0.0
    %3169 = vmatpush2.msra.mxu0 0.0
    %3170 = vmatprep.subr.mxu0 0.0
    %3171 = vmatpush2.msra.mxu0 0.0
    %3172 = vmatprep.subr.mxu0 0.0
    %3173 = vmatpush2.msra.mxu0 0.0
    %3174 = vmatprep.subr.mxu0 0.0
    %3175 = vmatpush2.msra.mxu0 0.0
    %3176 = vmatprep.subr.mxu0 0.0
    %3177 = vmatpush2.msra.mxu0 0.0
    %3178 = vmatprep.subr.mxu0 0.0
    %3179 = vmatpush2.msra.mxu0 0.0
    %3180 = vmatprep.subr.mxu0 0.0
    %3181 = vmatpush2.msra.mxu0 0.0
    %3182 = vmatprep.subr.mxu0 0.0
    %3183 = vmatpush2.msra.mxu0 0.0
    %3184 = vmatprep.mubr.f32.mxu0 0.0
    %3185 = vmatmul.mubr.f32.gmra.mxu0 %v2645
    %v3186 = vpop.f32.mrf.mxu0
    %v3187 = vadd.f32 %v3118, %v3186
    %v3188 = vpop.f32.mrf.mxu0
    %3189 = vdwg.mxu0
    %v3190 = vld [vmem:[#allocation14] sm:$0xff]
    %v3191 = vld [vmem:[#allocation14 + $0x8] sm:$0xff]
    %v3192 = vld [vmem:[#allocation14 + $0x10] sm:$0xff]
    %v3193 = vld [vmem:[#allocation14 + $0x18] sm:$0xff]
    %v3194 = vld [vmem:[#allocation14 + $0x20] sm:$0xff]
    %v3195 = vld [vmem:[#allocation14 + $0x28] sm:$0xff]
    %v3196 = vld [vmem:[#allocation14 + $0x30] sm:$0xff]
    %v3197 = vld [vmem:[#allocation14 + $0x38] sm:$0xff]
    %v3198 = vld [vmem:[#allocation14 + $0x40] sm:$0xff]
    %v3199 = vld [vmem:[#allocation14 + $0x48] sm:$0xff]
    %v3200 = vld [vmem:[#allocation14 + $0x50] sm:$0xff]
    %v3201 = vld [vmem:[#allocation14 + $0x58] sm:$0xff]
    %v3202 = vld [vmem:[#allocation14 + $0x60] sm:$0xff]
    %v3203 = vld [vmem:[#allocation14 + $0x68] sm:$0xff]
    %v3204 = vld [vmem:[#allocation14 + $0x70] sm:$0xff]
    %v3205 = vld [vmem:[#allocation14 + $0x78] sm:$0xff]
    %3206 = vmatprep.subr.mxu0 0.0
    %3207 = vmatpush1.msra.mxu0 %v3205
    %3208 = vmatprep.subr.mxu0 0.0
    %3209 = vmatpush1.msra.mxu0 %v3204
    %3210 = vmatprep.subr.mxu0 0.0
    %3211 = vmatpush1.msra.mxu0 %v3203
    %3212 = vmatprep.subr.mxu0 0.0
    %3213 = vmatpush1.msra.mxu0 %v3202
    %3214 = vmatprep.subr.mxu0 0.0
    %3215 = vmatpush1.msra.mxu0 %v3201
    %3216 = vmatprep.subr.mxu0 0.0
    %3217 = vmatpush1.msra.mxu0 %v3200
    %3218 = vmatprep.subr.mxu0 0.0
    %3219 = vmatpush1.msra.mxu0 %v3199
    %3220 = vmatprep.subr.mxu0 0.0
    %3221 = vmatpush1.msra.mxu0 %v3198
    %3222 = vmatprep.subr.mxu0 0.0
    %3223 = vmatpush1.msra.mxu0 %v3197
    %3224 = vmatprep.subr.mxu0 0.0
    %3225 = vmatpush1.msra.mxu0 %v3196
    %3226 = vmatprep.subr.mxu0 0.0
    %3227 = vmatpush1.msra.mxu0 %v3195
    %3228 = vmatprep.subr.mxu0 0.0
    %3229 = vmatpush1.msra.mxu0 %v3194
    %3230 = vmatprep.subr.mxu0 0.0
    %3231 = vmatpush1.msra.mxu0 %v3193
    %3232 = vmatprep.subr.mxu0 0.0
    %3233 = vmatpush1.msra.mxu0 %v3192
    %3234 = vmatprep.subr.mxu0 0.0
    %3235 = vmatpush1.msra.mxu0 %v3191
    %3236 = vmatprep.subr.mxu0 0.0
    %3237 = vmatpush1.msra.mxu0 %v3190
    %3238 = vmatprep.subr.mxu0 0.0
    %3239 = vmatpush2.msra.mxu0 0.0
    %3240 = vmatprep.subr.mxu0 0.0
    %3241 = vmatpush2.msra.mxu0 0.0
    %3242 = vmatprep.subr.mxu0 0.0
    %3243 = vmatpush2.msra.mxu0 0.0
    %3244 = vmatprep.subr.mxu0 0.0
    %3245 = vmatpush2.msra.mxu0 0.0
    %3246 = vmatprep.subr.mxu0 0.0
    %3247 = vmatpush2.msra.mxu0 0.0
    %3248 = vmatprep.subr.mxu0 0.0
    %3249 = vmatpush2.msra.mxu0 0.0
    %3250 = vmatprep.subr.mxu0 0.0
    %3251 = vmatpush2.msra.mxu0 0.0
    %3252 = vmatprep.subr.mxu0 0.0
    %3253 = vmatpush2.msra.mxu0 0.0
    %3254 = vmatprep.subr.mxu0 0.0
    %3255 = vmatpush2.msra.mxu0 0.0
    %3256 = vmatprep.subr.mxu0 0.0
    %3257 = vmatpush2.msra.mxu0 0.0
    %3258 = vmatprep.subr.mxu0 0.0
    %3259 = vmatpush2.msra.mxu0 0.0
    %3260 = vmatprep.subr.mxu0 0.0
    %3261 = vmatpush2.msra.mxu0 0.0
    %3262 = vmatprep.subr.mxu0 0.0
    %3263 = vmatpush2.msra.mxu0 0.0
    %3264 = vmatprep.subr.mxu0 0.0
    %3265 = vmatpush2.msra.mxu0 0.0
    %3266 = vmatprep.subr.mxu0 0.0
    %3267 = vmatpush2.msra.mxu0 0.0
    %3268 = vmatprep.subr.mxu0 0.0
    %3269 = vmatpush2.msra.mxu0 0.0
    %3270 = vmatprep.mubr.f32.mxu0 0.0
    %3271 = vmatmul.mubr.f32.gmra.mxu0 %v2826
    %v3272 = vpop.f32.mrf.mxu0
    %v3273 = vadd.f32 0.0, %v3272
    %v3274 = vpop.f32.mrf.mxu0
    %3275 = vdwg.mxu0
    %v3276 = vadd.f32 %v3187, %v3273
    %v3277 = vtanh.pop %v3276
    %3278 = vst [vmem:[#allocation2 + $0x28] sm:$0xff] %v3277
    %v3279 = vld [vmem:[#allocation9] sm:$0xff]
    %v3280 = vld [vmem:[#allocation9 + $0x8] sm:$0xff]
    %v3281 = vld [vmem:[#allocation9 + $0x10] sm:$0xff]
    %v3282 = vld [vmem:[#allocation9 + $0x18] sm:$0xff]
    %v3283 = vld [vmem:[#allocation9 + $0x20] sm:$0xff]
    %v3284 = vld [vmem:[#allocation9 + $0x28] sm:$0xff]
    %v3285 = vld [vmem:[#allocation9 + $0x30] sm:$0xff]
    %v3286 = vld [vmem:[#allocation9 + $0x38] sm:$0xff]
    %v3287 = vld [vmem:[#allocation9 + $0x40] sm:$0xff]
    %v3288 = vld [vmem:[#allocation9 + $0x48] sm:$0xff]
    %v3289 = vld [vmem:[#allocation9 + $0x50] sm:$0xff]
    %v3290 = vld [vmem:[#allocation9 + $0x58] sm:$0xff]
    %v3291 = vld [vmem:[#allocation9 + $0x60] sm:$0xff]
    %v3292 = vld [vmem:[#allocation9 + $0x68] sm:$0xff]
    %v3293 = vld [vmem:[#allocation9 + $0x70] sm:$0xff]
    %v3294 = vld [vmem:[#allocation9 + $0x78] sm:$0xff]
    %v3295 = vld [vmem:[%s6] sm:$0x1]
    %v3297 = vlaneseq
    %v3298 = vshrl.u32 %v3297, 7
    %v3299 = vsub.s32 0, %v3298
    %v3300 = vrot.slane %v3295, %v3299
    %3302 = vmatprep.subr.mxu0 0.0
    %3303 = vmatpush1.msra.mxu0 %v3294
    %3304 = vmatprep.subr.mxu0 0.0
    %3305 = vmatpush1.msra.mxu0 %v3293
    %3306 = vmatprep.subr.mxu0 0.0
    %3307 = vmatpush1.msra.mxu0 %v3292
    %3308 = vmatprep.subr.mxu0 0.0
    %3309 = vmatpush1.msra.mxu0 %v3291
    %3310 = vmatprep.subr.mxu0 0.0
    %3311 = vmatpush1.msra.mxu0 %v3290
    %3312 = vmatprep.subr.mxu0 0.0
    %3313 = vmatpush1.msra.mxu0 %v3289
    %3314 = vmatprep.subr.mxu0 0.0
    %3315 = vmatpush1.msra.mxu0 %v3288
    %3316 = vmatprep.subr.mxu0 0.0
    %3317 = vmatpush1.msra.mxu0 %v3287
    %3318 = vmatprep.subr.mxu0 0.0
    %3319 = vmatpush1.msra.mxu0 %v3286
    %3320 = vmatprep.subr.mxu0 0.0
    %3321 = vmatpush1.msra.mxu0 %v3285
    %3322 = vmatprep.subr.mxu0 0.0
    %3323 = vmatpush1.msra.mxu0 %v3284
    %3324 = vmatprep.subr.mxu0 0.0
    %3325 = vmatpush1.msra.mxu0 %v3283
    %3326 = vmatprep.subr.mxu0 0.0
    %3327 = vmatpush1.msra.mxu0 %v3282
    %3328 = vmatprep.subr.mxu0 0.0
    %3329 = vmatpush1.msra.mxu0 %v3281
    %3330 = vmatprep.subr.mxu0 0.0
    %3331 = vmatpush1.msra.mxu0 %v3280
    %3332 = vmatprep.subr.mxu0 0.0
    %3333 = vmatpush1.msra.mxu0 %v3279
    %3334 = vmatprep.subr.mxu0 0.0
    %3335 = vmatpush2.msra.mxu0 0.0
    %3336 = vmatprep.subr.mxu0 0.0
    %3337 = vmatpush2.msra.mxu0 0.0
    %3338 = vmatprep.subr.mxu0 0.0
    %3339 = vmatpush2.msra.mxu0 0.0
    %3340 = vmatprep.subr.mxu0 0.0
    %3341 = vmatpush2.msra.mxu0 0.0
    %3342 = vmatprep.subr.mxu0 0.0
    %3343 = vmatpush2.msra.mxu0 0.0
    %3344 = vmatprep.subr.mxu0 0.0
    %3345 = vmatpush2.msra.mxu0 0.0
    %3346 = vmatprep.subr.mxu0 0.0
    %3347 = vmatpush2.msra.mxu0 0.0
    %3348 = vmatprep.subr.mxu0 0.0
    %3349 = vmatpush2.msra.mxu0 0.0
    %3350 = vmatprep.subr.mxu0 0.0
    %3351 = vmatpush2.msra.mxu0 0.0
    %3352 = vmatprep.subr.mxu0 0.0
    %3353 = vmatpush2.msra.mxu0 0.0
    %3354 = vmatprep.subr.mxu0 0.0
    %3355 = vmatpush2.msra.mxu0 0.0
    %3356 = vmatprep.subr.mxu0 0.0
    %3357 = vmatpush2.msra.mxu0 0.0
    %3358 = vmatprep.subr.mxu0 0.0
    %3359 = vmatpush2.msra.mxu0 0.0
    %3360 = vmatprep.subr.mxu0 0.0
    %3361 = vmatpush2.msra.mxu0 0.0
    %3362 = vmatprep.subr.mxu0 0.0
    %3363 = vmatpush2.msra.mxu0 0.0
    %3364 = vmatprep.subr.mxu0 0.0
    %3365 = vmatpush2.msra.mxu0 0.0
    %3366 = vmatprep.mubr.f32.mxu0 0.0
    %3367 = vmatmul.mubr.f32.gmra.mxu0 %v2915
    %v3368 = vpop.f32.mrf.mxu0
    %v3369 = vadd.f32 %v3300, %v3368
    %v3370 = vpop.f32.mrf.mxu0
    %3371 = vdwg.mxu0
    %v3372 = vld [vmem:[#allocation11] sm:$0xff]
    %v3373 = vld [vmem:[#allocation11 + $0x8] sm:$0xff]
    %v3374 = vld [vmem:[#allocation11 + $0x10] sm:$0xff]
    %v3375 = vld [vmem:[#allocation11 + $0x18] sm:$0xff]
    %v3376 = vld [vmem:[#allocation11 + $0x20] sm:$0xff]
    %v3377 = vld [vmem:[#allocation11 + $0x28] sm:$0xff]
    %v3378 = vld [vmem:[#allocation11 + $0x30] sm:$0xff]
    %v3379 = vld [vmem:[#allocation11 + $0x38] sm:$0xff]
    %v3380 = vld [vmem:[#allocation11 + $0x40] sm:$0xff]
    %v3381 = vld [vmem:[#allocation11 + $0x48] sm:$0xff]
    %v3382 = vld [vmem:[#allocation11 + $0x50] sm:$0xff]
    %v3383 = vld [vmem:[#allocation11 + $0x58] sm:$0xff]
    %v3384 = vld [vmem:[#allocation11 + $0x60] sm:$0xff]
    %v3385 = vld [vmem:[#allocation11 + $0x68] sm:$0xff]
    %v3386 = vld [vmem:[#allocation11 + $0x70] sm:$0xff]
    %v3387 = vld [vmem:[#allocation11 + $0x78] sm:$0xff]
    %3388 = vmatprep.subr.mxu0 0.0
    %3389 = vmatpush1.msra.mxu0 %v3387
    %3390 = vmatprep.subr.mxu0 0.0
    %3391 = vmatpush1.msra.mxu0 %v3386
    %3392 = vmatprep.subr.mxu0 0.0
    %3393 = vmatpush1.msra.mxu0 %v3385
    %3394 = vmatprep.subr.mxu0 0.0
    %3395 = vmatpush1.msra.mxu0 %v3384
    %3396 = vmatprep.subr.mxu0 0.0
    %3397 = vmatpush1.msra.mxu0 %v3383
    %3398 = vmatprep.subr.mxu0 0.0
    %3399 = vmatpush1.msra.mxu0 %v3382
    %3400 = vmatprep.subr.mxu0 0.0
    %3401 = vmatpush1.msra.mxu0 %v3381
    %3402 = vmatprep.subr.mxu0 0.0
    %3403 = vmatpush1.msra.mxu0 %v3380
    %3404 = vmatprep.subr.mxu0 0.0
    %3405 = vmatpush1.msra.mxu0 %v3379
    %3406 = vmatprep.subr.mxu0 0.0
    %3407 = vmatpush1.msra.mxu0 %v3378
    %3408 = vmatprep.subr.mxu0 0.0
    %3409 = vmatpush1.msra.mxu0 %v3377
    %3410 = vmatprep.subr.mxu0 0.0
    %3411 = vmatpush1.msra.mxu0 %v3376
    %3412 = vmatprep.subr.mxu0 0.0
    %3413 = vmatpush1.msra.mxu0 %v3375
    %3414 = vmatprep.subr.mxu0 0.0
    %3415 = vmatpush1.msra.mxu0 %v3374
    %3416 = vmatprep.subr.mxu0 0.0
    %3417 = vmatpush1.msra.mxu0 %v3373
    %3418 = vmatprep.subr.mxu0 0.0
    %3419 = vmatpush1.msra.mxu0 %v3372
    %3420 = vmatprep.subr.mxu0 0.0
    %3421 = vmatpush2.msra.mxu0 0.0
    %3422 = vmatprep.subr.mxu0 0.0
    %3423 = vmatpush2.msra.mxu0 0.0
    %3424 = vmatprep.subr.mxu0 0.0
    %3425 = vmatpush2.msra.mxu0 0.0
    %3426 = vmatprep.subr.mxu0 0.0
    %3427 = vmatpush2.msra.mxu0 0.0
    %3428 = vmatprep.subr.mxu0 0.0
    %3429 = vmatpush2.msra.mxu0 0.0
    %3430 = vmatprep.subr.mxu0 0.0
    %3431 = vmatpush2.msra.mxu0 0.0
    %3432 = vmatprep.subr.mxu0 0.0
    %3433 = vmatpush2.msra.mxu0 0.0
    %3434 = vmatprep.subr.mxu0 0.0
    %3435 = vmatpush2.msra.mxu0 0.0
    %3436 = vmatprep.subr.mxu0 0.0
    %3437 = vmatpush2.msra.mxu0 0.0
    %3438 = vmatprep.subr.mxu0 0.0
    %3439 = vmatpush2.msra.mxu0 0.0
    %3440 = vmatprep.subr.mxu0 0.0
    %3441 = vmatpush2.msra.mxu0 0.0
    %3442 = vmatprep.subr.mxu0 0.0
    %3443 = vmatpush2.msra.mxu0 0.0
    %3444 = vmatprep.subr.mxu0 0.0
    %3445 = vmatpush2.msra.mxu0 0.0
    %3446 = vmatprep.subr.mxu0 0.0
    %3447 = vmatpush2.msra.mxu0 0.0
    %3448 = vmatprep.subr.mxu0 0.0
    %3449 = vmatpush2.msra.mxu0 0.0
    %3450 = vmatprep.subr.mxu0 0.0
    %3451 = vmatpush2.msra.mxu0 0.0
    %3452 = vmatprep.mubr.f32.mxu0 0.0
    %3453 = vmatmul.mubr.f32.gmra.mxu0 %v3096
    %v3454 = vpop.f32.mrf.mxu0
    %v3455 = vadd.f32 0.0, %v3454
    %v3456 = vpop.f32.mrf.mxu0
    %3457 = vdwg.mxu0
    %v3458 = vadd.f32 %v3369, %v3455
    %v3459 = vtanh.pop %v3458
    %v3460 = vld [vmem:[#allocation12] sm:$0xff]
    %v3461 = vld [vmem:[#allocation12 + $0x8] sm:$0xff]
    %v3462 = vld [vmem:[#allocation12 + $0x10] sm:$0xff]
    %v3463 = vld [vmem:[#allocation12 + $0x18] sm:$0xff]
    %v3464 = vld [vmem:[#allocation12 + $0x20] sm:$0xff]
    %v3465 = vld [vmem:[#allocation12 + $0x28] sm:$0xff]
    %v3466 = vld [vmem:[#allocation12 + $0x30] sm:$0xff]
    %v3467 = vld [vmem:[#allocation12 + $0x38] sm:$0xff]
    %v3468 = vld [vmem:[#allocation12 + $0x40] sm:$0xff]
    %v3469 = vld [vmem:[#allocation12 + $0x48] sm:$0xff]
    %v3470 = vld [vmem:[#allocation12 + $0x50] sm:$0xff]
    %v3471 = vld [vmem:[#allocation12 + $0x58] sm:$0xff]
    %v3472 = vld [vmem:[#allocation12 + $0x60] sm:$0xff]
    %v3473 = vld [vmem:[#allocation12 + $0x68] sm:$0xff]
    %v3474 = vld [vmem:[#allocation12 + $0x70] sm:$0xff]
    %v3475 = vld [vmem:[#allocation12 + $0x78] sm:$0xff]
    %v3476 = vld [vmem:[%s9] sm:$0x1]
    %v3478 = vlaneseq
    %v3479 = vshrl.u32 %v3478, 7
    %v3480 = vsub.s32 0, %v3479
    %v3481 = vrot.slane %v3476, %v3480
    %3483 = vmatprep.subr.mxu0 0.0
    %3484 = vmatpush1.msra.mxu0 %v3475
    %3485 = vmatprep.subr.mxu0 0.0
    %3486 = vmatpush1.msra.mxu0 %v3474
    %3487 = vmatprep.subr.mxu0 0.0
    %3488 = vmatpush1.msra.mxu0 %v3473
    %3489 = vmatprep.subr.mxu0 0.0
    %3490 = vmatpush1.msra.mxu0 %v3472
    %3491 = vmatprep.subr.mxu0 0.0
    %3492 = vmatpush1.msra.mxu0 %v3471
    %3493 = vmatprep.subr.mxu0 0.0
    %3494 = vmatpush1.msra.mxu0 %v3470
    %3495 = vmatprep.subr.mxu0 0.0
    %3496 = vmatpush1.msra.mxu0 %v3469
    %3497 = vmatprep.subr.mxu0 0.0
    %3498 = vmatpush1.msra.mxu0 %v3468
    %3499 = vmatprep.subr.mxu0 0.0
    %3500 = vmatpush1.msra.mxu0 %v3467
    %3501 = vmatprep.subr.mxu0 0.0
    %3502 = vmatpush1.msra.mxu0 %v3466
    %3503 = vmatprep.subr.mxu0 0.0
    %3504 = vmatpush1.msra.mxu0 %v3465
    %3505 = vmatprep.subr.mxu0 0.0
    %3506 = vmatpush1.msra.mxu0 %v3464
    %3507 = vmatprep.subr.mxu0 0.0
    %3508 = vmatpush1.msra.mxu0 %v3463
    %3509 = vmatprep.subr.mxu0 0.0
    %3510 = vmatpush1.msra.mxu0 %v3462
    %3511 = vmatprep.subr.mxu0 0.0
    %3512 = vmatpush1.msra.mxu0 %v3461
    %3513 = vmatprep.subr.mxu0 0.0
    %3514 = vmatpush1.msra.mxu0 %v3460
    %3515 = vmatprep.subr.mxu0 0.0
    %3516 = vmatpush2.msra.mxu0 0.0
    %3517 = vmatprep.subr.mxu0 0.0
    %3518 = vmatpush2.msra.mxu0 0.0
    %3519 = vmatprep.subr.mxu0 0.0
    %3520 = vmatpush2.msra.mxu0 0.0
    %3521 = vmatprep.subr.mxu0 0.0
    %3522 = vmatpush2.msra.mxu0 0.0
    %3523 = vmatprep.subr.mxu0 0.0
    %3524 = vmatpush2.msra.mxu0 0.0
    %3525 = vmatprep.subr.mxu0 0.0
    %3526 = vmatpush2.msra.mxu0 0.0
    %3527 = vmatprep.subr.mxu0 0.0
    %3528 = vmatpush2.msra.mxu0 0.0
    %3529 = vmatprep.subr.mxu0 0.0
    %3530 = vmatpush2.msra.mxu0 0.0
    %3531 = vmatprep.subr.mxu0 0.0
    %3532 = vmatpush2.msra.mxu0 0.0
    %3533 = vmatprep.subr.mxu0 0.0
    %3534 = vmatpush2.msra.mxu0 0.0
    %3535 = vmatprep.subr.mxu0 0.0
    %3536 = vmatpush2.msra.mxu0 0.0
    %3537 = vmatprep.subr.mxu0 0.0
    %3538 = vmatpush2.msra.mxu0 0.0
    %3539 = vmatprep.subr.mxu0 0.0
    %3540 = vmatpush2.msra.mxu0 0.0
    %3541 = vmatprep.subr.mxu0 0.0
    %3542 = vmatpush2.msra.mxu0 0.0
    %3543 = vmatprep.subr.mxu0 0.0
    %3544 = vmatpush2.msra.mxu0 0.0
    %3545 = vmatprep.subr.mxu0 0.0
    %3546 = vmatpush2.msra.mxu0 0.0
    %3547 = vmatprep.mubr.f32.mxu0 0.0
    %3548 = vmatmul.mubr.f32.gmra.mxu0 %v3096
    %v3549 = vpop.f32.mrf.mxu0
    %v3550 = vadd.f32 %v3481, %v3549
    %v3551 = vpop.f32.mrf.mxu0
    %3552 = vdwg.mxu0
    %v3553 = vld [vmem:[#allocation14] sm:$0xff]
    %v3554 = vld [vmem:[#allocation14 + $0x8] sm:$0xff]
    %v3555 = vld [vmem:[#allocation14 + $0x10] sm:$0xff]
    %v3556 = vld [vmem:[#allocation14 + $0x18] sm:$0xff]
    %v3557 = vld [vmem:[#allocation14 + $0x20] sm:$0xff]
    %v3558 = vld [vmem:[#allocation14 + $0x28] sm:$0xff]
    %v3559 = vld [vmem:[#allocation14 + $0x30] sm:$0xff]
    %v3560 = vld [vmem:[#allocation14 + $0x38] sm:$0xff]
    %v3561 = vld [vmem:[#allocation14 + $0x40] sm:$0xff]
    %v3562 = vld [vmem:[#allocation14 + $0x48] sm:$0xff]
    %v3563 = vld [vmem:[#allocation14 + $0x50] sm:$0xff]
    %v3564 = vld [vmem:[#allocation14 + $0x58] sm:$0xff]
    %v3565 = vld [vmem:[#allocation14 + $0x60] sm:$0xff]
    %v3566 = vld [vmem:[#allocation14 + $0x68] sm:$0xff]
    %v3567 = vld [vmem:[#allocation14 + $0x70] sm:$0xff]
    %v3568 = vld [vmem:[#allocation14 + $0x78] sm:$0xff]
    %3569 = vmatprep.subr.mxu0 0.0
    %3570 = vmatpush1.msra.mxu0 %v3568
    %3571 = vmatprep.subr.mxu0 0.0
    %3572 = vmatpush1.msra.mxu0 %v3567
    %3573 = vmatprep.subr.mxu0 0.0
    %3574 = vmatpush1.msra.mxu0 %v3566
    %3575 = vmatprep.subr.mxu0 0.0
    %3576 = vmatpush1.msra.mxu0 %v3565
    %3577 = vmatprep.subr.mxu0 0.0
    %3578 = vmatpush1.msra.mxu0 %v3564
    %3579 = vmatprep.subr.mxu0 0.0
    %3580 = vmatpush1.msra.mxu0 %v3563
    %3581 = vmatprep.subr.mxu0 0.0
    %3582 = vmatpush1.msra.mxu0 %v3562
    %3583 = vmatprep.subr.mxu0 0.0
    %3584 = vmatpush1.msra.mxu0 %v3561
    %3585 = vmatprep.subr.mxu0 0.0
    %3586 = vmatpush1.msra.mxu0 %v3560
    %3587 = vmatprep.subr.mxu0 0.0
    %3588 = vmatpush1.msra.mxu0 %v3559
    %3589 = vmatprep.subr.mxu0 0.0
    %3590 = vmatpush1.msra.mxu0 %v3558
    %3591 = vmatprep.subr.mxu0 0.0
    %3592 = vmatpush1.msra.mxu0 %v3557
    %3593 = vmatprep.subr.mxu0 0.0
    %3594 = vmatpush1.msra.mxu0 %v3556
    %3595 = vmatprep.subr.mxu0 0.0
    %3596 = vmatpush1.msra.mxu0 %v3555
    %3597 = vmatprep.subr.mxu0 0.0
    %3598 = vmatpush1.msra.mxu0 %v3554
    %3599 = vmatprep.subr.mxu0 0.0
    %3600 = vmatpush1.msra.mxu0 %v3553
    %3601 = vmatprep.subr.mxu0 0.0
    %3602 = vmatpush2.msra.mxu0 0.0
    %3603 = vmatprep.subr.mxu0 0.0
    %3604 = vmatpush2.msra.mxu0 0.0
    %3605 = vmatprep.subr.mxu0 0.0
    %3606 = vmatpush2.msra.mxu0 0.0
    %3607 = vmatprep.subr.mxu0 0.0
    %3608 = vmatpush2.msra.mxu0 0.0
    %3609 = vmatprep.subr.mxu0 0.0
    %3610 = vmatpush2.msra.mxu0 0.0
    %3611 = vmatprep.subr.mxu0 0.0
    %3612 = vmatpush2.msra.mxu0 0.0
    %3613 = vmatprep.subr.mxu0 0.0
    %3614 = vmatpush2.msra.mxu0 0.0
    %3615 = vmatprep.subr.mxu0 0.0
    %3616 = vmatpush2.msra.mxu0 0.0
    %3617 = vmatprep.subr.mxu0 0.0
    %3618 = vmatpush2.msra.mxu0 0.0
    %3619 = vmatprep.subr.mxu0 0.0
    %3620 = vmatpush2.msra.mxu0 0.0
    %3621 = vmatprep.subr.mxu0 0.0
    %3622 = vmatpush2.msra.mxu0 0.0
    %3623 = vmatprep.subr.mxu0 0.0
    %3624 = vmatpush2.msra.mxu0 0.0
    %3625 = vmatprep.subr.mxu0 0.0
    %3626 = vmatpush2.msra.mxu0 0.0
    %3627 = vmatprep.subr.mxu0 0.0
    %3628 = vmatpush2.msra.mxu0 0.0
    %3629 = vmatprep.subr.mxu0 0.0
    %3630 = vmatpush2.msra.mxu0 0.0
    %3631 = vmatprep.subr.mxu0 0.0
    %3632 = vmatpush2.msra.mxu0 0.0
    %3633 = vmatprep.mubr.f32.mxu0 0.0
    %3634 = vmatmul.mubr.f32.gmra.mxu0 %v3277
    %v3635 = vpop.f32.mrf.mxu0
    %v3636 = vadd.f32 0.0, %v3635
    %v3637 = vpop.f32.mrf.mxu0
    %3638 = vdwg.mxu0
    %v3639 = vadd.f32 %v3550, %v3636
    %v3640 = vtanh.pop %v3639
    %3641 = vst [vmem:[#allocation2 + $0x30] sm:$0xff] %v3640
    %v3642 = vld [vmem:[#allocation12] sm:$0xff]
    %v3643 = vld [vmem:[#allocation12 + $0x8] sm:$0xff]
    %v3644 = vld [vmem:[#allocation12 + $0x10] sm:$0xff]
    %v3645 = vld [vmem:[#allocation12 + $0x18] sm:$0xff]
    %v3646 = vld [vmem:[#allocation12 + $0x20] sm:$0xff]
    %v3647 = vld [vmem:[#allocation12 + $0x28] sm:$0xff]
    %v3648 = vld [vmem:[#allocation12 + $0x30] sm:$0xff]
    %v3649 = vld [vmem:[#allocation12 + $0x38] sm:$0xff]
    %v3650 = vld [vmem:[#allocation12 + $0x40] sm:$0xff]
    %v3651 = vld [vmem:[#allocation12 + $0x48] sm:$0xff]
    %v3652 = vld [vmem:[#allocation12 + $0x50] sm:$0xff]
    %v3653 = vld [vmem:[#allocation12 + $0x58] sm:$0xff]
    %v3654 = vld [vmem:[#allocation12 + $0x60] sm:$0xff]
    %v3655 = vld [vmem:[#allocation12 + $0x68] sm:$0xff]
    %v3656 = vld [vmem:[#allocation12 + $0x70] sm:$0xff]
    %v3657 = vld [vmem:[#allocation12 + $0x78] sm:$0xff]
    %v3658 = vld [vmem:[%s9] sm:$0x1]
    %v3660 = vlaneseq
    %v3661 = vshrl.u32 %v3660, 7
    %v3662 = vsub.s32 0, %v3661
    %v3663 = vrot.slane %v3658, %v3662
    %3665 = vmatprep.subr.mxu0 0.0
    %3666 = vmatpush1.msra.mxu0 %v3657
    %3667 = vmatprep.subr.mxu0 0.0
    %3668 = vmatpush1.msra.mxu0 %v3656
    %3669 = vmatprep.subr.mxu0 0.0
    %3670 = vmatpush1.msra.mxu0 %v3655
    %3671 = vmatprep.subr.mxu0 0.0
    %3672 = vmatpush1.msra.mxu0 %v3654
    %3673 = vmatprep.subr.mxu0 0.0
    %3674 = vmatpush1.msra.mxu0 %v3653
    %3675 = vmatprep.subr.mxu0 0.0
    %3676 = vmatpush1.msra.mxu0 %v3652
    %3677 = vmatprep.subr.mxu0 0.0
    %3678 = vmatpush1.msra.mxu0 %v3651
    %3679 = vmatprep.subr.mxu0 0.0
    %3680 = vmatpush1.msra.mxu0 %v3650
    %3681 = vmatprep.subr.mxu0 0.0
    %3682 = vmatpush1.msra.mxu0 %v3649
    %3683 = vmatprep.subr.mxu0 0.0
    %3684 = vmatpush1.msra.mxu0 %v3648
    %3685 = vmatprep.subr.mxu0 0.0
    %3686 = vmatpush1.msra.mxu0 %v3647
    %3687 = vmatprep.subr.mxu0 0.0
    %3688 = vmatpush1.msra.mxu0 %v3646
    %3689 = vmatprep.subr.mxu0 0.0
    %3690 = vmatpush1.msra.mxu0 %v3645
    %3691 = vmatprep.subr.mxu0 0.0
    %3692 = vmatpush1.msra.mxu0 %v3644
    %3693 = vmatprep.subr.mxu0 0.0
    %3694 = vmatpush1.msra.mxu0 %v3643
    %3695 = vmatprep.subr.mxu0 0.0
    %3696 = vmatpush1.msra.mxu0 %v3642
    %3697 = vmatprep.subr.mxu0 0.0
    %3698 = vmatpush2.msra.mxu0 0.0
    %3699 = vmatprep.subr.mxu0 0.0
    %3700 = vmatpush2.msra.mxu0 0.0
    %3701 = vmatprep.subr.mxu0 0.0
    %3702 = vmatpush2.msra.mxu0 0.0
    %3703 = vmatprep.subr.mxu0 0.0
    %3704 = vmatpush2.msra.mxu0 0.0
    %3705 = vmatprep.subr.mxu0 0.0
    %3706 = vmatpush2.msra.mxu0 0.0
    %3707 = vmatprep.subr.mxu0 0.0
    %3708 = vmatpush2.msra.mxu0 0.0
    %3709 = vmatprep.subr.mxu0 0.0
    %3710 = vmatpush2.msra.mxu0 0.0
    %3711 = vmatprep.subr.mxu0 0.0
    %3712 = vmatpush2.msra.mxu0 0.0
    %3713 = vmatprep.subr.mxu0 0.0
    %3714 = vmatpush2.msra.mxu0 0.0
    %3715 = vmatprep.subr.mxu0 0.0
    %3716 = vmatpush2.msra.mxu0 0.0
    %3717 = vmatprep.subr.mxu0 0.0
    %3718 = vmatpush2.msra.mxu0 0.0
    %3719 = vmatprep.subr.mxu0 0.0
    %3720 = vmatpush2.msra.mxu0 0.0
    %3721 = vmatprep.subr.mxu0 0.0
    %3722 = vmatpush2.msra.mxu0 0.0
    %3723 = vmatprep.subr.mxu0 0.0
    %3724 = vmatpush2.msra.mxu0 0.0
    %3725 = vmatprep.subr.mxu0 0.0
    %3726 = vmatpush2.msra.mxu0 0.0
    %3727 = vmatprep.subr.mxu0 0.0
    %3728 = vmatpush2.msra.mxu0 0.0
    %3729 = vmatprep.mubr.f32.mxu0 0.0
    %3730 = vmatmul.mubr.f32.gmra.mxu0 %v3459
    %v3731 = vpop.f32.mrf.mxu0
    %v3732 = vadd.f32 %v3663, %v3731
    %v3733 = vpop.f32.mrf.mxu0
    %3734 = vdwg.mxu0
    %v3735 = vld [vmem:[#allocation14] sm:$0xff]
    %v3736 = vld [vmem:[#allocation14 + $0x8] sm:$0xff]
    %v3737 = vld [vmem:[#allocation14 + $0x10] sm:$0xff]
    %v3738 = vld [vmem:[#allocation14 + $0x18] sm:$0xff]
    %v3739 = vld [vmem:[#allocation14 + $0x20] sm:$0xff]
    %v3740 = vld [vmem:[#allocation14 + $0x28] sm:$0xff]
    %v3741 = vld [vmem:[#allocation14 + $0x30] sm:$0xff]
    %v3742 = vld [vmem:[#allocation14 + $0x38] sm:$0xff]
    %v3743 = vld [vmem:[#allocation14 + $0x40] sm:$0xff]
    %v3744 = vld [vmem:[#allocation14 + $0x48] sm:$0xff]
    %v3745 = vld [vmem:[#allocation14 + $0x50] sm:$0xff]
    %v3746 = vld [vmem:[#allocation14 + $0x58] sm:$0xff]
    %v3747 = vld [vmem:[#allocation14 + $0x60] sm:$0xff]
    %v3748 = vld [vmem:[#allocation14 + $0x68] sm:$0xff]
    %v3749 = vld [vmem:[#allocation14 + $0x70] sm:$0xff]
    %v3750 = vld [vmem:[#allocation14 + $0x78] sm:$0xff]
    %3751 = vmatprep.subr.mxu0 0.0
    %3752 = vmatpush1.msra.mxu0 %v3750
    %3753 = vmatprep.subr.mxu0 0.0
    %3754 = vmatpush1.msra.mxu0 %v3749
    %3755 = vmatprep.subr.mxu0 0.0
    %3756 = vmatpush1.msra.mxu0 %v3748
    %3757 = vmatprep.subr.mxu0 0.0
    %3758 = vmatpush1.msra.mxu0 %v3747
    %3759 = vmatprep.subr.mxu0 0.0
    %3760 = vmatpush1.msra.mxu0 %v3746
    %3761 = vmatprep.subr.mxu0 0.0
    %3762 = vmatpush1.msra.mxu0 %v3745
    %3763 = vmatprep.subr.mxu0 0.0
    %3764 = vmatpush1.msra.mxu0 %v3744
    %3765 = vmatprep.subr.mxu0 0.0
    %3766 = vmatpush1.msra.mxu0 %v3743
    %3767 = vmatprep.subr.mxu0 0.0
    %3768 = vmatpush1.msra.mxu0 %v3742
    %3769 = vmatprep.subr.mxu0 0.0
    %3770 = vmatpush1.msra.mxu0 %v3741
    %3771 = vmatprep.subr.mxu0 0.0
    %3772 = vmatpush1.msra.mxu0 %v3740
    %3773 = vmatprep.subr.mxu0 0.0
    %3774 = vmatpush1.msra.mxu0 %v3739
    %3775 = vmatprep.subr.mxu0 0.0
    %3776 = vmatpush1.msra.mxu0 %v3738
    %3777 = vmatprep.subr.mxu0 0.0
    %3778 = vmatpush1.msra.mxu0 %v3737
    %3779 = vmatprep.subr.mxu0 0.0
    %3780 = vmatpush1.msra.mxu0 %v3736
    %3781 = vmatprep.subr.mxu0 0.0
    %3782 = vmatpush1.msra.mxu0 %v3735
    %3783 = vmatprep.subr.mxu0 0.0
    %3784 = vmatpush2.msra.mxu0 0.0
    %3785 = vmatprep.subr.mxu0 0.0
    %3786 = vmatpush2.msra.mxu0 0.0
    %3787 = vmatprep.subr.mxu0 0.0
    %3788 = vmatpush2.msra.mxu0 0.0
    %3789 = vmatprep.subr.mxu0 0.0
    %3790 = vmatpush2.msra.mxu0 0.0
    %3791 = vmatprep.subr.mxu0 0.0
    %3792 = vmatpush2.msra.mxu0 0.0
    %3793 = vmatprep.subr.mxu0 0.0
    %3794 = vmatpush2.msra.mxu0 0.0
    %3795 = vmatprep.subr.mxu0 0.0
    %3796 = vmatpush2.msra.mxu0 0.0
    %3797 = vmatprep.subr.mxu0 0.0
    %3798 = vmatpush2.msra.mxu0 0.0
    %3799 = vmatprep.subr.mxu0 0.0
    %3800 = vmatpush2.msra.mxu0 0.0
    %3801 = vmatprep.subr.mxu0 0.0
    %3802 = vmatpush2.msra.mxu0 0.0
    %3803 = vmatprep.subr.mxu0 0.0
    %3804 = vmatpush2.msra.mxu0 0.0
    %3805 = vmatprep.subr.mxu0 0.0
    %3806 = vmatpush2.msra.mxu0 0.0
    %3807 = vmatprep.subr.mxu0 0.0
    %3808 = vmatpush2.msra.mxu0 0.0
    %3809 = vmatprep.subr.mxu0 0.0
    %3810 = vmatpush2.msra.mxu0 0.0
    %3811 = vmatprep.subr.mxu0 0.0
    %3812 = vmatpush2.msra.mxu0 0.0
    %3813 = vmatprep.subr.mxu0 0.0
    %3814 = vmatpush2.msra.mxu0 0.0
    %3815 = vmatprep.mubr.f32.mxu0 0.0
    %3816 = vmatmul.mubr.f32.gmra.mxu0 %v3640
    %v3817 = vpop.f32.mrf.mxu0
    %v3818 = vadd.f32 0.0, %v3817
    %v3819 = vpop.f32.mrf.mxu0
    %3820 = vdwg.mxu0
    %v3821 = vadd.f32 %v3732, %v3818
    %v3822 = vtanh.pop %v3821
    %3823 = vst [vmem:[#allocation2 + $0x38] sm:$0xff] %v3822
    %v3824 = vld [vmem:[#allocation2] sm:$0xff]
    %v3825 = vld [vmem:[#allocation2 + $0x8] sm:$0xff]
    %v3826 = vld [vmem:[#allocation2 + $0x10] sm:$0xff]
    %v3827 = vld [vmem:[#allocation2 + $0x18] sm:$0xff]
    %v3828 = vld [vmem:[#allocation2 + $0x20] sm:$0xff]
    %v3829 = vld [vmem:[#allocation2 + $0x28] sm:$0xff]
    %v3830 = vld [vmem:[#allocation2 + $0x30] sm:$0xff]
    %v3831 = vld [vmem:[#allocation2 + $0x38] sm:$0xff]
    %v3832 = vld [vmem:[#allocation15] sm:$0xff]
    %v3833 = vld [vmem:[#allocation15 + $0x8] sm:$0xff]
    %v3834 = vld [vmem:[#allocation15 + $0x10] sm:$0xff]
    %v3835 = vld [vmem:[#allocation15 + $0x18] sm:$0xff]
    %v3836 = vld [vmem:[#allocation15 + $0x20] sm:$0xff]
    %v3837 = vld [vmem:[#allocation15 + $0x28] sm:$0xff]
    %v3838 = vld [vmem:[#allocation15 + $0x30] sm:$0xff]
    %v3839 = vld [vmem:[#allocation15 + $0x38] sm:$0xff]
    %v3840 = vld [vmem:[#allocation15 + $0x40] sm:$0xff]
    %v3841 = vld [vmem:[#allocation15 + $0x48] sm:$0xff]
    %v3842 = vld [vmem:[#allocation15 + $0x50] sm:$0xff]
    %v3843 = vld [vmem:[#allocation15 + $0x58] sm:$0xff]
    %v3844 = vld [vmem:[#allocation15 + $0x60] sm:$0xff]
    %v3845 = vld [vmem:[#allocation15 + $0x68] sm:$0xff]
    %v3846 = vld [vmem:[#allocation15 + $0x70] sm:$0xff]
    %v3847 = vld [vmem:[#allocation15 + $0x78] sm:$0xff]
    %v3848 = vld [vmem:[%s11] sm:$0x1]
    %v3850 = vlaneseq
    %v3851 = vshrl.u32 %v3850, 7
    %v3852 = vsub.s32 0, %v3851
    %v3853 = vrot.slane %v3848, %v3852
    %3855 = vmatprep.subr.mxu0 0.0
    %3856 = vmatpush1.msra.mxu0 %v3847
    %3857 = vmatprep.subr.mxu0 0.0
    %3858 = vmatpush1.msra.mxu0 %v3846
    %3859 = vmatprep.subr.mxu0 0.0
    %3860 = vmatpush1.msra.mxu0 %v3845
    %3861 = vmatprep.subr.mxu0 0.0
    %3862 = vmatpush1.msra.mxu0 %v3844
    %3863 = vmatprep.subr.mxu0 0.0
    %3864 = vmatpush1.msra.mxu0 %v3843
    %3865 = vmatprep.subr.mxu0 0.0
    %3866 = vmatpush1.msra.mxu0 %v3842
    %3867 = vmatprep.subr.mxu0 0.0
    %3868 = vmatpush1.msra.mxu0 %v3841
    %3869 = vmatprep.subr.mxu0 0.0
    %3870 = vmatpush1.msra.mxu0 %v3840
    %3871 = vmatprep.subr.mxu0 0.0
    %3872 = vmatpush1.msra.mxu0 %v3839
    %3873 = vmatprep.subr.mxu0 0.0
    %3874 = vmatpush1.msra.mxu0 %v3838
    %3875 = vmatprep.subr.mxu0 0.0
    %3876 = vmatpush1.msra.mxu0 %v3837
    %3877 = vmatprep.subr.mxu0 0.0
    %3878 = vmatpush1.msra.mxu0 %v3836
    %3879 = vmatprep.subr.mxu0 0.0
    %3880 = vmatpush1.msra.mxu0 %v3835
    %3881 = vmatprep.subr.mxu0 0.0
    %3882 = vmatpush1.msra.mxu0 %v3834
    %3883 = vmatprep.subr.mxu0 0.0
    %3884 = vmatpush1.msra.mxu0 %v3833
    %3885 = vmatprep.subr.mxu0 0.0
    %3886 = vmatpush1.msra.mxu0 %v3832
    %3887 = vmatprep.subr.mxu0 0.0
    %3888 = vmatpush2.msra.mxu0 0.0
    %3889 = vmatprep.subr.mxu0 0.0
    %3890 = vmatpush2.msra.mxu0 0.0
    %3891 = vmatprep.subr.mxu0 0.0
    %3892 = vmatpush2.msra.mxu0 0.0
    %3893 = vmatprep.subr.mxu0 0.0
    %3894 = vmatpush2.msra.mxu0 0.0
    %3895 = vmatprep.subr.mxu0 0.0
    %3896 = vmatpush2.msra.mxu0 0.0
    %3897 = vmatprep.subr.mxu0 0.0
    %3898 = vmatpush2.msra.mxu0 0.0
    %3899 = vmatprep.subr.mxu0 0.0
    %3900 = vmatpush2.msra.mxu0 0.0
    %3901 = vmatprep.subr.mxu0 0.0
    %3902 = vmatpush2.msra.mxu0 0.0
    %3903 = vmatprep.subr.mxu0 0.0
    %3904 = vmatpush2.msra.mxu0 0.0
    %3905 = vmatprep.subr.mxu0 0.0
    %3906 = vmatpush2.msra.mxu0 0.0
    %3907 = vmatprep.subr.mxu0 0.0
    %3908 = vmatpush2.msra.mxu0 0.0
    %3909 = vmatprep.subr.mxu0 0.0
    %3910 = vmatpush2.msra.mxu0 0.0
    %3911 = vmatprep.subr.mxu0 0.0
    %3912 = vmatpush2.msra.mxu0 0.0
    %3913 = vmatprep.subr.mxu0 0.0
    %3914 = vmatpush2.msra.mxu0 0.0
    %3915 = vmatprep.subr.mxu0 0.0
    %3916 = vmatpush2.msra.mxu0 0.0
    %3917 = vmatprep.subr.mxu0 0.0
    %3918 = vmatpush2.msra.mxu0 0.0
    %3919 = vmatprep.mubr.f32.mxu0 0.0
    %3920 = vmatmul.mubr.f32.gmra.mxu0 %v3824
    %v3921 = vpop.f32.mrf.mxu0
    %v3922 = vadd.f32 %v3853, %v3921
    %v3923 = vpop.f32.mrf.mxu0
    %3924 = vmatprep.mubr.f32.mxu0 0.0
    %3925 = vmatmul.mubr.f32.gmra.mxu0 %v3825
    %v3926 = vpop.f32.mrf.mxu0
    %v3927 = vadd.f32 %v3853, %v3926
    %v3928 = vpop.f32.mrf.mxu0
    %3929 = vmatprep.mubr.f32.mxu0 0.0
    %3930 = vmatmul.mubr.f32.gmra.mxu0 %v3826
    %v3931 = vpop.f32.mrf.mxu0
    %v3932 = vadd.f32 %v3853, %v3931
    %v3933 = vpop.f32.mrf.mxu0
    %3934 = vmatprep.mubr.f32.mxu0 0.0
    %3935 = vmatmul.mubr.f32.gmra.mxu0 %v3827
    %v3936 = vpop.f32.mrf.mxu0
    %v3937 = vadd.f32 %v3853, %v3936
    %v3938 = vpop.f32.mrf.mxu0
    %3939 = vmatprep.mubr.f32.mxu0 0.0
    %3940 = vmatmul.mubr.f32.gmra.mxu0 %v3828
    %v3941 = vpop.f32.mrf.mxu0
    %v3942 = vadd.f32 %v3853, %v3941
    %v3943 = vpop.f32.mrf.mxu0
    %3944 = vmatprep.mubr.f32.mxu0 0.0
    %3945 = vmatmul.mubr.f32.gmra.mxu0 %v3829
    %v3946 = vpop.f32.mrf.mxu0
    %v3947 = vadd.f32 %v3853, %v3946
    %v3948 = vpop.f32.mrf.mxu0
    %3949 = vmatprep.mubr.f32.mxu0 0.0
    %3950 = vmatmul.mubr.f32.gmra.mxu0 %v3830
    %v3951 = vpop.f32.mrf.mxu0
    %v3952 = vadd.f32 %v3853, %v3951
    %v3953 = vpop.f32.mrf.mxu0
    %3954 = vmatprep.mubr.f32.mxu0 0.0
    %3955 = vmatmul.mubr.f32.gmra.mxu0 %v3831
    %v3956 = vpop.f32.mrf.mxu0
    %v3957 = vadd.f32 %v3853, %v3956
    %v3958 = vpop.f32.mrf.mxu0
    %3959 = vdwg.mxu0
    %3960 = vst [vmem:[#allocation17] sm:$0xff] %v3922
    %3961 = vst [vmem:[#allocation17 + $0x8] sm:$0xff] %v3927
    %3962 = vst [vmem:[#allocation17 + $0x10] sm:$0xff] %v3932
    %3963 = vst [vmem:[#allocation17 + $0x18] sm:$0xff] %v3937
    %3964 = vst [vmem:[#allocation17 + $0x20] sm:$0xff] %v3942
    %3965 = vst [vmem:[#allocation17 + $0x28] sm:$0xff] %v3947
    %3966 = vst [vmem:[#allocation17 + $0x30] sm:$0xff] %v3952
    %3967 = vst [vmem:[#allocation17 + $0x38] sm:$0xff] %v3957
    // Predicated region
    $region82: #{tpu_custom_call.1} parent=1 // pred_check
      _
    $region83: #{tpu_custom_call.1} parent=1 // pred_check_branch
      %3969 = sbr.rel (0) target = $region85
    $region84: #{tpu_custom_call.1} parent=1 // pred_region
      %s3971 = ssub.s32 1024, 1024
      %3972 = vsyncadd [#allocation5], %s3971
      %s3973 = sshll.u32 [#allocation17], 4
      %s3974 = int_to_ptr.vmem [resolvable:$true] %s3973
      %3979 = dma.vmem_to_hbm [thread:$0]  %s3974, 1024, %s12, [#allocation5], 128, 128, 8
    $region85: #{tpu_custom_call.1} parent=1 // pred_fallthru
      _
    // Predicated region
    $region86: #{tpu_custom_call.1} parent=1 // pred_check
      _
    $region87: #{tpu_custom_call.1} parent=1 // pred_check_branch
      %3981 = sbr.rel (0) target = $region89
    $region88: #{tpu_custom_call.1} parent=1 // pred_region
      %3982 = dma.done [#allocation5], 1024
    $region89: #{tpu_custom_call.1} parent=1 // pred_fallthru
      _
    %3983 = vsyncpa [#allocation4], 1
    %3984 = vsyncpa [#allocation7], 1
    %3985 = vsyncpa [#allocation10], 1
    %3986 = vsyncpa [#allocation13], 1
    %3987 = vsyncpa [#allocation16], 1
    %3988 = vsyncpa [#allocation5], 1

</llo_original>
